<compile_context>
chip_gen: v7x
topology: tpu7x:2x2x1
jax: 0.10.0
libtpu: 0.0.40
codegen_flags: <defaults>
</compile_context>

<pallas_src>
import functools

import jax
import jax.numpy as jnp
from jax.experimental import pallas as pl
from jax.experimental.pallas import tpu as pltpu


def _round_up(n, m):
    return ((n + m - 1) // m) * m


def _pack_rows(arrays):
    """Concatenate along axis 0, padding each segment to a multiple of 8 rows
    (clean sublane alignment for the static in-kernel slices).  Returns the
    packed array and the static row offset of every segment."""
    offsets, chunks, cur = [], [], 0
    for a in arrays:
        offsets.append(cur)
        chunks.append(a)
        pad = (-a.shape[0]) % 8
        if pad:
            chunks.append(jnp.zeros((pad,) + a.shape[1:], a.dtype))
        cur += a.shape[0] + pad
    return jnp.concatenate(chunks, axis=0), offsets


def _vsn_kernel(x_ref, wa_ref, wb_ref, b_ref, out_ref, *,
                units, num_features, project_inputs, offs, mm_dtype, precision):
    U, F = units, num_features

    x_bm = x_ref[...]                                   # (bb, F) f32, batch-major
    x_mm = x_bm.astype(mm_dtype)

    # --- GatedResidualNetwork ------------------------------------------------
    # elu_linear (+ project when input_size != units) as ONE stacked matmul.
    # Contracting the feature axes of both operands puts batch on the lane
    # axis inside the MXU -- no separate HBM transpose needed.
    wa = wa_ref[...]                                    # (2U or U, F)
    hp = jax.lax.dot_general(wa, x_mm, (((1,), (1,)), ((), ())),
                             preferred_element_type=jnp.float32,
                             precision=precision)       # (2U or U, bb)
    hp = hp + b_ref[offs["b_ea"]:offs["b_ea"] + hp.shape[0], :]

    h = hp[:U]
    # ELU(alpha=1); exp(h)-1 instead of expm1 (guaranteed Mosaic lowering).
    h = jnp.where(h > 0, h, jnp.exp(h) - 1.0)

    res = hp[U:2 * U] if project_inputs else x_bm.T     # residual path (U, bb)

    # linear (dropout is identity in eval mode)
    w_lin = wb_ref[offs["w_lin"]:offs["w_lin"] + U, :]
    h = jax.lax.dot_general(w_lin, h.astype(mm_dtype), (((1,), (0,)), ((), ())),
                            preferred_element_type=jnp.float32,
                            precision=precision)
    h = h + b_ref[offs["b_lin"]:offs["b_lin"] + U, :]

    # GatedLinearUnit: stacked (linear1 ; linear2) -> one (2U, U) matmul.
    w_g = wb_ref[offs["w_g"]:offs["w_g"] + 2 * U, :]
    g = jax.lax.dot_general(w_g, h.astype(mm_dtype), (((1,), (0,)), ((), ())),
                            preferred_element_type=jnp.float32,
                            precision=precision)
    g = g + b_ref[offs["b_g"]:offs["b_g"] + 2 * U, :]
    g1, g2 = g[:U], g[U:2 * U]
    # Numerically stable logistic: one exp, exact VALU divide (EUP is already
    # busy with the ELU / softmax exps, per the perf review).
    z = jnp.exp(-jnp.abs(g2))
    r = 1.0 / (1.0 + z)
    sig = jnp.where(g2 >= 0, r, z * r)

    y = res + g1 * sig                                  # (U, bb)

    # LayerNorm over units (sublane axis), eps = 1e-5 (PyTorch default).
    mean = jnp.mean(y, axis=0, keepdims=True)
    var = jnp.mean((y - mean) ** 2, axis=0, keepdims=True)
    y = (y - mean) * jax.lax.rsqrt(var + 1e-5)
    y = (y * b_ref[offs["ln_g"]:offs["ln_g"] + U, :]
         + b_ref[offs["ln_b"]:offs["ln_b"] + U, :])

    # --- softmax_linear + softmax over features -------------------------------
    w_sm = wb_ref[offs["w_sm"]:offs["w_sm"] + F, :]
    logits = jax.lax.dot_general(w_sm, y.astype(mm_dtype), (((1,), (0,)), ((), ())),
                                 preferred_element_type=jnp.float32,
                                 precision=precision)   # (F, bb), lane-dense
    logits = logits + b_ref[offs["b_sm"]:offs["b_sm"] + F, :]
    m = jnp.max(logits, axis=0, keepdims=True)
    e = jnp.exp(logits - m)
    p = e / jnp.sum(e, axis=0, keepdims=True)           # exact divide: rows sum to 1
    # Batch-major store; (F, bb) -> (bb, F) is one in-kernel transpose instead
    # of a separate HBM round trip in the wrapper.
    out_ref[...] = jnp.transpose(p).astype(out_ref.dtype)


def vsn_forward(x, params, *, block_b=2048, matmul_dtype=jnp.bfloat16):
    """VSN forward pass.

    x:       (B, num_features) float32, batch-major (no wrapper transposes).
    params:  PyTorch-layout weights (out, in); biases / LayerNorm params (out, 1).
    block_b: batch tile (rides the 128-wide lane axis inside the kernel).
             Sweep 1024-4096; per-step VMEM stays at a few MB even at 4096.
    matmul_dtype: jnp.bfloat16 (default; MXU-native on v6e/v7x, f32 accumulate)
             or jnp.float32 (full-precision path, MXU precision=HIGHEST).
    """
    B, F = x.shape
    U = params["w_elu"].shape[0]
    project_inputs = (F != U)

    # ---- pack weights once (stacked shared-input matmuls, few in_specs) -----
    if project_inputs:
        wa = jnp.concatenate([params["w_elu"], params["w_prj"]], axis=0)    # (2U, F)
        b_ea = jnp.concatenate([params["b_elu"], params["b_prj"]], axis=0)  # (2U, 1)
    else:
        wa, b_ea = params["w_elu"], params["b_elu"]
    wb, wb_offs = _pack_rows([
        params["w_lin"],                                                    # (U, U)
        jnp.concatenate([params["w_g1"], params["w_g2"]], axis=0),          # (2U, U)
        params["w_sm"],                                                     # (F, U)
    ])
    b_all, b_offs = _pack_rows([
        b_ea, params["b_lin"],
        jnp.concatenate([params["b_g1"], params["b_g2"]], axis=0),
        params["ln_g"], params["ln_b"], params["b_sm"],
    ])
    wa = wa.astype(matmul_dtype)
    wb = wb.astype(matmul_dtype)
    offs = dict(w_lin=wb_offs[0], w_g=wb_offs[1], w_sm=wb_offs[2],
                b_ea=b_offs[0], b_lin=b_offs[1], b_g=b_offs[2],
                ln_g=b_offs[3], ln_b=b_offs[4], b_sm=b_offs[5])

    # ---- batch tiling: large lane-sized tiles, >=2 grid steps when possible --
    lanes_b = _round_up(B, 128)                 # batch rides the lane axis
    eff_block = min(_round_up(block_b, 128), lanes_b)
    if lanes_b // eff_block < 2 and lanes_b >= 256:
        eff_block = _round_up(lanes_b // 2, 128)    # keep both v7x TCs busy
    padded_b = _round_up(B, eff_block)
    x_in = x if padded_b == B else jnp.pad(x, ((0, padded_b - B), (0, 0)))

    precision = (jax.lax.Precision.HIGHEST if matmul_dtype == jnp.float32
                 else jax.lax.Precision.DEFAULT)
    kernel = functools.partial(
        _vsn_kernel, units=U, num_features=F, project_inputs=project_inputs,
        offs=offs, mm_dtype=matmul_dtype, precision=precision)

    def whole(a):                               # tiny resident weight slab
        return pl.BlockSpec(a.shape, lambda i: (0, 0))

    out = pl.pallas_call(
        kernel,
        grid=(padded_b // eff_block,),
        in_specs=[pl.BlockSpec((eff_block, F), lambda i: (i, 0)),   # x tile
                  whole(wa), whole(wb), whole(b_all)],
        out_specs=pl.BlockSpec((eff_block, F), lambda i: (i, 0)),   # batch-major
        out_shape=jax.ShapeDtypeStruct((padded_b, F), jnp.float32),
        compiler_params=pltpu.CompilerParams(
            dimension_semantics=("parallel",)),
    )(x_in, wa, wb, b_all)
    return out if padded_b == B else out[:B]


def init_params(key, num_features, units):
    """Deterministic init; weights in PyTorch layout (out, in), biases (out, 1)."""
    ks = jax.random.split(key, 6)

    def lin(k, fan_in, fan_out):
        bound = 1.0 / (fan_in ** 0.5)
        kw, kb = jax.random.split(k)
        w = jax.random.uniform(kw, (fan_out, fan_in), jnp.float32, -bound, bound)
        b = jax.random.uniform(kb, (fan_out, 1), jnp.float32, -bound, bound)
        return w, b

    w_elu, b_elu = lin(ks[0], num_features, units)
    w_lin, b_lin = lin(ks[1], units, units)
    w_prj, b_prj = lin(ks[2], num_features, units)
    w_g1, b_g1 = lin(ks[3], units, units)
    w_g2, b_g2 = lin(ks[4], units, units)
    w_sm, b_sm = lin(ks[5], units, num_features)
    ln_g = jnp.ones((units, 1), jnp.float32)
    ln_b = jnp.zeros((units, 1), jnp.float32)
    return dict(w_elu=w_elu, b_elu=b_elu, w_lin=w_lin, b_lin=b_lin,
                w_prj=w_prj, b_prj=b_prj, w_g1=w_g1, b_g1=b_g1,
                w_g2=w_g2, b_g2=b_g2, ln_g=ln_g, ln_b=ln_b,
                w_sm=w_sm, b_sm=b_sm)


def vsn_reference(x, p):
    """Independent pure-JAX reference of the same forward pass (batch-major)."""
    def lin(v, w, b):
        return v @ w.T + b[:, 0]

    h = jax.nn.elu(lin(x, p["w_elu"], p["b_elu"]))
    h = lin(h, p["w_lin"], p["b_lin"])
    units = p["w_lin"].shape[0]
    res = lin(x, p["w_prj"], p["b_prj"]) if x.shape[-1] != units else x
    y = res + lin(h, p["w_g1"], p["b_g1"]) * jax.nn.sigmoid(lin(h, p["w_g2"], p["b_g2"]))
    mean = jnp.mean(y, -1, keepdims=True)
    var = jnp.mean((y - mean) ** 2, -1, keepdims=True)
    y = (y - mean) / jnp.sqrt(var + 1e-5) * p["ln_g"][:, 0] + p["ln_b"][:, 0]
    return jax.nn.softmax(lin(y, p["w_sm"], p["b_sm"]), axis=-1)


if __name__ == "__main__":
    num_features = 16
    units = 32
    batch = 64        # small demo shape; wrapper row-pads batch to the lane tile

    key = jax.random.PRNGKey(0)
    k_x, k_p = jax.random.split(key)
    x = jax.random.normal(k_x, (batch, num_features), jnp.float32)
    params = init_params(k_p, num_features, units)

    with jax.default_matmul_precision("float32"):
        ref = vsn_reference(x, params)
    ref = jax.block_until_ready(ref)

    # Accuracy path: f32 matmul operands (HIGHEST MXU precision) -> tight check.
    out_f32 = jax.block_until_ready(
        vsn_forward(x, params, matmul_dtype=jnp.float32))
    assert out_f32.shape == (batch, num_features)
    assert jnp.allclose(out_f32, ref, atol=1e-4, rtol=1e-4), "f32 path mismatch"

    # Perf path (default): bf16 MXU operands, f32 accumulation -> relaxed check.
    out = jax.block_until_ready(vsn_forward(x, params))
    assert out.shape == (batch, num_features)
    assert jnp.allclose(out, ref, atol=5e-3, rtol=5e-2), "bf16 path mismatch"

    # Softmax uses an exact divide -> rows sum to 1 up to f32 rounding.
    assert jnp.allclose(jnp.sum(out_f32, -1), jnp.ones((batch,)), atol=1e-4)
    assert jnp.allclose(jnp.sum(out, -1), jnp.ones((batch,)), atol=1e-4)

    print("KERNEL_OK")
</pallas_src>

<mosaic_0001>
module attributes {stable_mosaic.version = 11 : i64} {
  func.func @_vsn_kernel(%arg0: i32, %arg1: memref<128x16xf32, #tpu.memory_space<vmem>>, %arg2: memref<64x16xf32, #tpu.memory_space<vmem>>, %arg3: memref<112x32xf32, #tpu.memory_space<vmem>>, %arg4: memref<240x1xf32, #tpu.memory_space<vmem>>, %arg5: memref<128x16xf32, #tpu.memory_space<vmem>>) attributes {dimension_semantics = [#tpu.dimension_semantics<parallel>], iteration_bounds = array<i64: 1>, scalar_prefetch = 0 : i64, scratch_operands = 0 : i64, tpu.core_type = #tpu.core_type<tc>, window_params = [{transform_indices = @transform_0, window_bounds = array<i64: 128, 16>}, {pipeline_mode = #tpu.pipeline_mode<synchronous>, transform_indices = @transform_1, window_bounds = array<i64: 64, 16>}, {pipeline_mode = #tpu.pipeline_mode<synchronous>, transform_indices = @transform_2, window_bounds = array<i64: 112, 32>}, {pipeline_mode = #tpu.pipeline_mode<synchronous>, transform_indices = @transform_3, window_bounds = array<i64: 240, 1>}, {transform_indices = @transform_4, window_bounds = array<i64: 128, 16>}]} {
    %c0 = arith.constant 0 : index
    %c0_0 = arith.constant 0 : index
    %0 = vector.load %arg1[%c0, %c0_0] : memref<128x16xf32, #tpu.memory_space<vmem>>, vector<128x16xf32>
    %c0_1 = arith.constant 0 : index
    %c0_2 = arith.constant 0 : index
    %1 = vector.load %arg2[%c0_1, %c0_2] : memref<64x16xf32, #tpu.memory_space<vmem>>, vector<64x16xf32>
    %cst = arith.constant dense<0.000000e+00> : vector<64x128xf32>
    %2 = tpu.matmul %1, %0, %cst {dimension_numbers = #tpu.dot_dimension_numbers<[1], [1], [0], [0], [0, 0, 1, 0], [], []>, precision = #tpu.contract_precision<fp32>} : vector<64x16xf32>, vector<128x16xf32>, vector<64x128xf32> -> vector<64x128xf32>
    %c0_3 = arith.constant 0 : index
    %c0_4 = arith.constant 0 : index
    %3 = vector.load %arg4[%c0_3, %c0_4] : memref<240x1xf32, #tpu.memory_space<vmem>>, vector<64x1xf32>
    %4 = vector.broadcast %3 : vector<64x1xf32> to vector<64x128xf32>
    %5 = arith.addf %2, %4 : vector<64x128xf32>
    %6 = vector.extract_strided_slice %5 {offsets = [0, 0], sizes = [32, 128], strides = [1, 1]} : vector<64x128xf32> to vector<32x128xf32>
    %cst_5 = arith.constant 0.000000e+00 : f32
    %7 = vector.broadcast %cst_5 : f32 to vector<32x128xf32>
    %8 = arith.cmpf ogt, %6, %7 : vector<32x128xf32>
    %9 = math.exp %6 : vector<32x128xf32>
    %cst_6 = arith.constant 1.000000e+00 : f32
    %10 = vector.broadcast %cst_6 : f32 to vector<32x128xf32>
    %11 = arith.subf %9, %10 : vector<32x128xf32>
    %12 = arith.select %8, %6, %11 : vector<32x128xi1>, vector<32x128xf32>
    %13 = vector.extract_strided_slice %5 {offsets = [32, 0], sizes = [32, 128], strides = [1, 1]} : vector<64x128xf32> to vector<32x128xf32>
    %c0_7 = arith.constant 0 : index
    %c0_8 = arith.constant 0 : index
    %14 = vector.load %arg3[%c0_7, %c0_8] : memref<112x32xf32, #tpu.memory_space<vmem>>, vector<32x32xf32>
    %cst_9 = arith.constant dense<0.000000e+00> : vector<32x128xf32>
    %15 = tpu.matmul %14, %12, %cst_9 {dimension_numbers = #tpu.dot_dimension_numbers<[1], [0], [0], [1], [0, 0, 1, 1], [], []>, precision = #tpu.contract_precision<fp32>} : vector<32x32xf32>, vector<32x128xf32>, vector<32x128xf32> -> vector<32x128xf32>
    %c64 = arith.constant 64 : index
    %c0_10 = arith.constant 0 : index
    %16 = vector.load %arg4[%c64, %c0_10] : memref<240x1xf32, #tpu.memory_space<vmem>>, vector<32x1xf32>
    %17 = vector.broadcast %16 : vector<32x1xf32> to vector<32x128xf32>
    %18 = arith.addf %15, %17 : vector<32x128xf32>
    %c32 = arith.constant 32 : index
    %c0_11 = arith.constant 0 : index
    %19 = vector.load %arg3[%c32, %c0_11] : memref<112x32xf32, #tpu.memory_space<vmem>>, vector<64x32xf32>
    %cst_12 = arith.constant dense<0.000000e+00> : vector<64x128xf32>
    %20 = tpu.matmul %19, %18, %cst_12 {dimension_numbers = #tpu.dot_dimension_numbers<[1], [0], [0], [1], [0, 0, 1, 1], [], []>, precision = #tpu.contract_precision<fp32>} : vector<64x32xf32>, vector<32x128xf32>, vector<64x128xf32> -> vector<64x128xf32>
    %c96 = arith.constant 96 : index
    %c0_13 = arith.constant 0 : index
    %21 = vector.load %arg4[%c96, %c0_13] : memref<240x1xf32, #tpu.memory_space<vmem>>, vector<64x1xf32>
    %22 = vector.broadcast %21 : vector<64x1xf32> to vector<64x128xf32>
    %23 = arith.addf %20, %22 : vector<64x128xf32>
    %24 = vector.extract_strided_slice %23 {offsets = [0, 0], sizes = [32, 128], strides = [1, 1]} : vector<64x128xf32> to vector<32x128xf32>
    %25 = vector.extract_strided_slice %23 {offsets = [32, 0], sizes = [32, 128], strides = [1, 1]} : vector<64x128xf32> to vector<32x128xf32>
    %26 = math.absf %25 : vector<32x128xf32>
    %cst_14 = arith.constant 0.000000e+00 : f32
    %27 = vector.broadcast %cst_14 : f32 to vector<32x128xf32>
    %28 = arith.subf %27, %26 : vector<32x128xf32>
    %29 = math.exp %28 : vector<32x128xf32>
    %cst_15 = arith.constant 1.000000e+00 : f32
    %30 = vector.broadcast %cst_15 : f32 to vector<32x128xf32>
    %31 = arith.addf %30, %29 : vector<32x128xf32>
    %cst_16 = arith.constant 1.000000e+00 : f32
    %32 = vector.broadcast %cst_16 : f32 to vector<32x128xf32>
    %33 = arith.divf %32, %31 : vector<32x128xf32>
    %cst_17 = arith.constant 0.000000e+00 : f32
    %34 = vector.broadcast %cst_17 : f32 to vector<32x128xf32>
    %35 = arith.cmpf oge, %25, %34 : vector<32x128xf32>
    %36 = arith.mulf %29, %33 : vector<32x128xf32>
    %37 = arith.select %35, %33, %36 : vector<32x128xi1>, vector<32x128xf32>
    %38 = arith.mulf %24, %37 : vector<32x128xf32>
    %39 = arith.addf %13, %38 : vector<32x128xf32>
    %cst_18 = arith.constant dense<0.000000e+00> : vector<128xf32>
    %40 = vector.multi_reduction <add>, %39, %cst_18 [0] : vector<32x128xf32> to vector<128xf32>
    %41 = vector.shape_cast %40 : vector<128xf32> to vector<1x128xf32>
    %cst_19 = arith.constant 3.200000e+01 : f32
    %42 = vector.broadcast %cst_19 : f32 to vector<1x128xf32>
    %43 = arith.divf %41, %42 : vector<1x128xf32>
    %44 = vector.broadcast %43 : vector<1x128xf32> to vector<32x128xf32>
    %45 = arith.subf %39, %44 : vector<32x128xf32>
    %46 = arith.mulf %45, %45 : vector<32x128xf32>
    %cst_20 = arith.constant dense<0.000000e+00> : vector<128xf32>
    %47 = vector.multi_reduction <add>, %46, %cst_20 [0] : vector<32x128xf32> to vector<128xf32>
    %48 = vector.shape_cast %47 : vector<128xf32> to vector<1x128xf32>
    %cst_21 = arith.constant 3.200000e+01 : f32
    %49 = vector.broadcast %cst_21 : f32 to vector<1x128xf32>
    %50 = arith.divf %48, %49 : vector<1x128xf32>
    %51 = vector.broadcast %43 : vector<1x128xf32> to vector<32x128xf32>
    %52 = arith.subf %39, %51 : vector<32x128xf32>
    %cst_22 = arith.constant 9.99999974E-6 : f32
    %53 = vector.broadcast %cst_22 : f32 to vector<1x128xf32>
    %54 = arith.addf %50, %53 : vector<1x128xf32>
    %55 = math.rsqrt %54 : vector<1x128xf32>
    %56 = vector.broadcast %55 : vector<1x128xf32> to vector<32x128xf32>
    %57 = arith.mulf %52, %56 : vector<32x128xf32>
    %c160 = arith.constant 160 : index
    %c0_23 = arith.constant 0 : index
    %58 = vector.load %arg4[%c160, %c0_23] : memref<240x1xf32, #tpu.memory_space<vmem>>, vector<32x1xf32>
    %59 = vector.broadcast %58 : vector<32x1xf32> to vector<32x128xf32>
    %60 = arith.mulf %57, %59 : vector<32x128xf32>
    %c192 = arith.constant 192 : index
    %c0_24 = arith.constant 0 : index
    %61 = vector.load %arg4[%c192, %c0_24] : memref<240x1xf32, #tpu.memory_space<vmem>>, vector<32x1xf32>
    %62 = vector.broadcast %61 : vector<32x1xf32> to vector<32x128xf32>
    %63 = arith.addf %60, %62 : vector<32x128xf32>
    %c96_25 = arith.constant 96 : index
    %c0_26 = arith.constant 0 : index
    %64 = vector.load %arg3[%c96_25, %c0_26] : memref<112x32xf32, #tpu.memory_space<vmem>>, vector<16x32xf32>
    %cst_27 = arith.constant dense<0.000000e+00> : vector<16x128xf32>
    %65 = tpu.matmul %64, %63, %cst_27 {dimension_numbers = #tpu.dot_dimension_numbers<[1], [0], [0], [1], [0, 0, 1, 1], [], []>, precision = #tpu.contract_precision<fp32>} : vector<16x32xf32>, vector<32x128xf32>, vector<16x128xf32> -> vector<16x128xf32>
    %c224 = arith.constant 224 : index
    %c0_28 = arith.constant 0 : index
    %66 = vector.load %arg4[%c224, %c0_28] : memref<240x1xf32, #tpu.memory_space<vmem>>, vector<16x1xf32>
    %67 = vector.broadcast %66 : vector<16x1xf32> to vector<16x128xf32>
    %68 = arith.addf %65, %67 : vector<16x128xf32>
    %cst_29 = arith.constant dense<0xFF800000> : vector<128xf32>
    %69 = vector.multi_reduction <maximumf>, %68, %cst_29 [0] : vector<16x128xf32> to vector<128xf32>
    %70 = vector.shape_cast %69 : vector<128xf32> to vector<1x128xf32>
    %71 = vector.broadcast %70 : vector<1x128xf32> to vector<16x128xf32>
    %72 = arith.subf %68, %71 : vector<16x128xf32>
    %73 = math.exp %72 : vector<16x128xf32>
    %cst_30 = arith.constant dense<0.000000e+00> : vector<128xf32>
    %74 = vector.multi_reduction <add>, %73, %cst_30 [0] : vector<16x128xf32> to vector<128xf32>
    %75 = vector.shape_cast %74 : vector<128xf32> to vector<1x128xf32>
    %76 = vector.broadcast %75 : vector<1x128xf32> to vector<16x128xf32>
    %77 = arith.divf %73, %76 : vector<16x128xf32>
    %78 = tpu.transpose %77, [1, 0] : vector<16x128xf32> -> vector<128x16xf32>
    %c0_31 = arith.constant 0 : index
    %c0_32 = arith.constant 0 : index
    %79 = vector.load %arg5[%c0_31, %c0_32] : memref<128x16xf32, #tpu.memory_space<vmem>>, vector<128x16xf32>
    tpu.vector_store %arg5[%c0_31, %c0_32], %78 {strides = array<i32>} : memref<128x16xf32, #tpu.memory_space<vmem>>, vector<128x16xf32>,
    return
  }
  func.func @transform_0(%arg0: i32) -> (i32, i32) {
    %c0_i32 = arith.constant 0 : i32
    %c0_i32_0 = arith.constant 0 : i32
    return %arg0, %c0_i32 : i32, i32
  }
  func.func @transform_1(%arg0: i32) -> (i32, i32) {
    %c0_i32 = arith.constant 0 : i32
    %c0_i32_0 = arith.constant 0 : i32
    %c0_i32_1 = arith.constant 0 : i32
    return %c0_i32, %c0_i32_0 : i32, i32
  }
  func.func @transform_2(%arg0: i32) -> (i32, i32) {
    %c0_i32 = arith.constant 0 : i32
    %c0_i32_0 = arith.constant 0 : i32
    %c0_i32_1 = arith.constant 0 : i32
    return %c0_i32, %c0_i32_0 : i32, i32
  }
  func.func @transform_3(%arg0: i32) -> (i32, i32) {
    %c0_i32 = arith.constant 0 : i32
    %c0_i32_0 = arith.constant 0 : i32
    %c0_i32_1 = arith.constant 0 : i32
    return %c0_i32, %c0_i32_0 : i32, i32
  }
  func.func @transform_4(%arg0: i32) -> (i32, i32) {
    %c0_i32 = arith.constant 0 : i32
    %c0_i32_0 = arith.constant 0 : i32
    return %arg0, %c0_i32 : i32, i32
  }
}

</mosaic_0001>

<llo_original>
// kernel: tpu_custom_call.1
$region0: #{tpu_custom_call.1}
  #allocation0 [shape = 'u32[]', space=smem, size = 0x4, offset = 0x4, fixed_abs, tag = 'smem constant byte address 0x4 - core index']
  #allocation1 [shape = 'u32[144,128]{1,0:T(1,128)}', space=vmem, size = 0x12000, scoped, tag = 'internal scratch']
  %s0 = inlined_call_operand.vmem [shape: f32[128,16], index: 0, kind: input, shape index: {}]
  %s1 = inlined_call_operand.vmem [shape: f32[64,16], index: 1, kind: input, shape index: {}]
  %s2 = inlined_call_operand.vmem [shape: f32[112,32], index: 2, kind: input, shape index: {}]
  %s3 = inlined_call_operand.vmem [shape: f32[240,1], index: 3, kind: input, shape index: {}]
  %s4 = inlined_call_operand.vmem [shape: f32[128,16], index: 4, kind: output, shape index: {}]
  %s5 = sld [smem:[#allocation0]]
  $region26: #{tpu_custom_call.1} parent=0
    _
  %s7 = ssub.s32 1, %s5
  %s8 = scalar_select 0, %s7, %s5
  // Predicated region
  $region2: #{tpu_custom_call.1} parent=0 // pred_check
    _
  $region3: #{tpu_custom_call.1} parent=0 // pred_check_branch
    %10 = sbr.rel (0) target = $region5
  $region4: #{tpu_custom_call.1} parent=0 // pred_region
    _
  $region5: #{tpu_custom_call.1} parent=0 // pred_fallthru
    _
  // Predicated region
  $region6: #{tpu_custom_call.1} parent=0 // pred_check
    _
  $region7: #{tpu_custom_call.1} parent=0 // pred_check_branch
    %12 = sbr.rel (0) target = $region9
  $region8: #{tpu_custom_call.1} parent=0 // pred_region
    _
  $region9: #{tpu_custom_call.1} parent=0 // pred_fallthru
    _
  // Predicated region
  $region10: #{tpu_custom_call.1} parent=0 // pred_check
    _
  $region11: #{tpu_custom_call.1} parent=0 // pred_check_branch
    %14 = sbr.rel (0) target = $region13
  $region12: #{tpu_custom_call.1} parent=0 // pred_region
    _
  $region13: #{tpu_custom_call.1} parent=0 // pred_fallthru
    _
  // Predicated region
  $region14: #{tpu_custom_call.1} parent=0 // pred_check
    _
  $region15: #{tpu_custom_call.1} parent=0 // pred_check_branch
    %16 = sbr.rel (0) target = $region17
  $region16: #{tpu_custom_call.1} parent=0 // pred_region
    _
  $region17: #{tpu_custom_call.1} parent=0 // pred_fallthru
    _
  %v17 = vld [vmem:[%s0] sm:$0xff]
  %v18 = vld [vmem:[%s0 + $0x8] sm:$0xff]
  %v19 = vld [vmem:[%s0 + $0x10] sm:$0xff]
  %v20 = vld [vmem:[%s0 + $0x18] sm:$0xff]
  %v21 = vld [vmem:[%s0 + $0x20] sm:$0xff]
  %v22 = vld [vmem:[%s0 + $0x28] sm:$0xff]
  %v23 = vld [vmem:[%s0 + $0x30] sm:$0xff]
  %v24 = vld [vmem:[%s0 + $0x38] sm:$0xff]
  %v25 = vld [vmem:[%s0 + $0x40] sm:$0xff]
  %v26 = vld [vmem:[%s0 + $0x48] sm:$0xff]
  %v27 = vld [vmem:[%s0 + $0x50] sm:$0xff]
  %v28 = vld [vmem:[%s0 + $0x58] sm:$0xff]
  %v29 = vld [vmem:[%s0 + $0x60] sm:$0xff]
  %v30 = vld [vmem:[%s0 + $0x68] sm:$0xff]
  %v31 = vld [vmem:[%s0 + $0x70] sm:$0xff]
  %v32 = vld [vmem:[%s0 + $0x78] sm:$0xff]
  %v33 = vld [vmem:[%s1] sm:$0xff]
  %v34 = vld [vmem:[%s1 + $0x8] sm:$0xff]
  %v35 = vld [vmem:[%s1 + $0x10] sm:$0xff]
  %v36 = vld [vmem:[%s1 + $0x18] sm:$0xff]
  %v37 = vld [vmem:[%s1 + $0x20] sm:$0xff]
  %v38 = vld [vmem:[%s1 + $0x28] sm:$0xff]
  %v39 = vld [vmem:[%s1 + $0x30] sm:$0xff]
  %v40 = vld [vmem:[%s1 + $0x38] sm:$0xff]
  %v41 = vld [vmem:[%s3] sm:$0xff]
  %v42 = vld [vmem:[%s3 + $0x8] sm:$0xff]
  %v43 = vld [vmem:[%s3 + $0x10] sm:$0xff]
  %v44 = vld [vmem:[%s3 + $0x18] sm:$0xff]
  %v45 = vld [vmem:[%s3 + $0x20] sm:$0xff]
  %v46 = vld [vmem:[%s3 + $0x28] sm:$0xff]
  %v47 = vld [vmem:[%s3 + $0x30] sm:$0xff]
  %v48 = vld [vmem:[%s3 + $0x38] sm:$0xff]
  %50 = vset.pattern.permute.xlu0 0
  %51 = vperm.xlu0 %50, %v41
  %v52 = vpop.permute.xlu0 %51
  %55 = vset.pattern.permute.xlu0 0
  %56 = vperm.xlu0 %55, %v42
  %v57 = vpop.permute.xlu0 %56
  %60 = vset.pattern.permute.xlu0 0
  %61 = vperm.xlu0 %60, %v43
  %v62 = vpop.permute.xlu0 %61
  %65 = vset.pattern.permute.xlu0 0
  %66 = vperm.xlu0 %65, %v44
  %v67 = vpop.permute.xlu0 %66
  %70 = vset.pattern.permute.xlu0 0
  %71 = vperm.xlu0 %70, %v45
  %v72 = vpop.permute.xlu0 %71
  %75 = vset.pattern.permute.xlu0 0
  %76 = vperm.xlu0 %75, %v46
  %v77 = vpop.permute.xlu0 %76
  %80 = vset.pattern.permute.xlu0 0
  %81 = vperm.xlu0 %80, %v47
  %v82 = vpop.permute.xlu0 %81
  %85 = vset.pattern.permute.xlu0 0
  %86 = vperm.xlu0 %85, %v48
  %v87 = vpop.permute.xlu0 %86
  %vm89 = vcmask 130048
  %v91 = vsel %vm89, %v33, 0
  %v94 = vsel %vm89, %v34, 0
  %v97 = vsel %vm89, %v35, 0
  %v100 = vsel %vm89, %v36, 0
  %v103 = vsel %vm89, %v37, 0
  %v106 = vsel %vm89, %v38, 0
  %v109 = vsel %vm89, %v39, 0
  %v112 = vsel %vm89, %v40, 0
  %v115 = vsel %vm89, %v17, 0
  %v118 = vsel %vm89, %v18, 0
  %v121 = vsel %vm89, %v19, 0
  %v124 = vsel %vm89, %v20, 0
  %v127 = vsel %vm89, %v21, 0
  %v130 = vsel %vm89, %v22, 0
  %v133 = vsel %vm89, %v23, 0
  %v136 = vsel %vm89, %v24, 0
  %v139 = vsel %vm89, %v25, 0
  %v142 = vsel %vm89, %v26, 0
  %v145 = vsel %vm89, %v27, 0
  %v148 = vsel %vm89, %v28, 0
  %v151 = vsel %vm89, %v29, 0
  %v154 = vsel %vm89, %v30, 0
  %v157 = vsel %vm89, %v31, 0
  %v160 = vsel %vm89, %v32, 0
  %162 = vmatprep.subr.mxu0 0.0
  %v163 = vand.u32 %v115, 4294901760
  %164 = vmatpush1.xpose.msra.mxu0 %v163
  %165 = vmatprep.subr.mxu0 0.0
  %v166 = vand.u32 %v118, 4294901760
  %167 = vmatpush1.xpose.msra.mxu0 %v166
  %168 = vmatprep.subr.mxu0 0.0
  %v169 = vand.u32 %v121, 4294901760
  %170 = vmatpush1.xpose.msra.mxu0 %v169
  %171 = vmatprep.subr.mxu0 0.0
  %v172 = vand.u32 %v124, 4294901760
  %173 = vmatpush1.xpose.msra.mxu0 %v172
  %174 = vmatprep.subr.mxu0 0.0
  %v175 = vand.u32 %v127, 4294901760
  %176 = vmatpush1.xpose.msra.mxu0 %v175
  %177 = vmatprep.subr.mxu0 0.0
  %v178 = vand.u32 %v130, 4294901760
  %179 = vmatpush1.xpose.msra.mxu0 %v178
  %180 = vmatprep.subr.mxu0 0.0
  %v181 = vand.u32 %v133, 4294901760
  %182 = vmatpush1.xpose.msra.mxu0 %v181
  %183 = vmatprep.subr.mxu0 0.0
  %v184 = vand.u32 %v136, 4294901760
  %185 = vmatpush1.xpose.msra.mxu0 %v184
  %186 = vmatprep.subr.mxu0 0.0
  %v187 = vand.u32 %v139, 4294901760
  %188 = vmatpush1.xpose.msra.mxu0 %v187
  %189 = vmatprep.subr.mxu0 0.0
  %v190 = vand.u32 %v142, 4294901760
  %191 = vmatpush1.xpose.msra.mxu0 %v190
  %192 = vmatprep.subr.mxu0 0.0
  %v193 = vand.u32 %v145, 4294901760
  %194 = vmatpush1.xpose.msra.mxu0 %v193
  %195 = vmatprep.subr.mxu0 0.0
  %v196 = vand.u32 %v148, 4294901760
  %197 = vmatpush1.xpose.msra.mxu0 %v196
  %198 = vmatprep.subr.mxu0 0.0
  %v199 = vand.u32 %v151, 4294901760
  %200 = vmatpush1.xpose.msra.mxu0 %v199
  %201 = vmatprep.subr.mxu0 0.0
  %v202 = vand.u32 %v154, 4294901760
  %203 = vmatpush1.xpose.msra.mxu0 %v202
  %204 = vmatprep.subr.mxu0 0.0
  %v205 = vand.u32 %v157, 4294901760
  %206 = vmatpush1.xpose.msra.mxu0 %v205
  %207 = vmatprep.subr.mxu0 0.0
  %v208 = vand.u32 %v160, 4294901760
  %209 = vmatpush1.xpose.msra.mxu0 %v208
  %210 = vmatprep.subr.mxu0 0.0
  %211 = vmatpush1.xpose.msra.mxu0 0.0
  %212 = vmatprep.subr.mxu0 0.0
  %213 = vmatpush1.xpose.msra.mxu0 0.0
  %214 = vmatprep.subr.mxu0 0.0
  %215 = vmatpush1.xpose.msra.mxu0 0.0
  %216 = vmatprep.subr.mxu0 0.0
  %217 = vmatpush1.xpose.msra.mxu0 0.0
  %218 = vmatprep.subr.mxu0 0.0
  %219 = vmatpush1.xpose.msra.mxu0 0.0
  %220 = vmatprep.subr.mxu0 0.0
  %221 = vmatpush1.xpose.msra.mxu0 0.0
  %222 = vmatprep.subr.mxu0 0.0
  %223 = vmatpush1.xpose.msra.mxu0 0.0
  %224 = vmatprep.subr.mxu0 0.0
  %225 = vmatpush1.xpose.msra.mxu0 0.0
  %226 = vmatprep.subr.mxu0 0.0
  %227 = vmatpush1.xpose.msra.mxu0 0.0
  %228 = vmatprep.subr.mxu0 0.0
  %229 = vmatpush1.xpose.msra.mxu0 0.0
  %230 = vmatprep.subr.mxu0 0.0
  %231 = vmatpush1.xpose.msra.mxu0 0.0
  %232 = vmatprep.subr.mxu0 0.0
  %233 = vmatpush1.xpose.msra.mxu0 0.0
  %234 = vmatprep.subr.mxu0 0.0
  %235 = vmatpush1.xpose.msra.mxu0 0.0
  %236 = vmatprep.subr.mxu0 0.0
  %237 = vmatpush1.xpose.msra.mxu0 0.0
  %238 = vmatprep.subr.mxu0 0.0
  %239 = vmatpush1.xpose.msra.mxu0 0.0
  %240 = vmatprep.subr.mxu0 0.0
  %241 = vmatpush1.xpose.msra.mxu0 0.0
  %242 = vmatprep.mubr.f32.mxu0 0.0
  %v243 = vand.u32 %v91, 4294901760
  %v244 = vsub.f32 %v91, %v243
  %v245 = vand.u32 %v244, 4294901760
  %v246 = vsub.f32 %v244, %v245
  %v247 = vand.u32 %v246, 4294901760
  %248 = vmatmul.mubr.f32.gmra.mrb[0].mxu0 %v247
  %v249 = vpop.f32.mrb[0].mxu0
  %v250 = vadd.f32 %v52, %v249
  %v251 = vpop.f32.mrb[0].mxu0
  %252 = vmatprep.mubr.f32.mxu0 0.0
  %v253 = vand.u32 %v94, 4294901760
  %v254 = vsub.f32 %v94, %v253
  %v255 = vand.u32 %v254, 4294901760
  %v256 = vsub.f32 %v254, %v255
  %v257 = vand.u32 %v256, 4294901760
  %258 = vmatmul.mubr.f32.gmra.mrb[0].mxu0 %v257
  %v259 = vpop.f32.mrb[0].mxu0
  %v260 = vadd.f32 %v57, %v259
  %v261 = vpop.f32.mrb[0].mxu0
  %262 = vmatprep.mubr.f32.mxu0 0.0
  %v263 = vand.u32 %v97, 4294901760
  %v264 = vsub.f32 %v97, %v263
  %v265 = vand.u32 %v264, 4294901760
  %v266 = vsub.f32 %v264, %v265
  %v267 = vand.u32 %v266, 4294901760
  %268 = vmatmul.mubr.f32.gmra.mrb[0].mxu0 %v267
  %v269 = vpop.f32.mrb[0].mxu0
  %v270 = vadd.f32 %v62, %v269
  %v271 = vpop.f32.mrb[0].mxu0
  %272 = vmatprep.mubr.f32.mxu0 0.0
  %v273 = vand.u32 %v100, 4294901760
  %v274 = vsub.f32 %v100, %v273
  %v275 = vand.u32 %v274, 4294901760
  %v276 = vsub.f32 %v274, %v275
  %v277 = vand.u32 %v276, 4294901760
  %278 = vmatmul.mubr.f32.gmra.mrb[0].mxu0 %v277
  %v279 = vpop.f32.mrb[0].mxu0
  %v280 = vadd.f32 %v67, %v279
  %v281 = vpop.f32.mrb[0].mxu0
  %282 = vmatprep.mubr.f32.mxu0 0.0
  %v283 = vand.u32 %v103, 4294901760
  %v284 = vsub.f32 %v103, %v283
  %v285 = vand.u32 %v284, 4294901760
  %v286 = vsub.f32 %v284, %v285
  %v287 = vand.u32 %v286, 4294901760
  %288 = vmatmul.mubr.f32.gmra.mrb[0].mxu0 %v287
  %v289 = vpop.f32.mrb[0].mxu0
  %v290 = vadd.f32 %v72, %v289
  %v291 = vpop.f32.mrb[0].mxu0
  %292 = vmatprep.mubr.f32.mxu0 0.0
  %v293 = vand.u32 %v106, 4294901760
  %v294 = vsub.f32 %v106, %v293
  %v295 = vand.u32 %v294, 4294901760
  %v296 = vsub.f32 %v294, %v295
  %v297 = vand.u32 %v296, 4294901760
  %298 = vmatmul.mubr.f32.gmra.mrb[0].mxu0 %v297
  %v299 = vpop.f32.mrb[0].mxu0
  %v300 = vadd.f32 %v77, %v299
  %v301 = vpop.f32.mrb[0].mxu0
  %302 = vmatprep.mubr.f32.mxu0 0.0
  %v303 = vand.u32 %v109, 4294901760
  %v304 = vsub.f32 %v109, %v303
  %v305 = vand.u32 %v304, 4294901760
  %v306 = vsub.f32 %v304, %v305
  %v307 = vand.u32 %v306, 4294901760
  %308 = vmatmul.mubr.f32.gmra.mrb[0].mxu0 %v307
  %v309 = vpop.f32.mrb[0].mxu0
  %v310 = vadd.f32 %v82, %v309
  %v311 = vpop.f32.mrb[0].mxu0
  %312 = vmatprep.mubr.f32.mxu0 0.0
  %v313 = vand.u32 %v112, 4294901760
  %v314 = vsub.f32 %v112, %v313
  %v315 = vand.u32 %v314, 4294901760
  %v316 = vsub.f32 %v314, %v315
  %v317 = vand.u32 %v316, 4294901760
  %318 = vmatmul.mubr.f32.gmra.mrb[0].mxu0 %v317
  %v319 = vpop.f32.mrb[0].mxu0
  %v320 = vadd.f32 %v87, %v319
  %v321 = vpop.f32.mrb[0].mxu0
  %322 = vdwg.mxu0
  %323 = vmatprep.subr.mxu0 0.0
  %v324 = vand.u32 %v115, 4294901760
  %v325 = vsub.f32 %v115, %v324
  %v326 = vand.u32 %v325, 4294901760
  %v327 = vsub.f32 %v325, %v326
  %v328 = vand.u32 %v327, 4294901760
  %329 = vmatpush1.xpose.msra.mxu0 %v328
  %330 = vmatprep.subr.mxu0 0.0
  %v331 = vand.u32 %v118, 4294901760
  %v332 = vsub.f32 %v118, %v331
  %v333 = vand.u32 %v332, 4294901760
  %v334 = vsub.f32 %v332, %v333
  %v335 = vand.u32 %v334, 4294901760
  %336 = vmatpush1.xpose.msra.mxu0 %v335
  %337 = vmatprep.subr.mxu0 0.0
  %v338 = vand.u32 %v121, 4294901760
  %v339 = vsub.f32 %v121, %v338
  %v340 = vand.u32 %v339, 4294901760
  %v341 = vsub.f32 %v339, %v340
  %v342 = vand.u32 %v341, 4294901760
  %343 = vmatpush1.xpose.msra.mxu0 %v342
  %344 = vmatprep.subr.mxu0 0.0
  %v345 = vand.u32 %v124, 4294901760
  %v346 = vsub.f32 %v124, %v345
  %v347 = vand.u32 %v346, 4294901760
  %v348 = vsub.f32 %v346, %v347
  %v349 = vand.u32 %v348, 4294901760
  %350 = vmatpush1.xpose.msra.mxu0 %v349
  %351 = vmatprep.subr.mxu0 0.0
  %v352 = vand.u32 %v127, 4294901760
  %v353 = vsub.f32 %v127, %v352
  %v354 = vand.u32 %v353, 4294901760
  %v355 = vsub.f32 %v353, %v354
  %v356 = vand.u32 %v355, 4294901760
  %357 = vmatpush1.xpose.msra.mxu0 %v356
  %358 = vmatprep.subr.mxu0 0.0
  %v359 = vand.u32 %v130, 4294901760
  %v360 = vsub.f32 %v130, %v359
  %v361 = vand.u32 %v360, 4294901760
  %v362 = vsub.f32 %v360, %v361
  %v363 = vand.u32 %v362, 4294901760
  %364 = vmatpush1.xpose.msra.mxu0 %v363
  %365 = vmatprep.subr.mxu0 0.0
  %v366 = vand.u32 %v133, 4294901760
  %v367 = vsub.f32 %v133, %v366
  %v368 = vand.u32 %v367, 4294901760
  %v369 = vsub.f32 %v367, %v368
  %v370 = vand.u32 %v369, 4294901760
  %371 = vmatpush1.xpose.msra.mxu0 %v370
  %372 = vmatprep.subr.mxu0 0.0
  %v373 = vand.u32 %v136, 4294901760
  %v374 = vsub.f32 %v136, %v373
  %v375 = vand.u32 %v374, 4294901760
  %v376 = vsub.f32 %v374, %v375
  %v377 = vand.u32 %v376, 4294901760
  %378 = vmatpush1.xpose.msra.mxu0 %v377
  %379 = vmatprep.subr.mxu0 0.0
  %v380 = vand.u32 %v139, 4294901760
  %v381 = vsub.f32 %v139, %v380
  %v382 = vand.u32 %v381, 4294901760
  %v383 = vsub.f32 %v381, %v382
  %v384 = vand.u32 %v383, 4294901760
  %385 = vmatpush1.xpose.msra.mxu0 %v384
  %386 = vmatprep.subr.mxu0 0.0
  %v387 = vand.u32 %v142, 4294901760
  %v388 = vsub.f32 %v142, %v387
  %v389 = vand.u32 %v388, 4294901760
  %v390 = vsub.f32 %v388, %v389
  %v391 = vand.u32 %v390, 4294901760
  %392 = vmatpush1.xpose.msra.mxu0 %v391
  %393 = vmatprep.subr.mxu0 0.0
  %v394 = vand.u32 %v145, 4294901760
  %v395 = vsub.f32 %v145, %v394
  %v396 = vand.u32 %v395, 4294901760
  %v397 = vsub.f32 %v395, %v396
  %v398 = vand.u32 %v397, 4294901760
  %399 = vmatpush1.xpose.msra.mxu0 %v398
  %400 = vmatprep.subr.mxu0 0.0
  %v401 = vand.u32 %v148, 4294901760
  %v402 = vsub.f32 %v148, %v401
  %v403 = vand.u32 %v402, 4294901760
  %v404 = vsub.f32 %v402, %v403
  %v405 = vand.u32 %v404, 4294901760
  %406 = vmatpush1.xpose.msra.mxu0 %v405
  %407 = vmatprep.subr.mxu0 0.0
  %v408 = vand.u32 %v151, 4294901760
  %v409 = vsub.f32 %v151, %v408
  %v410 = vand.u32 %v409, 4294901760
  %v411 = vsub.f32 %v409, %v410
  %v412 = vand.u32 %v411, 4294901760
  %413 = vmatpush1.xpose.msra.mxu0 %v412
  %414 = vmatprep.subr.mxu0 0.0
  %v415 = vand.u32 %v154, 4294901760
  %v416 = vsub.f32 %v154, %v415
  %v417 = vand.u32 %v416, 4294901760
  %v418 = vsub.f32 %v416, %v417
  %v419 = vand.u32 %v418, 4294901760
  %420 = vmatpush1.xpose.msra.mxu0 %v419
  %421 = vmatprep.subr.mxu0 0.0
  %v422 = vand.u32 %v157, 4294901760
  %v423 = vsub.f32 %v157, %v422
  %v424 = vand.u32 %v423, 4294901760
  %v425 = vsub.f32 %v423, %v424
  %v426 = vand.u32 %v425, 4294901760
  %427 = vmatpush1.xpose.msra.mxu0 %v426
  %428 = vmatprep.subr.mxu0 0.0
  %v429 = vand.u32 %v160, 4294901760
  %v430 = vsub.f32 %v160, %v429
  %v431 = vand.u32 %v430, 4294901760
  %v432 = vsub.f32 %v430, %v431
  %v433 = vand.u32 %v432, 4294901760
  %434 = vmatpush1.xpose.msra.mxu0 %v433
  %435 = vmatprep.subr.mxu0 0.0
  %436 = vmatpush1.xpose.msra.mxu0 0.0
  %437 = vmatprep.subr.mxu0 0.0
  %438 = vmatpush1.xpose.msra.mxu0 0.0
  %439 = vmatprep.subr.mxu0 0.0
  %440 = vmatpush1.xpose.msra.mxu0 0.0
  %441 = vmatprep.subr.mxu0 0.0
  %442 = vmatpush1.xpose.msra.mxu0 0.0
  %443 = vmatprep.subr.mxu0 0.0
  %444 = vmatpush1.xpose.msra.mxu0 0.0
  %445 = vmatprep.subr.mxu0 0.0
  %446 = vmatpush1.xpose.msra.mxu0 0.0
  %447 = vmatprep.subr.mxu0 0.0
  %448 = vmatpush1.xpose.msra.mxu0 0.0
  %449 = vmatprep.subr.mxu0 0.0
  %450 = vmatpush1.xpose.msra.mxu0 0.0
  %451 = vmatprep.subr.mxu0 0.0
  %452 = vmatpush1.xpose.msra.mxu0 0.0
  %453 = vmatprep.subr.mxu0 0.0
  %454 = vmatpush1.xpose.msra.mxu0 0.0
  %455 = vmatprep.subr.mxu0 0.0
  %456 = vmatpush1.xpose.msra.mxu0 0.0
  %457 = vmatprep.subr.mxu0 0.0
  %458 = vmatpush1.xpose.msra.mxu0 0.0
  %459 = vmatprep.subr.mxu0 0.0
  %460 = vmatpush1.xpose.msra.mxu0 0.0
  %461 = vmatprep.subr.mxu0 0.0
  %462 = vmatpush1.xpose.msra.mxu0 0.0
  %463 = vmatprep.subr.mxu0 0.0
  %464 = vmatpush1.xpose.msra.mxu0 0.0
  %465 = vmatprep.subr.mxu0 0.0
  %466 = vmatpush1.xpose.msra.mxu0 0.0
  %467 = vmatprep.mubr.f32.mxu0 0.0
  %v468 = vand.u32 %v91, 4294901760
  %469 = vmatmul.mubr.f32.gmra.mrb[0].mxu0 %v468
  %v470 = vpop.f32.mrb[0].mxu0
  %v471 = vadd.f32 %v250, %v470
  %v472 = vpop.f32.mrb[0].mxu0
  %473 = vmatprep.mubr.f32.mxu0 0.0
  %v474 = vand.u32 %v94, 4294901760
  %475 = vmatmul.mubr.f32.gmra.mrb[0].mxu0 %v474
  %v476 = vpop.f32.mrb[0].mxu0
  %v477 = vadd.f32 %v260, %v476
  %v478 = vpop.f32.mrb[0].mxu0
  %479 = vmatprep.mubr.f32.mxu0 0.0
  %v480 = vand.u32 %v97, 4294901760
  %481 = vmatmul.mubr.f32.gmra.mrb[0].mxu0 %v480
  %v482 = vpop.f32.mrb[0].mxu0
  %v483 = vadd.f32 %v270, %v482
  %v484 = vpop.f32.mrb[0].mxu0
  %485 = vmatprep.mubr.f32.mxu0 0.0
  %v486 = vand.u32 %v100, 4294901760
  %487 = vmatmul.mubr.f32.gmra.mrb[0].mxu0 %v486
  %v488 = vpop.f32.mrb[0].mxu0
  %v489 = vadd.f32 %v280, %v488
  %v490 = vpop.f32.mrb[0].mxu0
  %491 = vmatprep.mubr.f32.mxu0 0.0
  %v492 = vand.u32 %v103, 4294901760
  %493 = vmatmul.mubr.f32.gmra.mrb[0].mxu0 %v492
  %v494 = vpop.f32.mrb[0].mxu0
  %v495 = vadd.f32 %v290, %v494
  %v496 = vpop.f32.mrb[0].mxu0
  %497 = vmatprep.mubr.f32.mxu0 0.0
  %v498 = vand.u32 %v106, 4294901760
  %499 = vmatmul.mubr.f32.gmra.mrb[0].mxu0 %v498
  %v500 = vpop.f32.mrb[0].mxu0
  %v501 = vadd.f32 %v300, %v500
  %v502 = vpop.f32.mrb[0].mxu0
  %503 = vmatprep.mubr.f32.mxu0 0.0
  %v504 = vand.u32 %v109, 4294901760
  %505 = vmatmul.mubr.f32.gmra.mrb[0].mxu0 %v504
  %v506 = vpop.f32.mrb[0].mxu0
  %v507 = vadd.f32 %v310, %v506
  %v508 = vpop.f32.mrb[0].mxu0
  %509 = vmatprep.mubr.f32.mxu0 0.0
  %v510 = vand.u32 %v112, 4294901760
  %511 = vmatmul.mubr.f32.gmra.mrb[0].mxu0 %v510
  %v512 = vpop.f32.mrb[0].mxu0
  %v513 = vadd.f32 %v320, %v512
  %v514 = vpop.f32.mrb[0].mxu0
  %515 = vdwg.mxu0
  %516 = vmatprep.subr.mxu0 0.0
  %v517 = vand.u32 %v115, 4294901760
  %v518 = vsub.f32 %v115, %v517
  %519 = vmatpush1.xpose.msra.mxu0 %v518
  %520 = vmatprep.subr.mxu0 0.0
  %v521 = vand.u32 %v118, 4294901760
  %v522 = vsub.f32 %v118, %v521
  %523 = vmatpush1.xpose.msra.mxu0 %v522
  %524 = vmatprep.subr.mxu0 0.0
  %v525 = vand.u32 %v121, 4294901760
  %v526 = vsub.f32 %v121, %v525
  %527 = vmatpush1.xpose.msra.mxu0 %v526
  %528 = vmatprep.subr.mxu0 0.0
  %v529 = vand.u32 %v124, 4294901760
  %v530 = vsub.f32 %v124, %v529
  %531 = vmatpush1.xpose.msra.mxu0 %v530
  %532 = vmatprep.subr.mxu0 0.0
  %v533 = vand.u32 %v127, 4294901760
  %v534 = vsub.f32 %v127, %v533
  %535 = vmatpush1.xpose.msra.mxu0 %v534
  %536 = vmatprep.subr.mxu0 0.0
  %v537 = vand.u32 %v130, 4294901760
  %v538 = vsub.f32 %v130, %v537
  %539 = vmatpush1.xpose.msra.mxu0 %v538
  %540 = vmatprep.subr.mxu0 0.0
  %v541 = vand.u32 %v133, 4294901760
  %v542 = vsub.f32 %v133, %v541
  %543 = vmatpush1.xpose.msra.mxu0 %v542
  %544 = vmatprep.subr.mxu0 0.0
  %v545 = vand.u32 %v136, 4294901760
  %v546 = vsub.f32 %v136, %v545
  %547 = vmatpush1.xpose.msra.mxu0 %v546
  %548 = vmatprep.subr.mxu0 0.0
  %v549 = vand.u32 %v139, 4294901760
  %v550 = vsub.f32 %v139, %v549
  %551 = vmatpush1.xpose.msra.mxu0 %v550
  %552 = vmatprep.subr.mxu0 0.0
  %v553 = vand.u32 %v142, 4294901760
  %v554 = vsub.f32 %v142, %v553
  %555 = vmatpush1.xpose.msra.mxu0 %v554
  %556 = vmatprep.subr.mxu0 0.0
  %v557 = vand.u32 %v145, 4294901760
  %v558 = vsub.f32 %v145, %v557
  %559 = vmatpush1.xpose.msra.mxu0 %v558
  %560 = vmatprep.subr.mxu0 0.0
  %v561 = vand.u32 %v148, 4294901760
  %v562 = vsub.f32 %v148, %v561
  %563 = vmatpush1.xpose.msra.mxu0 %v562
  %564 = vmatprep.subr.mxu0 0.0
  %v565 = vand.u32 %v151, 4294901760
  %v566 = vsub.f32 %v151, %v565
  %567 = vmatpush1.xpose.msra.mxu0 %v566
  %568 = vmatprep.subr.mxu0 0.0
  %v569 = vand.u32 %v154, 4294901760
  %v570 = vsub.f32 %v154, %v569
  %571 = vmatpush1.xpose.msra.mxu0 %v570
  %572 = vmatprep.subr.mxu0 0.0
  %v573 = vand.u32 %v157, 4294901760
  %v574 = vsub.f32 %v157, %v573
  %575 = vmatpush1.xpose.msra.mxu0 %v574
  %576 = vmatprep.subr.mxu0 0.0
  %v577 = vand.u32 %v160, 4294901760
  %v578 = vsub.f32 %v160, %v577
  %579 = vmatpush1.xpose.msra.mxu0 %v578
  %580 = vmatprep.subr.mxu0 0.0
  %581 = vmatpush1.xpose.msra.mxu0 0.0
  %582 = vmatprep.subr.mxu0 0.0
  %583 = vmatpush1.xpose.msra.mxu0 0.0
  %584 = vmatprep.subr.mxu0 0.0
  %585 = vmatpush1.xpose.msra.mxu0 0.0
  %586 = vmatprep.subr.mxu0 0.0
  %587 = vmatpush1.xpose.msra.mxu0 0.0
  %588 = vmatprep.subr.mxu0 0.0
  %589 = vmatpush1.xpose.msra.mxu0 0.0
  %590 = vmatprep.subr.mxu0 0.0
  %591 = vmatpush1.xpose.msra.mxu0 0.0
  %592 = vmatprep.subr.mxu0 0.0
  %593 = vmatpush1.xpose.msra.mxu0 0.0
  %594 = vmatprep.subr.mxu0 0.0
  %595 = vmatpush1.xpose.msra.mxu0 0.0
  %596 = vmatprep.subr.mxu0 0.0
  %597 = vmatpush1.xpose.msra.mxu0 0.0
  %598 = vmatprep.subr.mxu0 0.0
  %599 = vmatpush1.xpose.msra.mxu0 0.0
  %600 = vmatprep.subr.mxu0 0.0
  %601 = vmatpush1.xpose.msra.mxu0 0.0
  %602 = vmatprep.subr.mxu0 0.0
  %603 = vmatpush1.xpose.msra.mxu0 0.0
  %604 = vmatprep.subr.mxu0 0.0
  %605 = vmatpush1.xpose.msra.mxu0 0.0
  %606 = vmatprep.subr.mxu0 0.0
  %607 = vmatpush1.xpose.msra.mxu0 0.0
  %608 = vmatprep.subr.mxu0 0.0
  %609 = vmatpush1.xpose.msra.mxu0 0.0
  %610 = vmatprep.subr.mxu0 0.0
  %611 = vmatpush1.xpose.msra.mxu0 0.0
  %612 = vmatprep.mubr.f32.mxu0 0.0
  %v613 = vand.u32 %v91, 4294901760
  %v614 = vsub.f32 %v91, %v613
  %615 = vmatmul.mubr.f32.gmra.mrb[0].mxu0 %v614
  %v616 = vpop.f32.mrb[0].mxu0
  %v617 = vadd.f32 %v471, %v616
  %v618 = vpop.f32.mrb[0].mxu0
  %619 = vmatprep.mubr.f32.mxu0 0.0
  %v620 = vand.u32 %v94, 4294901760
  %v621 = vsub.f32 %v94, %v620
  %622 = vmatmul.mubr.f32.gmra.mrb[0].mxu0 %v621
  %v623 = vpop.f32.mrb[0].mxu0
  %v624 = vadd.f32 %v477, %v623
  %v625 = vpop.f32.mrb[0].mxu0
  %626 = vmatprep.mubr.f32.mxu0 0.0
  %v627 = vand.u32 %v97, 4294901760
  %v628 = vsub.f32 %v97, %v627
  %629 = vmatmul.mubr.f32.gmra.mrb[0].mxu0 %v628
  %v630 = vpop.f32.mrb[0].mxu0
  %v631 = vadd.f32 %v483, %v630
  %v632 = vpop.f32.mrb[0].mxu0
  %633 = vmatprep.mubr.f32.mxu0 0.0
  %v634 = vand.u32 %v100, 4294901760
  %v635 = vsub.f32 %v100, %v634
  %636 = vmatmul.mubr.f32.gmra.mrb[0].mxu0 %v635
  %v637 = vpop.f32.mrb[0].mxu0
  %v638 = vadd.f32 %v489, %v637
  %v639 = vpop.f32.mrb[0].mxu0
  %640 = vmatprep.mubr.f32.mxu0 0.0
  %v641 = vand.u32 %v103, 4294901760
  %v642 = vsub.f32 %v103, %v641
  %643 = vmatmul.mubr.f32.gmra.mrb[0].mxu0 %v642
  %v644 = vpop.f32.mrb[0].mxu0
  %v645 = vadd.f32 %v495, %v644
  %v646 = vpop.f32.mrb[0].mxu0
  %647 = vmatprep.mubr.f32.mxu0 0.0
  %v648 = vand.u32 %v106, 4294901760
  %v649 = vsub.f32 %v106, %v648
  %650 = vmatmul.mubr.f32.gmra.mrb[0].mxu0 %v649
  %v651 = vpop.f32.mrb[0].mxu0
  %v652 = vadd.f32 %v501, %v651
  %v653 = vpop.f32.mrb[0].mxu0
  %654 = vmatprep.mubr.f32.mxu0 0.0
  %v655 = vand.u32 %v109, 4294901760
  %v656 = vsub.f32 %v109, %v655
  %657 = vmatmul.mubr.f32.gmra.mrb[0].mxu0 %v656
  %v658 = vpop.f32.mrb[0].mxu0
  %v659 = vadd.f32 %v507, %v658
  %v660 = vpop.f32.mrb[0].mxu0
  %661 = vmatprep.mubr.f32.mxu0 0.0
  %v662 = vand.u32 %v112, 4294901760
  %v663 = vsub.f32 %v112, %v662
  %664 = vmatmul.mubr.f32.gmra.mrb[0].mxu0 %v663
  %v665 = vpop.f32.mrb[0].mxu0
  %v666 = vadd.f32 %v513, %v665
  %v667 = vpop.f32.mrb[0].mxu0
  %668 = vdwg.mxu0
  %669 = vmatprep.subr.mxu0 0.0
  %v670 = vand.u32 %v115, 4294901760
  %671 = vmatpush1.xpose.msra.mxu0 %v670
  %672 = vmatprep.subr.mxu0 0.0
  %v673 = vand.u32 %v118, 4294901760
  %674 = vmatpush1.xpose.msra.mxu0 %v673
  %675 = vmatprep.subr.mxu0 0.0
  %v676 = vand.u32 %v121, 4294901760
  %677 = vmatpush1.xpose.msra.mxu0 %v676
  %678 = vmatprep.subr.mxu0 0.0
  %v679 = vand.u32 %v124, 4294901760
  %680 = vmatpush1.xpose.msra.mxu0 %v679
  %681 = vmatprep.subr.mxu0 0.0
  %v682 = vand.u32 %v127, 4294901760
  %683 = vmatpush1.xpose.msra.mxu0 %v682
  %684 = vmatprep.subr.mxu0 0.0
  %v685 = vand.u32 %v130, 4294901760
  %686 = vmatpush1.xpose.msra.mxu0 %v685
  %687 = vmatprep.subr.mxu0 0.0
  %v688 = vand.u32 %v133, 4294901760
  %689 = vmatpush1.xpose.msra.mxu0 %v688
  %690 = vmatprep.subr.mxu0 0.0
  %v691 = vand.u32 %v136, 4294901760
  %692 = vmatpush1.xpose.msra.mxu0 %v691
  %693 = vmatprep.subr.mxu0 0.0
  %v694 = vand.u32 %v139, 4294901760
  %695 = vmatpush1.xpose.msra.mxu0 %v694
  %696 = vmatprep.subr.mxu0 0.0
  %v697 = vand.u32 %v142, 4294901760
  %698 = vmatpush1.xpose.msra.mxu0 %v697
  %699 = vmatprep.subr.mxu0 0.0
  %v700 = vand.u32 %v145, 4294901760
  %701 = vmatpush1.xpose.msra.mxu0 %v700
  %702 = vmatprep.subr.mxu0 0.0
  %v703 = vand.u32 %v148, 4294901760
  %704 = vmatpush1.xpose.msra.mxu0 %v703
  %705 = vmatprep.subr.mxu0 0.0
  %v706 = vand.u32 %v151, 4294901760
  %707 = vmatpush1.xpose.msra.mxu0 %v706
  %708 = vmatprep.subr.mxu0 0.0
  %v709 = vand.u32 %v154, 4294901760
  %710 = vmatpush1.xpose.msra.mxu0 %v709
  %711 = vmatprep.subr.mxu0 0.0
  %v712 = vand.u32 %v157, 4294901760
  %713 = vmatpush1.xpose.msra.mxu0 %v712
  %714 = vmatprep.subr.mxu0 0.0
  %v715 = vand.u32 %v160, 4294901760
  %716 = vmatpush1.xpose.msra.mxu0 %v715
  %717 = vmatprep.subr.mxu0 0.0
  %718 = vmatpush1.xpose.msra.mxu0 0.0
  %719 = vmatprep.subr.mxu0 0.0
  %720 = vmatpush1.xpose.msra.mxu0 0.0
  %721 = vmatprep.subr.mxu0 0.0
  %722 = vmatpush1.xpose.msra.mxu0 0.0
  %723 = vmatprep.subr.mxu0 0.0
  %724 = vmatpush1.xpose.msra.mxu0 0.0
  %725 = vmatprep.subr.mxu0 0.0
  %726 = vmatpush1.xpose.msra.mxu0 0.0
  %727 = vmatprep.subr.mxu0 0.0
  %728 = vmatpush1.xpose.msra.mxu0 0.0
  %729 = vmatprep.subr.mxu0 0.0
  %730 = vmatpush1.xpose.msra.mxu0 0.0
  %731 = vmatprep.subr.mxu0 0.0
  %732 = vmatpush1.xpose.msra.mxu0 0.0
  %733 = vmatprep.subr.mxu0 0.0
  %734 = vmatpush1.xpose.msra.mxu0 0.0
  %735 = vmatprep.subr.mxu0 0.0
  %736 = vmatpush1.xpose.msra.mxu0 0.0
  %737 = vmatprep.subr.mxu0 0.0
  %738 = vmatpush1.xpose.msra.mxu0 0.0
  %739 = vmatprep.subr.mxu0 0.0
  %740 = vmatpush1.xpose.msra.mxu0 0.0
  %741 = vmatprep.subr.mxu0 0.0
  %742 = vmatpush1.xpose.msra.mxu0 0.0
  %743 = vmatprep.subr.mxu0 0.0
  %744 = vmatpush1.xpose.msra.mxu0 0.0
  %745 = vmatprep.subr.mxu0 0.0
  %746 = vmatpush1.xpose.msra.mxu0 0.0
  %747 = vmatprep.subr.mxu0 0.0
  %748 = vmatpush1.xpose.msra.mxu0 0.0
  %749 = vmatprep.mubr.f32.mxu0 0.0
  %v750 = vand.u32 %v91, 4294901760
  %v751 = vsub.f32 %v91, %v750
  %v752 = vand.u32 %v751, 4294901760
  %753 = vmatmul.mubr.f32.gmra.mrb[0].mxu0 %v752
  %v754 = vpop.f32.mrb[0].mxu0
  %v755 = vadd.f32 %v617, %v754
  %v756 = vpop.f32.mrb[0].mxu0
  %757 = vmatprep.mubr.f32.mxu0 0.0
  %v758 = vand.u32 %v94, 4294901760
  %v759 = vsub.f32 %v94, %v758
  %v760 = vand.u32 %v759, 4294901760
  %761 = vmatmul.mubr.f32.gmra.mrb[0].mxu0 %v760
  %v762 = vpop.f32.mrb[0].mxu0
  %v763 = vadd.f32 %v624, %v762
  %v764 = vpop.f32.mrb[0].mxu0
  %765 = vmatprep.mubr.f32.mxu0 0.0
  %v766 = vand.u32 %v97, 4294901760
  %v767 = vsub.f32 %v97, %v766
  %v768 = vand.u32 %v767, 4294901760
  %769 = vmatmul.mubr.f32.gmra.mrb[0].mxu0 %v768
  %v770 = vpop.f32.mrb[0].mxu0
  %v771 = vadd.f32 %v631, %v770
  %v772 = vpop.f32.mrb[0].mxu0
  %773 = vmatprep.mubr.f32.mxu0 0.0
  %v774 = vand.u32 %v100, 4294901760
  %v775 = vsub.f32 %v100, %v774
  %v776 = vand.u32 %v775, 4294901760
  %777 = vmatmul.mubr.f32.gmra.mrb[0].mxu0 %v776
  %v778 = vpop.f32.mrb[0].mxu0
  %v779 = vadd.f32 %v638, %v778
  %v780 = vpop.f32.mrb[0].mxu0
  %781 = vmatprep.mubr.f32.mxu0 0.0
  %v782 = vand.u32 %v103, 4294901760
  %v783 = vsub.f32 %v103, %v782
  %v784 = vand.u32 %v783, 4294901760
  %785 = vmatmul.mubr.f32.gmra.mrb[0].mxu0 %v784
  %v786 = vpop.f32.mrb[0].mxu0
  %v787 = vadd.f32 %v645, %v786
  %v788 = vpop.f32.mrb[0].mxu0
  %789 = vmatprep.mubr.f32.mxu0 0.0
  %v790 = vand.u32 %v106, 4294901760
  %v791 = vsub.f32 %v106, %v790
  %v792 = vand.u32 %v791, 4294901760
  %793 = vmatmul.mubr.f32.gmra.mrb[0].mxu0 %v792
  %v794 = vpop.f32.mrb[0].mxu0
  %v795 = vadd.f32 %v652, %v794
  %v796 = vpop.f32.mrb[0].mxu0
  %797 = vmatprep.mubr.f32.mxu0 0.0
  %v798 = vand.u32 %v109, 4294901760
  %v799 = vsub.f32 %v109, %v798
  %v800 = vand.u32 %v799, 4294901760
  %801 = vmatmul.mubr.f32.gmra.mrb[0].mxu0 %v800
  %v802 = vpop.f32.mrb[0].mxu0
  %v803 = vadd.f32 %v659, %v802
  %v804 = vpop.f32.mrb[0].mxu0
  %805 = vmatprep.mubr.f32.mxu0 0.0
  %v806 = vand.u32 %v112, 4294901760
  %v807 = vsub.f32 %v112, %v806
  %v808 = vand.u32 %v807, 4294901760
  %809 = vmatmul.mubr.f32.gmra.mrb[0].mxu0 %v808
  %v810 = vpop.f32.mrb[0].mxu0
  %v811 = vadd.f32 %v666, %v810
  %v812 = vpop.f32.mrb[0].mxu0
  %813 = vdwg.mxu0
  %814 = vmatprep.subr.mxu0 0.0
  %v815 = vand.u32 %v115, 4294901760
  %v816 = vsub.f32 %v115, %v815
  %v817 = vand.u32 %v816, 4294901760
  %818 = vmatpush1.xpose.msra.mxu0 %v817
  %819 = vmatprep.subr.mxu0 0.0
  %v820 = vand.u32 %v118, 4294901760
  %v821 = vsub.f32 %v118, %v820
  %v822 = vand.u32 %v821, 4294901760
  %823 = vmatpush1.xpose.msra.mxu0 %v822
  %824 = vmatprep.subr.mxu0 0.0
  %v825 = vand.u32 %v121, 4294901760
  %v826 = vsub.f32 %v121, %v825
  %v827 = vand.u32 %v826, 4294901760
  %828 = vmatpush1.xpose.msra.mxu0 %v827
  %829 = vmatprep.subr.mxu0 0.0
  %v830 = vand.u32 %v124, 4294901760
  %v831 = vsub.f32 %v124, %v830
  %v832 = vand.u32 %v831, 4294901760
  %833 = vmatpush1.xpose.msra.mxu0 %v832
  %834 = vmatprep.subr.mxu0 0.0
  %v835 = vand.u32 %v127, 4294901760
  %v836 = vsub.f32 %v127, %v835
  %v837 = vand.u32 %v836, 4294901760
  %838 = vmatpush1.xpose.msra.mxu0 %v837
  %839 = vmatprep.subr.mxu0 0.0
  %v840 = vand.u32 %v130, 4294901760
  %v841 = vsub.f32 %v130, %v840
  %v842 = vand.u32 %v841, 4294901760
  %843 = vmatpush1.xpose.msra.mxu0 %v842
  %844 = vmatprep.subr.mxu0 0.0
  %v845 = vand.u32 %v133, 4294901760
  %v846 = vsub.f32 %v133, %v845
  %v847 = vand.u32 %v846, 4294901760
  %848 = vmatpush1.xpose.msra.mxu0 %v847
  %849 = vmatprep.subr.mxu0 0.0
  %v850 = vand.u32 %v136, 4294901760
  %v851 = vsub.f32 %v136, %v850
  %v852 = vand.u32 %v851, 4294901760
  %853 = vmatpush1.xpose.msra.mxu0 %v852
  %854 = vmatprep.subr.mxu0 0.0
  %v855 = vand.u32 %v139, 4294901760
  %v856 = vsub.f32 %v139, %v855
  %v857 = vand.u32 %v856, 4294901760
  %858 = vmatpush1.xpose.msra.mxu0 %v857
  %859 = vmatprep.subr.mxu0 0.0
  %v860 = vand.u32 %v142, 4294901760
  %v861 = vsub.f32 %v142, %v860
  %v862 = vand.u32 %v861, 4294901760
  %863 = vmatpush1.xpose.msra.mxu0 %v862
  %864 = vmatprep.subr.mxu0 0.0
  %v865 = vand.u32 %v145, 4294901760
  %v866 = vsub.f32 %v145, %v865
  %v867 = vand.u32 %v866, 4294901760
  %868 = vmatpush1.xpose.msra.mxu0 %v867
  %869 = vmatprep.subr.mxu0 0.0
  %v870 = vand.u32 %v148, 4294901760
  %v871 = vsub.f32 %v148, %v870
  %v872 = vand.u32 %v871, 4294901760
  %873 = vmatpush1.xpose.msra.mxu0 %v872
  %874 = vmatprep.subr.mxu0 0.0
  %v875 = vand.u32 %v151, 4294901760
  %v876 = vsub.f32 %v151, %v875
  %v877 = vand.u32 %v876, 4294901760
  %878 = vmatpush1.xpose.msra.mxu0 %v877
  %879 = vmatprep.subr.mxu0 0.0
  %v880 = vand.u32 %v154, 4294901760
  %v881 = vsub.f32 %v154, %v880
  %v882 = vand.u32 %v881, 4294901760
  %883 = vmatpush1.xpose.msra.mxu0 %v882
  %884 = vmatprep.subr.mxu0 0.0
  %v885 = vand.u32 %v157, 4294901760
  %v886 = vsub.f32 %v157, %v885
  %v887 = vand.u32 %v886, 4294901760
  %888 = vmatpush1.xpose.msra.mxu0 %v887
  %889 = vmatprep.subr.mxu0 0.0
  %v890 = vand.u32 %v160, 4294901760
  %v891 = vsub.f32 %v160, %v890
  %v892 = vand.u32 %v891, 4294901760
  %893 = vmatpush1.xpose.msra.mxu0 %v892
  %894 = vmatprep.subr.mxu0 0.0
  %895 = vmatpush1.xpose.msra.mxu0 0.0
  %896 = vmatprep.subr.mxu0 0.0
  %897 = vmatpush1.xpose.msra.mxu0 0.0
  %898 = vmatprep.subr.mxu0 0.0
  %899 = vmatpush1.xpose.msra.mxu0 0.0
  %900 = vmatprep.subr.mxu0 0.0
  %901 = vmatpush1.xpose.msra.mxu0 0.0
  %902 = vmatprep.subr.mxu0 0.0
  %903 = vmatpush1.xpose.msra.mxu0 0.0
  %904 = vmatprep.subr.mxu0 0.0
  %905 = vmatpush1.xpose.msra.mxu0 0.0
  %906 = vmatprep.subr.mxu0 0.0
  %907 = vmatpush1.xpose.msra.mxu0 0.0
  %908 = vmatprep.subr.mxu0 0.0
  %909 = vmatpush1.xpose.msra.mxu0 0.0
  %910 = vmatprep.subr.mxu0 0.0
  %911 = vmatpush1.xpose.msra.mxu0 0.0
  %912 = vmatprep.subr.mxu0 0.0
  %913 = vmatpush1.xpose.msra.mxu0 0.0
  %914 = vmatprep.subr.mxu0 0.0
  %915 = vmatpush1.xpose.msra.mxu0 0.0
  %916 = vmatprep.subr.mxu0 0.0
  %917 = vmatpush1.xpose.msra.mxu0 0.0
  %918 = vmatprep.subr.mxu0 0.0
  %919 = vmatpush1.xpose.msra.mxu0 0.0
  %920 = vmatprep.subr.mxu0 0.0
  %921 = vmatpush1.xpose.msra.mxu0 0.0
  %922 = vmatprep.subr.mxu0 0.0
  %923 = vmatpush1.xpose.msra.mxu0 0.0
  %924 = vmatprep.subr.mxu0 0.0
  %925 = vmatpush1.xpose.msra.mxu0 0.0
  %926 = vmatprep.mubr.f32.mxu0 0.0
  %v927 = vand.u32 %v91, 4294901760
  %928 = vmatmul.mubr.f32.gmra.mrb[0].mxu0 %v927
  %v929 = vpop.f32.mrb[0].mxu0
  %v930 = vadd.f32 %v755, %v929
  %v931 = vpop.f32.mrb[0].mxu0
  %932 = vmatprep.mubr.f32.mxu0 0.0
  %v933 = vand.u32 %v94, 4294901760
  %934 = vmatmul.mubr.f32.gmra.mrb[0].mxu0 %v933
  %v935 = vpop.f32.mrb[0].mxu0
  %v936 = vadd.f32 %v763, %v935
  %v937 = vpop.f32.mrb[0].mxu0
  %938 = vmatprep.mubr.f32.mxu0 0.0
  %v939 = vand.u32 %v97, 4294901760
  %940 = vmatmul.mubr.f32.gmra.mrb[0].mxu0 %v939
  %v941 = vpop.f32.mrb[0].mxu0
  %v942 = vadd.f32 %v771, %v941
  %v943 = vpop.f32.mrb[0].mxu0
  %944 = vmatprep.mubr.f32.mxu0 0.0
  %v945 = vand.u32 %v100, 4294901760
  %946 = vmatmul.mubr.f32.gmra.mrb[0].mxu0 %v945
  %v947 = vpop.f32.mrb[0].mxu0
  %v948 = vadd.f32 %v779, %v947
  %v949 = vpop.f32.mrb[0].mxu0
  %950 = vmatprep.mubr.f32.mxu0 0.0
  %v951 = vand.u32 %v103, 4294901760
  %952 = vmatmul.mubr.f32.gmra.mrb[0].mxu0 %v951
  %v953 = vpop.f32.mrb[0].mxu0
  %v954 = vadd.f32 %v787, %v953
  %v955 = vpop.f32.mrb[0].mxu0
  %956 = vmatprep.mubr.f32.mxu0 0.0
  %v957 = vand.u32 %v106, 4294901760
  %958 = vmatmul.mubr.f32.gmra.mrb[0].mxu0 %v957
  %v959 = vpop.f32.mrb[0].mxu0
  %v960 = vadd.f32 %v795, %v959
  %v961 = vpop.f32.mrb[0].mxu0
  %962 = vmatprep.mubr.f32.mxu0 0.0
  %v963 = vand.u32 %v109, 4294901760
  %964 = vmatmul.mubr.f32.gmra.mrb[0].mxu0 %v963
  %v965 = vpop.f32.mrb[0].mxu0
  %v966 = vadd.f32 %v803, %v965
  %v967 = vpop.f32.mrb[0].mxu0
  %968 = vmatprep.mubr.f32.mxu0 0.0
  %v969 = vand.u32 %v112, 4294901760
  %970 = vmatmul.mubr.f32.gmra.mrb[0].mxu0 %v969
  %v971 = vpop.f32.mrb[0].mxu0
  %v972 = vadd.f32 %v811, %v971
  %v973 = vpop.f32.mrb[0].mxu0
  %974 = vdwg.mxu0
  %975 = vmatprep.subr.mxu0 0.0
  %v976 = vand.u32 %v115, 4294901760
  %977 = vmatpush1.xpose.msra.mxu0 %v976
  %978 = vmatprep.subr.mxu0 0.0
  %v979 = vand.u32 %v118, 4294901760
  %980 = vmatpush1.xpose.msra.mxu0 %v979
  %981 = vmatprep.subr.mxu0 0.0
  %v982 = vand.u32 %v121, 4294901760
  %983 = vmatpush1.xpose.msra.mxu0 %v982
  %984 = vmatprep.subr.mxu0 0.0
  %v985 = vand.u32 %v124, 4294901760
  %986 = vmatpush1.xpose.msra.mxu0 %v985
  %987 = vmatprep.subr.mxu0 0.0
  %v988 = vand.u32 %v127, 4294901760
  %989 = vmatpush1.xpose.msra.mxu0 %v988
  %990 = vmatprep.subr.mxu0 0.0
  %v991 = vand.u32 %v130, 4294901760
  %992 = vmatpush1.xpose.msra.mxu0 %v991
  %993 = vmatprep.subr.mxu0 0.0
  %v994 = vand.u32 %v133, 4294901760
  %995 = vmatpush1.xpose.msra.mxu0 %v994
  %996 = vmatprep.subr.mxu0 0.0
  %v997 = vand.u32 %v136, 4294901760
  %998 = vmatpush1.xpose.msra.mxu0 %v997
  %999 = vmatprep.subr.mxu0 0.0
  %v1000 = vand.u32 %v139, 4294901760
  %1001 = vmatpush1.xpose.msra.mxu0 %v1000
  %1002 = vmatprep.subr.mxu0 0.0
  %v1003 = vand.u32 %v142, 4294901760
  %1004 = vmatpush1.xpose.msra.mxu0 %v1003
  %1005 = vmatprep.subr.mxu0 0.0
  %v1006 = vand.u32 %v145, 4294901760
  %1007 = vmatpush1.xpose.msra.mxu0 %v1006
  %1008 = vmatprep.subr.mxu0 0.0
  %v1009 = vand.u32 %v148, 4294901760
  %1010 = vmatpush1.xpose.msra.mxu0 %v1009
  %1011 = vmatprep.subr.mxu0 0.0
  %v1012 = vand.u32 %v151, 4294901760
  %1013 = vmatpush1.xpose.msra.mxu0 %v1012
  %1014 = vmatprep.subr.mxu0 0.0
  %v1015 = vand.u32 %v154, 4294901760
  %1016 = vmatpush1.xpose.msra.mxu0 %v1015
  %1017 = vmatprep.subr.mxu0 0.0
  %v1018 = vand.u32 %v157, 4294901760
  %1019 = vmatpush1.xpose.msra.mxu0 %v1018
  %1020 = vmatprep.subr.mxu0 0.0
  %v1021 = vand.u32 %v160, 4294901760
  %1022 = vmatpush1.xpose.msra.mxu0 %v1021
  %1023 = vmatprep.subr.mxu0 0.0
  %1024 = vmatpush1.xpose.msra.mxu0 0.0
  %1025 = vmatprep.subr.mxu0 0.0
  %1026 = vmatpush1.xpose.msra.mxu0 0.0
  %1027 = vmatprep.subr.mxu0 0.0
  %1028 = vmatpush1.xpose.msra.mxu0 0.0
  %1029 = vmatprep.subr.mxu0 0.0
  %1030 = vmatpush1.xpose.msra.mxu0 0.0
  %1031 = vmatprep.subr.mxu0 0.0
  %1032 = vmatpush1.xpose.msra.mxu0 0.0
  %1033 = vmatprep.subr.mxu0 0.0
  %1034 = vmatpush1.xpose.msra.mxu0 0.0
  %1035 = vmatprep.subr.mxu0 0.0
  %1036 = vmatpush1.xpose.msra.mxu0 0.0
  %1037 = vmatprep.subr.mxu0 0.0
  %1038 = vmatpush1.xpose.msra.mxu0 0.0
  %1039 = vmatprep.subr.mxu0 0.0
  %1040 = vmatpush1.xpose.msra.mxu0 0.0
  %1041 = vmatprep.subr.mxu0 0.0
  %1042 = vmatpush1.xpose.msra.mxu0 0.0
  %1043 = vmatprep.subr.mxu0 0.0
  %1044 = vmatpush1.xpose.msra.mxu0 0.0
  %1045 = vmatprep.subr.mxu0 0.0
  %1046 = vmatpush1.xpose.msra.mxu0 0.0
  %1047 = vmatprep.subr.mxu0 0.0
  %1048 = vmatpush1.xpose.msra.mxu0 0.0
  %1049 = vmatprep.subr.mxu0 0.0
  %1050 = vmatpush1.xpose.msra.mxu0 0.0
  %1051 = vmatprep.subr.mxu0 0.0
  %1052 = vmatpush1.xpose.msra.mxu0 0.0
  %1053 = vmatprep.subr.mxu0 0.0
  %1054 = vmatpush1.xpose.msra.mxu0 0.0
  %1055 = vmatprep.mubr.f32.mxu0 0.0
  %v1056 = vand.u32 %v91, 4294901760
  %1057 = vmatmul.mubr.f32.gmra.mrb[0].mxu0 %v1056
  %v1058 = vpop.f32.mrb[0].mxu0
  %v1059 = vadd.f32 %v930, %v1058
  %v1060 = vpop.f32.mrb[0].mxu0
  %1061 = vmatprep.mubr.f32.mxu0 0.0
  %v1062 = vand.u32 %v94, 4294901760
  %1063 = vmatmul.mubr.f32.gmra.mrb[0].mxu0 %v1062
  %v1064 = vpop.f32.mrb[0].mxu0
  %v1065 = vadd.f32 %v936, %v1064
  %v1066 = vpop.f32.mrb[0].mxu0
  %1067 = vmatprep.mubr.f32.mxu0 0.0
  %v1068 = vand.u32 %v97, 4294901760
  %1069 = vmatmul.mubr.f32.gmra.mrb[0].mxu0 %v1068
  %v1070 = vpop.f32.mrb[0].mxu0
  %v1071 = vadd.f32 %v942, %v1070
  %v1072 = vpop.f32.mrb[0].mxu0
  %1073 = vmatprep.mubr.f32.mxu0 0.0
  %v1074 = vand.u32 %v100, 4294901760
  %1075 = vmatmul.mubr.f32.gmra.mrb[0].mxu0 %v1074
  %v1076 = vpop.f32.mrb[0].mxu0
  %v1077 = vadd.f32 %v948, %v1076
  %v1078 = vpop.f32.mrb[0].mxu0
  %1079 = vmatprep.mubr.f32.mxu0 0.0
  %v1080 = vand.u32 %v103, 4294901760
  %1081 = vmatmul.mubr.f32.gmra.mrb[0].mxu0 %v1080
  %v1082 = vpop.f32.mrb[0].mxu0
  %v1083 = vadd.f32 %v954, %v1082
  %v1084 = vpop.f32.mrb[0].mxu0
  %1085 = vmatprep.mubr.f32.mxu0 0.0
  %v1086 = vand.u32 %v106, 4294901760
  %1087 = vmatmul.mubr.f32.gmra.mrb[0].mxu0 %v1086
  %v1088 = vpop.f32.mrb[0].mxu0
  %v1089 = vadd.f32 %v960, %v1088
  %v1090 = vpop.f32.mrb[0].mxu0
  %1091 = vmatprep.mubr.f32.mxu0 0.0
  %v1092 = vand.u32 %v109, 4294901760
  %1093 = vmatmul.mubr.f32.gmra.mrb[0].mxu0 %v1092
  %v1094 = vpop.f32.mrb[0].mxu0
  %v1095 = vadd.f32 %v966, %v1094
  %v1096 = vpop.f32.mrb[0].mxu0
  %1097 = vmatprep.mubr.f32.mxu0 0.0
  %v1098 = vand.u32 %v112, 4294901760
  %1099 = vmatmul.mubr.f32.gmra.mrb[0].mxu0 %v1098
  %v1100 = vpop.f32.mrb[0].mxu0
  %v1101 = vadd.f32 %v972, %v1100
  %v1102 = vpop.f32.mrb[0].mxu0
  %1103 = vdwg.mxu0
  %vm1104 = vcmp.gt.f32.partialorder %v1059, 0.0
  %vm1105 = vcmp.gt.f32.partialorder %v1065, 0.0
  %vm1106 = vcmp.gt.f32.partialorder %v1071, 0.0
  %vm1107 = vcmp.gt.f32.partialorder %v1077, 0.0
  %v1108 = vmul.f32 %v1059, 1.442695
  %v1109 = vpow.pop %v1108
  %v1110 = vmul.f32 %v1065, 1.442695
  %v1111 = vpow.pop %v1110
  %v1112 = vmul.f32 %v1071, 1.442695
  %v1113 = vpow.pop %v1112
  %v1114 = vmul.f32 %v1077, 1.442695
  %v1115 = vpow.pop %v1114
  %v1116 = vsub.f32 %v1109, 1.0
  %v1117 = vsub.f32 %v1111, 1.0
  %v1118 = vsub.f32 %v1113, 1.0
  %v1119 = vsub.f32 %v1115, 1.0
  %v1120 = vsel %vm1104, %v1059, %v1116
  %v1121 = vsel %vm1105, %v1065, %v1117
  %v1122 = vsel %vm1106, %v1071, %v1118
  %v1123 = vsel %vm1107, %v1077, %v1119
  %v1124 = vld [vmem:[%s2] sm:$0xff]
  %v1125 = vld [vmem:[%s2 + $0x8] sm:$0xff]
  %v1126 = vld [vmem:[%s2 + $0x10] sm:$0xff]
  %v1127 = vld [vmem:[%s2 + $0x18] sm:$0xff]
  %v1128 = vld [vmem:[%s3 + $0x40] sm:$0xff]
  %v1129 = vld [vmem:[%s3 + $0x48] sm:$0xff]
  %v1130 = vld [vmem:[%s3 + $0x50] sm:$0xff]
  %v1131 = vld [vmem:[%s3 + $0x58] sm:$0xff]
  %1133 = vset.pattern.permute.xlu0 0
  %1134 = vperm.xlu0 %1133, %v1128
  %v1135 = vpop.permute.xlu0 %1134
  %1138 = vset.pattern.permute.xlu0 0
  %1139 = vperm.xlu0 %1138, %v1129
  %v1140 = vpop.permute.xlu0 %1139
  %1143 = vset.pattern.permute.xlu0 0
  %1144 = vperm.xlu0 %1143, %v1130
  %v1145 = vpop.permute.xlu0 %1144
  %1148 = vset.pattern.permute.xlu0 0
  %1149 = vperm.xlu0 %1148, %v1131
  %v1150 = vpop.permute.xlu0 %1149
  %vm1152 = vcmask 261120
  %v1154 = vsel %vm1152, %v1124, 0
  %v1157 = vsel %vm1152, %v1125, 0
  %v1160 = vsel %vm1152, %v1126, 0
  %v1163 = vsel %vm1152, %v1127, 0
  %1165 = vmatprep.subr.mxu0 0.0
  %v1166 = vand.u32 %v1120, 4294901760
  %1167 = vmatpush1.msra.mxu0 %v1166
  %1168 = vmatprep.subr.mxu0 0.0
  %v1169 = vand.u32 %v1121, 4294901760
  %1170 = vmatpush1.msra.mxu0 %v1169
  %1171 = vmatprep.subr.mxu0 0.0
  %v1172 = vand.u32 %v1122, 4294901760
  %1173 = vmatpush1.msra.mxu0 %v1172
  %1174 = vmatprep.subr.mxu0 0.0
  %v1175 = vand.u32 %v1123, 4294901760
  %1176 = vmatpush1.msra.mxu0 %v1175
  %1177 = vmatprep.subr.mxu0 0.0
  %1178 = vmatpush1.msra.mxu0 0.0
  %1179 = vmatprep.subr.mxu0 0.0
  %1180 = vmatpush1.msra.mxu0 0.0
  %1181 = vmatprep.subr.mxu0 0.0
  %1182 = vmatpush1.msra.mxu0 0.0
  %1183 = vmatprep.subr.mxu0 0.0
  %1184 = vmatpush1.msra.mxu0 0.0
  %1185 = vmatprep.subr.mxu0 0.0
  %1186 = vmatpush1.msra.mxu0 0.0
  %1187 = vmatprep.subr.mxu0 0.0
  %1188 = vmatpush1.msra.mxu0 0.0
  %1189 = vmatprep.subr.mxu0 0.0
  %1190 = vmatpush1.msra.mxu0 0.0
  %1191 = vmatprep.subr.mxu0 0.0
  %1192 = vmatpush1.msra.mxu0 0.0
  %1193 = vmatprep.subr.mxu0 0.0
  %1194 = vmatpush1.msra.mxu0 0.0
  %1195 = vmatprep.subr.mxu0 0.0
  %1196 = vmatpush1.msra.mxu0 0.0
  %1197 = vmatprep.subr.mxu0 0.0
  %1198 = vmatpush1.msra.mxu0 0.0
  %1199 = vmatprep.subr.mxu0 0.0
  %1200 = vmatpush1.msra.mxu0 0.0
  %1201 = vmatprep.subr.mxu0 0.0
  %1202 = vmatpush1.msra.mxu0 0.0
  %1203 = vmatprep.subr.mxu0 0.0
  %1204 = vmatpush1.msra.mxu0 0.0
  %1205 = vmatprep.subr.mxu0 0.0
  %1206 = vmatpush1.msra.mxu0 0.0
  %1207 = vmatprep.subr.mxu0 0.0
  %1208 = vmatpush1.msra.mxu0 0.0
  %1209 = vmatprep.subr.mxu0 0.0
  %1210 = vmatpush1.msra.mxu0 0.0
  %1211 = vmatprep.subr.mxu0 0.0
  %1212 = vmatpush1.msra.mxu0 0.0
  %1213 = vmatprep.subr.mxu0 0.0
  %1214 = vmatpush1.msra.mxu0 0.0
  %1215 = vmatprep.subr.mxu0 0.0
  %1216 = vmatpush1.msra.mxu0 0.0
  %1217 = vmatprep.subr.mxu0 0.0
  %1218 = vmatpush1.msra.mxu0 0.0
  %1219 = vmatprep.subr.mxu0 0.0
  %1220 = vmatpush1.msra.mxu0 0.0
  %1221 = vmatprep.subr.mxu0 0.0
  %1222 = vmatpush1.msra.mxu0 0.0
  %1223 = vmatprep.subr.mxu0 0.0
  %1224 = vmatpush1.msra.mxu0 0.0
  %1225 = vmatprep.subr.mxu0 0.0
  %1226 = vmatpush1.msra.mxu0 0.0
  %1227 = vmatprep.subr.mxu0 0.0
  %1228 = vmatpush1.msra.mxu0 0.0
  %1229 = vmatprep.subr.mxu0 0.0
  %1230 = vmatpush1.msra.mxu0 0.0
  %1231 = vmatprep.subr.mxu0 0.0
  %1232 = vmatpush1.msra.mxu0 0.0
  %1233 = vmatprep.mubr.f32.mxu0 0.0
  %v1234 = vand.u32 %v1154, 4294901760
  %v1235 = vsub.f32 %v1154, %v1234
  %v1236 = vand.u32 %v1235, 4294901760
  %v1237 = vsub.f32 %v1235, %v1236
  %v1238 = vand.u32 %v1237, 4294901760
  %1239 = vmatmul.mubr.f32.gmra.mrb[0].mxu0 %v1238
  %v1240 = vpop.f32.mrb[0].mxu0
  %v1241 = vadd.f32 %v1135, %v1240
  %v1242 = vpop.f32.mrb[0].mxu0
  %1243 = vmatprep.mubr.f32.mxu0 0.0
  %v1244 = vand.u32 %v1157, 4294901760
  %v1245 = vsub.f32 %v1157, %v1244
  %v1246 = vand.u32 %v1245, 4294901760
  %v1247 = vsub.f32 %v1245, %v1246
  %v1248 = vand.u32 %v1247, 4294901760
  %1249 = vmatmul.mubr.f32.gmra.mrb[0].mxu0 %v1248
  %v1250 = vpop.f32.mrb[0].mxu0
  %v1251 = vadd.f32 %v1140, %v1250
  %v1252 = vpop.f32.mrb[0].mxu0
  %1253 = vmatprep.mubr.f32.mxu0 0.0
  %v1254 = vand.u32 %v1160, 4294901760
  %v1255 = vsub.f32 %v1160, %v1254
  %v1256 = vand.u32 %v1255, 4294901760
  %v1257 = vsub.f32 %v1255, %v1256
  %v1258 = vand.u32 %v1257, 4294901760
  %1259 = vmatmul.mubr.f32.gmra.mrb[0].mxu0 %v1258
  %v1260 = vpop.f32.mrb[0].mxu0
  %v1261 = vadd.f32 %v1145, %v1260
  %v1262 = vpop.f32.mrb[0].mxu0
  %1263 = vmatprep.mubr.f32.mxu0 0.0
  %v1264 = vand.u32 %v1163, 4294901760
  %v1265 = vsub.f32 %v1163, %v1264
  %v1266 = vand.u32 %v1265, 4294901760
  %v1267 = vsub.f32 %v1265, %v1266
  %v1268 = vand.u32 %v1267, 4294901760
  %1269 = vmatmul.mubr.f32.gmra.mrb[0].mxu0 %v1268
  %v1270 = vpop.f32.mrb[0].mxu0
  %v1271 = vadd.f32 %v1150, %v1270
  %v1272 = vpop.f32.mrb[0].mxu0
  %1273 = vdwg.mxu0
  %1274 = vmatprep.subr.mxu0 0.0
  %v1275 = vand.u32 %v1120, 4294901760
  %v1276 = vsub.f32 %v1120, %v1275
  %v1277 = vand.u32 %v1276, 4294901760
  %v1278 = vsub.f32 %v1276, %v1277
  %v1279 = vand.u32 %v1278, 4294901760
  %1280 = vmatpush1.msra.mxu0 %v1279
  %1281 = vmatprep.subr.mxu0 0.0
  %v1282 = vand.u32 %v1121, 4294901760
  %v1283 = vsub.f32 %v1121, %v1282
  %v1284 = vand.u32 %v1283, 4294901760
  %v1285 = vsub.f32 %v1283, %v1284
  %v1286 = vand.u32 %v1285, 4294901760
  %1287 = vmatpush1.msra.mxu0 %v1286
  %1288 = vmatprep.subr.mxu0 0.0
  %v1289 = vand.u32 %v1122, 4294901760
  %v1290 = vsub.f32 %v1122, %v1289
  %v1291 = vand.u32 %v1290, 4294901760
  %v1292 = vsub.f32 %v1290, %v1291
  %v1293 = vand.u32 %v1292, 4294901760
  %1294 = vmatpush1.msra.mxu0 %v1293
  %1295 = vmatprep.subr.mxu0 0.0
  %v1296 = vand.u32 %v1123, 4294901760
  %v1297 = vsub.f32 %v1123, %v1296
  %v1298 = vand.u32 %v1297, 4294901760
  %v1299 = vsub.f32 %v1297, %v1298
  %v1300 = vand.u32 %v1299, 4294901760
  %1301 = vmatpush1.msra.mxu0 %v1300
  %1302 = vmatprep.subr.mxu0 0.0
  %1303 = vmatpush1.msra.mxu0 0.0
  %1304 = vmatprep.subr.mxu0 0.0
  %1305 = vmatpush1.msra.mxu0 0.0
  %1306 = vmatprep.subr.mxu0 0.0
  %1307 = vmatpush1.msra.mxu0 0.0
  %1308 = vmatprep.subr.mxu0 0.0
  %1309 = vmatpush1.msra.mxu0 0.0
  %1310 = vmatprep.subr.mxu0 0.0
  %1311 = vmatpush1.msra.mxu0 0.0
  %1312 = vmatprep.subr.mxu0 0.0
  %1313 = vmatpush1.msra.mxu0 0.0
  %1314 = vmatprep.subr.mxu0 0.0
  %1315 = vmatpush1.msra.mxu0 0.0
  %1316 = vmatprep.subr.mxu0 0.0
  %1317 = vmatpush1.msra.mxu0 0.0
  %1318 = vmatprep.subr.mxu0 0.0
  %1319 = vmatpush1.msra.mxu0 0.0
  %1320 = vmatprep.subr.mxu0 0.0
  %1321 = vmatpush1.msra.mxu0 0.0
  %1322 = vmatprep.subr.mxu0 0.0
  %1323 = vmatpush1.msra.mxu0 0.0
  %1324 = vmatprep.subr.mxu0 0.0
  %1325 = vmatpush1.msra.mxu0 0.0
  %1326 = vmatprep.subr.mxu0 0.0
  %1327 = vmatpush1.msra.mxu0 0.0
  %1328 = vmatprep.subr.mxu0 0.0
  %1329 = vmatpush1.msra.mxu0 0.0
  %1330 = vmatprep.subr.mxu0 0.0
  %1331 = vmatpush1.msra.mxu0 0.0
  %1332 = vmatprep.subr.mxu0 0.0
  %1333 = vmatpush1.msra.mxu0 0.0
  %1334 = vmatprep.subr.mxu0 0.0
  %1335 = vmatpush1.msra.mxu0 0.0
  %1336 = vmatprep.subr.mxu0 0.0
  %1337 = vmatpush1.msra.mxu0 0.0
  %1338 = vmatprep.subr.mxu0 0.0
  %1339 = vmatpush1.msra.mxu0 0.0
  %1340 = vmatprep.subr.mxu0 0.0
  %1341 = vmatpush1.msra.mxu0 0.0
  %1342 = vmatprep.subr.mxu0 0.0
  %1343 = vmatpush1.msra.mxu0 0.0
  %1344 = vmatprep.subr.mxu0 0.0
  %1345 = vmatpush1.msra.mxu0 0.0
  %1346 = vmatprep.subr.mxu0 0.0
  %1347 = vmatpush1.msra.mxu0 0.0
  %1348 = vmatprep.subr.mxu0 0.0
  %1349 = vmatpush1.msra.mxu0 0.0
  %1350 = vmatprep.subr.mxu0 0.0
  %1351 = vmatpush1.msra.mxu0 0.0
  %1352 = vmatprep.subr.mxu0 0.0
  %1353 = vmatpush1.msra.mxu0 0.0
  %1354 = vmatprep.subr.mxu0 0.0
  %1355 = vmatpush1.msra.mxu0 0.0
  %1356 = vmatprep.subr.mxu0 0.0
  %1357 = vmatpush1.msra.mxu0 0.0
  %1358 = vmatprep.mubr.f32.mxu0 0.0
  %v1359 = vand.u32 %v1154, 4294901760
  %1360 = vmatmul.mubr.f32.gmra.mrb[0].mxu0 %v1359
  %v1361 = vpop.f32.mrb[0].mxu0
  %v1362 = vadd.f32 %v1241, %v1361
  %v1363 = vpop.f32.mrb[0].mxu0
  %1364 = vmatprep.mubr.f32.mxu0 0.0
  %v1365 = vand.u32 %v1157, 4294901760
  %1366 = vmatmul.mubr.f32.gmra.mrb[0].mxu0 %v1365
  %v1367 = vpop.f32.mrb[0].mxu0
  %v1368 = vadd.f32 %v1251, %v1367
  %v1369 = vpop.f32.mrb[0].mxu0
  %1370 = vmatprep.mubr.f32.mxu0 0.0
  %v1371 = vand.u32 %v1160, 4294901760
  %1372 = vmatmul.mubr.f32.gmra.mrb[0].mxu0 %v1371
  %v1373 = vpop.f32.mrb[0].mxu0
  %v1374 = vadd.f32 %v1261, %v1373
  %v1375 = vpop.f32.mrb[0].mxu0
  %1376 = vmatprep.mubr.f32.mxu0 0.0
  %v1377 = vand.u32 %v1163, 4294901760
  %1378 = vmatmul.mubr.f32.gmra.mrb[0].mxu0 %v1377
  %v1379 = vpop.f32.mrb[0].mxu0
  %v1380 = vadd.f32 %v1271, %v1379
  %v1381 = vpop.f32.mrb[0].mxu0
  %1382 = vdwg.mxu0
  %1383 = vmatprep.subr.mxu0 0.0
  %v1384 = vand.u32 %v1120, 4294901760
  %v1385 = vsub.f32 %v1120, %v1384
  %1386 = vmatpush1.msra.mxu0 %v1385
  %1387 = vmatprep.subr.mxu0 0.0
  %v1388 = vand.u32 %v1121, 4294901760
  %v1389 = vsub.f32 %v1121, %v1388
  %1390 = vmatpush1.msra.mxu0 %v1389
  %1391 = vmatprep.subr.mxu0 0.0
  %v1392 = vand.u32 %v1122, 4294901760
  %v1393 = vsub.f32 %v1122, %v1392
  %1394 = vmatpush1.msra.mxu0 %v1393
  %1395 = vmatprep.subr.mxu0 0.0
  %v1396 = vand.u32 %v1123, 4294901760
  %v1397 = vsub.f32 %v1123, %v1396
  %1398 = vmatpush1.msra.mxu0 %v1397
  %1399 = vmatprep.subr.mxu0 0.0
  %1400 = vmatpush1.msra.mxu0 0.0
  %1401 = vmatprep.subr.mxu0 0.0
  %1402 = vmatpush1.msra.mxu0 0.0
  %1403 = vmatprep.subr.mxu0 0.0
  %1404 = vmatpush1.msra.mxu0 0.0
  %1405 = vmatprep.subr.mxu0 0.0
  %1406 = vmatpush1.msra.mxu0 0.0
  %1407 = vmatprep.subr.mxu0 0.0
  %1408 = vmatpush1.msra.mxu0 0.0
  %1409 = vmatprep.subr.mxu0 0.0
  %1410 = vmatpush1.msra.mxu0 0.0
  %1411 = vmatprep.subr.mxu0 0.0
  %1412 = vmatpush1.msra.mxu0 0.0
  %1413 = vmatprep.subr.mxu0 0.0
  %1414 = vmatpush1.msra.mxu0 0.0
  %1415 = vmatprep.subr.mxu0 0.0
  %1416 = vmatpush1.msra.mxu0 0.0
  %1417 = vmatprep.subr.mxu0 0.0
  %1418 = vmatpush1.msra.mxu0 0.0
  %1419 = vmatprep.subr.mxu0 0.0
  %1420 = vmatpush1.msra.mxu0 0.0
  %1421 = vmatprep.subr.mxu0 0.0
  %1422 = vmatpush1.msra.mxu0 0.0
  %1423 = vmatprep.subr.mxu0 0.0
  %1424 = vmatpush1.msra.mxu0 0.0
  %1425 = vmatprep.subr.mxu0 0.0
  %1426 = vmatpush1.msra.mxu0 0.0
  %1427 = vmatprep.subr.mxu0 0.0
  %1428 = vmatpush1.msra.mxu0 0.0
  %1429 = vmatprep.subr.mxu0 0.0
  %1430 = vmatpush1.msra.mxu0 0.0
  %1431 = vmatprep.subr.mxu0 0.0
  %1432 = vmatpush1.msra.mxu0 0.0
  %1433 = vmatprep.subr.mxu0 0.0
  %1434 = vmatpush1.msra.mxu0 0.0
  %1435 = vmatprep.subr.mxu0 0.0
  %1436 = vmatpush1.msra.mxu0 0.0
  %1437 = vmatprep.subr.mxu0 0.0
  %1438 = vmatpush1.msra.mxu0 0.0
  %1439 = vmatprep.subr.mxu0 0.0
  %1440 = vmatpush1.msra.mxu0 0.0
  %1441 = vmatprep.subr.mxu0 0.0
  %1442 = vmatpush1.msra.mxu0 0.0
  %1443 = vmatprep.subr.mxu0 0.0
  %1444 = vmatpush1.msra.mxu0 0.0
  %1445 = vmatprep.subr.mxu0 0.0
  %1446 = vmatpush1.msra.mxu0 0.0
  %1447 = vmatprep.subr.mxu0 0.0
  %1448 = vmatpush1.msra.mxu0 0.0
  %1449 = vmatprep.subr.mxu0 0.0
  %1450 = vmatpush1.msra.mxu0 0.0
  %1451 = vmatprep.subr.mxu0 0.0
  %1452 = vmatpush1.msra.mxu0 0.0
  %1453 = vmatprep.subr.mxu0 0.0
  %1454 = vmatpush1.msra.mxu0 0.0
  %1455 = vmatprep.mubr.f32.mxu0 0.0
  %v1456 = vand.u32 %v1154, 4294901760
  %v1457 = vsub.f32 %v1154, %v1456
  %1458 = vmatmul.mubr.f32.gmra.mrb[0].mxu0 %v1457
  %v1459 = vpop.f32.mrb[0].mxu0
  %v1460 = vadd.f32 %v1362, %v1459
  %v1461 = vpop.f32.mrb[0].mxu0
  %1462 = vmatprep.mubr.f32.mxu0 0.0
  %v1463 = vand.u32 %v1157, 4294901760
  %v1464 = vsub.f32 %v1157, %v1463
  %1465 = vmatmul.mubr.f32.gmra.mrb[0].mxu0 %v1464
  %v1466 = vpop.f32.mrb[0].mxu0
  %v1467 = vadd.f32 %v1368, %v1466
  %v1468 = vpop.f32.mrb[0].mxu0
  %1469 = vmatprep.mubr.f32.mxu0 0.0
  %v1470 = vand.u32 %v1160, 4294901760
  %v1471 = vsub.f32 %v1160, %v1470
  %1472 = vmatmul.mubr.f32.gmra.mrb[0].mxu0 %v1471
  %v1473 = vpop.f32.mrb[0].mxu0
  %v1474 = vadd.f32 %v1374, %v1473
  %v1475 = vpop.f32.mrb[0].mxu0
  %1476 = vmatprep.mubr.f32.mxu0 0.0
  %v1477 = vand.u32 %v1163, 4294901760
  %v1478 = vsub.f32 %v1163, %v1477
  %1479 = vmatmul.mubr.f32.gmra.mrb[0].mxu0 %v1478
  %v1480 = vpop.f32.mrb[0].mxu0
  %v1481 = vadd.f32 %v1380, %v1480
  %v1482 = vpop.f32.mrb[0].mxu0
  %1483 = vdwg.mxu0
  %1484 = vmatprep.subr.mxu0 0.0
  %v1485 = vand.u32 %v1120, 4294901760
  %1486 = vmatpush1.msra.mxu0 %v1485
  %1487 = vmatprep.subr.mxu0 0.0
  %v1488 = vand.u32 %v1121, 4294901760
  %1489 = vmatpush1.msra.mxu0 %v1488
  %1490 = vmatprep.subr.mxu0 0.0
  %v1491 = vand.u32 %v1122, 4294901760
  %1492 = vmatpush1.msra.mxu0 %v1491
  %1493 = vmatprep.subr.mxu0 0.0
  %v1494 = vand.u32 %v1123, 4294901760
  %1495 = vmatpush1.msra.mxu0 %v1494
  %1496 = vmatprep.subr.mxu0 0.0
  %1497 = vmatpush1.msra.mxu0 0.0
  %1498 = vmatprep.subr.mxu0 0.0
  %1499 = vmatpush1.msra.mxu0 0.0
  %1500 = vmatprep.subr.mxu0 0.0
  %1501 = vmatpush1.msra.mxu0 0.0
  %1502 = vmatprep.subr.mxu0 0.0
  %1503 = vmatpush1.msra.mxu0 0.0
  %1504 = vmatprep.subr.mxu0 0.0
  %1505 = vmatpush1.msra.mxu0 0.0
  %1506 = vmatprep.subr.mxu0 0.0
  %1507 = vmatpush1.msra.mxu0 0.0
  %1508 = vmatprep.subr.mxu0 0.0
  %1509 = vmatpush1.msra.mxu0 0.0
  %1510 = vmatprep.subr.mxu0 0.0
  %1511 = vmatpush1.msra.mxu0 0.0
  %1512 = vmatprep.subr.mxu0 0.0
  %1513 = vmatpush1.msra.mxu0 0.0
  %1514 = vmatprep.subr.mxu0 0.0
  %1515 = vmatpush1.msra.mxu0 0.0
  %1516 = vmatprep.subr.mxu0 0.0
  %1517 = vmatpush1.msra.mxu0 0.0
  %1518 = vmatprep.subr.mxu0 0.0
  %1519 = vmatpush1.msra.mxu0 0.0
  %1520 = vmatprep.subr.mxu0 0.0
  %1521 = vmatpush1.msra.mxu0 0.0
  %1522 = vmatprep.subr.mxu0 0.0
  %1523 = vmatpush1.msra.mxu0 0.0
  %1524 = vmatprep.subr.mxu0 0.0
  %1525 = vmatpush1.msra.mxu0 0.0
  %1526 = vmatprep.subr.mxu0 0.0
  %1527 = vmatpush1.msra.mxu0 0.0
  %1528 = vmatprep.subr.mxu0 0.0
  %1529 = vmatpush1.msra.mxu0 0.0
  %1530 = vmatprep.subr.mxu0 0.0
  %1531 = vmatpush1.msra.mxu0 0.0
  %1532 = vmatprep.subr.mxu0 0.0
  %1533 = vmatpush1.msra.mxu0 0.0
  %1534 = vmatprep.subr.mxu0 0.0
  %1535 = vmatpush1.msra.mxu0 0.0
  %1536 = vmatprep.subr.mxu0 0.0
  %1537 = vmatpush1.msra.mxu0 0.0
  %1538 = vmatprep.subr.mxu0 0.0
  %1539 = vmatpush1.msra.mxu0 0.0
  %1540 = vmatprep.subr.mxu0 0.0
  %1541 = vmatpush1.msra.mxu0 0.0
  %1542 = vmatprep.subr.mxu0 0.0
  %1543 = vmatpush1.msra.mxu0 0.0
  %1544 = vmatprep.subr.mxu0 0.0
  %1545 = vmatpush1.msra.mxu0 0.0
  %1546 = vmatprep.subr.mxu0 0.0
  %1547 = vmatpush1.msra.mxu0 0.0
  %1548 = vmatprep.subr.mxu0 0.0
  %1549 = vmatpush1.msra.mxu0 0.0
  %1550 = vmatprep.subr.mxu0 0.0
  %1551 = vmatpush1.msra.mxu0 0.0
  %1552 = vmatprep.mubr.f32.mxu0 0.0
  %v1553 = vand.u32 %v1154, 4294901760
  %v1554 = vsub.f32 %v1154, %v1553
  %v1555 = vand.u32 %v1554, 4294901760
  %1556 = vmatmul.mubr.f32.gmra.mrb[0].mxu0 %v1555
  %v1557 = vpop.f32.mrb[0].mxu0
  %v1558 = vadd.f32 %v1460, %v1557
  %v1559 = vpop.f32.mrb[0].mxu0
  %1560 = vmatprep.mubr.f32.mxu0 0.0
  %v1561 = vand.u32 %v1157, 4294901760
  %v1562 = vsub.f32 %v1157, %v1561
  %v1563 = vand.u32 %v1562, 4294901760
  %1564 = vmatmul.mubr.f32.gmra.mrb[0].mxu0 %v1563
  %v1565 = vpop.f32.mrb[0].mxu0
  %v1566 = vadd.f32 %v1467, %v1565
  %v1567 = vpop.f32.mrb[0].mxu0
  %1568 = vmatprep.mubr.f32.mxu0 0.0
  %v1569 = vand.u32 %v1160, 4294901760
  %v1570 = vsub.f32 %v1160, %v1569
  %v1571 = vand.u32 %v1570, 4294901760
  %1572 = vmatmul.mubr.f32.gmra.mrb[0].mxu0 %v1571
  %v1573 = vpop.f32.mrb[0].mxu0
  %v1574 = vadd.f32 %v1474, %v1573
  %v1575 = vpop.f32.mrb[0].mxu0
  %1576 = vmatprep.mubr.f32.mxu0 0.0
  %v1577 = vand.u32 %v1163, 4294901760
  %v1578 = vsub.f32 %v1163, %v1577
  %v1579 = vand.u32 %v1578, 4294901760
  %1580 = vmatmul.mubr.f32.gmra.mrb[0].mxu0 %v1579
  %v1581 = vpop.f32.mrb[0].mxu0
  %v1582 = vadd.f32 %v1481, %v1581
  %v1583 = vpop.f32.mrb[0].mxu0
  %1584 = vdwg.mxu0
  %1585 = vmatprep.subr.mxu0 0.0
  %v1586 = vand.u32 %v1120, 4294901760
  %v1587 = vsub.f32 %v1120, %v1586
  %v1588 = vand.u32 %v1587, 4294901760
  %1589 = vmatpush1.msra.mxu0 %v1588
  %1590 = vmatprep.subr.mxu0 0.0
  %v1591 = vand.u32 %v1121, 4294901760
  %v1592 = vsub.f32 %v1121, %v1591
  %v1593 = vand.u32 %v1592, 4294901760
  %1594 = vmatpush1.msra.mxu0 %v1593
  %1595 = vmatprep.subr.mxu0 0.0
  %v1596 = vand.u32 %v1122, 4294901760
  %v1597 = vsub.f32 %v1122, %v1596
  %v1598 = vand.u32 %v1597, 4294901760
  %1599 = vmatpush1.msra.mxu0 %v1598
  %1600 = vmatprep.subr.mxu0 0.0
  %v1601 = vand.u32 %v1123, 4294901760
  %v1602 = vsub.f32 %v1123, %v1601
  %v1603 = vand.u32 %v1602, 4294901760
  %1604 = vmatpush1.msra.mxu0 %v1603
  %1605 = vmatprep.subr.mxu0 0.0
  %1606 = vmatpush1.msra.mxu0 0.0
  %1607 = vmatprep.subr.mxu0 0.0
  %1608 = vmatpush1.msra.mxu0 0.0
  %1609 = vmatprep.subr.mxu0 0.0
  %1610 = vmatpush1.msra.mxu0 0.0
  %1611 = vmatprep.subr.mxu0 0.0
  %1612 = vmatpush1.msra.mxu0 0.0
  %1613 = vmatprep.subr.mxu0 0.0
  %1614 = vmatpush1.msra.mxu0 0.0
  %1615 = vmatprep.subr.mxu0 0.0
  %1616 = vmatpush1.msra.mxu0 0.0
  %1617 = vmatprep.subr.mxu0 0.0
  %1618 = vmatpush1.msra.mxu0 0.0
  %1619 = vmatprep.subr.mxu0 0.0
  %1620 = vmatpush1.msra.mxu0 0.0
  %1621 = vmatprep.subr.mxu0 0.0
  %1622 = vmatpush1.msra.mxu0 0.0
  %1623 = vmatprep.subr.mxu0 0.0
  %1624 = vmatpush1.msra.mxu0 0.0
  %1625 = vmatprep.subr.mxu0 0.0
  %1626 = vmatpush1.msra.mxu0 0.0
  %1627 = vmatprep.subr.mxu0 0.0
  %1628 = vmatpush1.msra.mxu0 0.0
  %1629 = vmatprep.subr.mxu0 0.0
  %1630 = vmatpush1.msra.mxu0 0.0
  %1631 = vmatprep.subr.mxu0 0.0
  %1632 = vmatpush1.msra.mxu0 0.0
  %1633 = vmatprep.subr.mxu0 0.0
  %1634 = vmatpush1.msra.mxu0 0.0
  %1635 = vmatprep.subr.mxu0 0.0
  %1636 = vmatpush1.msra.mxu0 0.0
  %1637 = vmatprep.subr.mxu0 0.0
  %1638 = vmatpush1.msra.mxu0 0.0
  %1639 = vmatprep.subr.mxu0 0.0
  %1640 = vmatpush1.msra.mxu0 0.0
  %1641 = vmatprep.subr.mxu0 0.0
  %1642 = vmatpush1.msra.mxu0 0.0
  %1643 = vmatprep.subr.mxu0 0.0
  %1644 = vmatpush1.msra.mxu0 0.0
  %1645 = vmatprep.subr.mxu0 0.0
  %1646 = vmatpush1.msra.mxu0 0.0
  %1647 = vmatprep.subr.mxu0 0.0
  %1648 = vmatpush1.msra.mxu0 0.0
  %1649 = vmatprep.subr.mxu0 0.0
  %1650 = vmatpush1.msra.mxu0 0.0
  %1651 = vmatprep.subr.mxu0 0.0
  %1652 = vmatpush1.msra.mxu0 0.0
  %1653 = vmatprep.subr.mxu0 0.0
  %1654 = vmatpush1.msra.mxu0 0.0
  %1655 = vmatprep.subr.mxu0 0.0
  %1656 = vmatpush1.msra.mxu0 0.0
  %1657 = vmatprep.subr.mxu0 0.0
  %1658 = vmatpush1.msra.mxu0 0.0
  %1659 = vmatprep.subr.mxu0 0.0
  %1660 = vmatpush1.msra.mxu0 0.0
  %1661 = vmatprep.mubr.f32.mxu0 0.0
  %v1662 = vand.u32 %v1154, 4294901760
  %1663 = vmatmul.mubr.f32.gmra.mrb[0].mxu0 %v1662
  %v1664 = vpop.f32.mrb[0].mxu0
  %v1665 = vadd.f32 %v1558, %v1664
  %v1666 = vpop.f32.mrb[0].mxu0
  %1667 = vmatprep.mubr.f32.mxu0 0.0
  %v1668 = vand.u32 %v1157, 4294901760
  %1669 = vmatmul.mubr.f32.gmra.mrb[0].mxu0 %v1668
  %v1670 = vpop.f32.mrb[0].mxu0
  %v1671 = vadd.f32 %v1566, %v1670
  %v1672 = vpop.f32.mrb[0].mxu0
  %1673 = vmatprep.mubr.f32.mxu0 0.0
  %v1674 = vand.u32 %v1160, 4294901760
  %1675 = vmatmul.mubr.f32.gmra.mrb[0].mxu0 %v1674
  %v1676 = vpop.f32.mrb[0].mxu0
  %v1677 = vadd.f32 %v1574, %v1676
  %v1678 = vpop.f32.mrb[0].mxu0
  %1679 = vmatprep.mubr.f32.mxu0 0.0
  %v1680 = vand.u32 %v1163, 4294901760
  %1681 = vmatmul.mubr.f32.gmra.mrb[0].mxu0 %v1680
  %v1682 = vpop.f32.mrb[0].mxu0
  %v1683 = vadd.f32 %v1582, %v1682
  %v1684 = vpop.f32.mrb[0].mxu0
  %1685 = vdwg.mxu0
  %1686 = vmatprep.subr.mxu0 0.0
  %v1687 = vand.u32 %v1120, 4294901760
  %1688 = vmatpush1.msra.mxu0 %v1687
  %1689 = vmatprep.subr.mxu0 0.0
  %v1690 = vand.u32 %v1121, 4294901760
  %1691 = vmatpush1.msra.mxu0 %v1690
  %1692 = vmatprep.subr.mxu0 0.0
  %v1693 = vand.u32 %v1122, 4294901760
  %1694 = vmatpush1.msra.mxu0 %v1693
  %1695 = vmatprep.subr.mxu0 0.0
  %v1696 = vand.u32 %v1123, 4294901760
  %1697 = vmatpush1.msra.mxu0 %v1696
  %1698 = vmatprep.subr.mxu0 0.0
  %1699 = vmatpush1.msra.mxu0 0.0
  %1700 = vmatprep.subr.mxu0 0.0
  %1701 = vmatpush1.msra.mxu0 0.0
  %1702 = vmatprep.subr.mxu0 0.0
  %1703 = vmatpush1.msra.mxu0 0.0
  %1704 = vmatprep.subr.mxu0 0.0
  %1705 = vmatpush1.msra.mxu0 0.0
  %1706 = vmatprep.subr.mxu0 0.0
  %1707 = vmatpush1.msra.mxu0 0.0
  %1708 = vmatprep.subr.mxu0 0.0
  %1709 = vmatpush1.msra.mxu0 0.0
  %1710 = vmatprep.subr.mxu0 0.0
  %1711 = vmatpush1.msra.mxu0 0.0
  %1712 = vmatprep.subr.mxu0 0.0
  %1713 = vmatpush1.msra.mxu0 0.0
  %1714 = vmatprep.subr.mxu0 0.0
  %1715 = vmatpush1.msra.mxu0 0.0
  %1716 = vmatprep.subr.mxu0 0.0
  %1717 = vmatpush1.msra.mxu0 0.0
  %1718 = vmatprep.subr.mxu0 0.0
  %1719 = vmatpush1.msra.mxu0 0.0
  %1720 = vmatprep.subr.mxu0 0.0
  %1721 = vmatpush1.msra.mxu0 0.0
  %1722 = vmatprep.subr.mxu0 0.0
  %1723 = vmatpush1.msra.mxu0 0.0
  %1724 = vmatprep.subr.mxu0 0.0
  %1725 = vmatpush1.msra.mxu0 0.0
  %1726 = vmatprep.subr.mxu0 0.0
  %1727 = vmatpush1.msra.mxu0 0.0
  %1728 = vmatprep.subr.mxu0 0.0
  %1729 = vmatpush1.msra.mxu0 0.0
  %1730 = vmatprep.subr.mxu0 0.0
  %1731 = vmatpush1.msra.mxu0 0.0
  %1732 = vmatprep.subr.mxu0 0.0
  %1733 = vmatpush1.msra.mxu0 0.0
  %1734 = vmatprep.subr.mxu0 0.0
  %1735 = vmatpush1.msra.mxu0 0.0
  %1736 = vmatprep.subr.mxu0 0.0
  %1737 = vmatpush1.msra.mxu0 0.0
  %1738 = vmatprep.subr.mxu0 0.0
  %1739 = vmatpush1.msra.mxu0 0.0
  %1740 = vmatprep.subr.mxu0 0.0
  %1741 = vmatpush1.msra.mxu0 0.0
  %1742 = vmatprep.subr.mxu0 0.0
  %1743 = vmatpush1.msra.mxu0 0.0
  %1744 = vmatprep.subr.mxu0 0.0
  %1745 = vmatpush1.msra.mxu0 0.0
  %1746 = vmatprep.subr.mxu0 0.0
  %1747 = vmatpush1.msra.mxu0 0.0
  %1748 = vmatprep.subr.mxu0 0.0
  %1749 = vmatpush1.msra.mxu0 0.0
  %1750 = vmatprep.subr.mxu0 0.0
  %1751 = vmatpush1.msra.mxu0 0.0
  %1752 = vmatprep.subr.mxu0 0.0
  %1753 = vmatpush1.msra.mxu0 0.0
  %1754 = vmatprep.mubr.f32.mxu0 0.0
  %v1755 = vand.u32 %v1154, 4294901760
  %1756 = vmatmul.mubr.f32.gmra.mrb[0].mxu0 %v1755
  %v1757 = vpop.f32.mrb[0].mxu0
  %v1758 = vadd.f32 %v1665, %v1757
  %v1759 = vpop.f32.mrb[0].mxu0
  %1760 = vmatprep.mubr.f32.mxu0 0.0
  %v1761 = vand.u32 %v1157, 4294901760
  %1762 = vmatmul.mubr.f32.gmra.mrb[0].mxu0 %v1761
  %v1763 = vpop.f32.mrb[0].mxu0
  %v1764 = vadd.f32 %v1671, %v1763
  %v1765 = vpop.f32.mrb[0].mxu0
  %1766 = vmatprep.mubr.f32.mxu0 0.0
  %v1767 = vand.u32 %v1160, 4294901760
  %1768 = vmatmul.mubr.f32.gmra.mrb[0].mxu0 %v1767
  %v1769 = vpop.f32.mrb[0].mxu0
  %v1770 = vadd.f32 %v1677, %v1769
  %v1771 = vpop.f32.mrb[0].mxu0
  %1772 = vmatprep.mubr.f32.mxu0 0.0
  %v1773 = vand.u32 %v1163, 4294901760
  %1774 = vmatmul.mubr.f32.gmra.mrb[0].mxu0 %v1773
  %v1775 = vpop.f32.mrb[0].mxu0
  %v1776 = vadd.f32 %v1683, %v1775
  %v1777 = vpop.f32.mrb[0].mxu0
  %1778 = vdwg.mxu0
  %v1779 = vld [vmem:[%s2 + $0x20] sm:$0xff]
  %v1780 = vld [vmem:[%s2 + $0x28] sm:$0xff]
  %v1781 = vld [vmem:[%s2 + $0x30] sm:$0xff]
  %v1782 = vld [vmem:[%s2 + $0x38] sm:$0xff]
  %v1783 = vld [vmem:[%s2 + $0x40] sm:$0xff]
  %v1784 = vld [vmem:[%s2 + $0x48] sm:$0xff]
  %v1785 = vld [vmem:[%s2 + $0x50] sm:$0xff]
  %v1786 = vld [vmem:[%s2 + $0x58] sm:$0xff]
  %v1787 = vld [vmem:[%s3 + $0x60] sm:$0xff]
  %v1788 = vld [vmem:[%s3 + $0x68] sm:$0xff]
  %v1789 = vld [vmem:[%s3 + $0x70] sm:$0xff]
  %v1790 = vld [vmem:[%s3 + $0x78] sm:$0xff]
  %v1791 = vld [vmem:[%s3 + $0x80] sm:$0xff]
  %v1792 = vld [vmem:[%s3 + $0x88] sm:$0xff]
  %v1793 = vld [vmem:[%s3 + $0x90] sm:$0xff]
  %v1794 = vld [vmem:[%s3 + $0x98] sm:$0xff]
  %1796 = vset.pattern.permute.xlu0 0
  %1797 = vperm.xlu0 %1796, %v1787
  %v1798 = vpop.permute.xlu0 %1797
  %1801 = vset.pattern.permute.xlu0 0
  %1802 = vperm.xlu0 %1801, %v1788
  %v1803 = vpop.permute.xlu0 %1802
  %1806 = vset.pattern.permute.xlu0 0
  %1807 = vperm.xlu0 %1806, %v1789
  %v1808 = vpop.permute.xlu0 %1807
  %1811 = vset.pattern.permute.xlu0 0
  %1812 = vperm.xlu0 %1811, %v1790
  %v1813 = vpop.permute.xlu0 %1812
  %1816 = vset.pattern.permute.xlu0 0
  %1817 = vperm.xlu0 %1816, %v1791
  %v1818 = vpop.permute.xlu0 %1817
  %1821 = vset.pattern.permute.xlu0 0
  %1822 = vperm.xlu0 %1821, %v1792
  %v1823 = vpop.permute.xlu0 %1822
  %1826 = vset.pattern.permute.xlu0 0
  %1827 = vperm.xlu0 %1826, %v1793
  %v1828 = vpop.permute.xlu0 %1827
  %1831 = vset.pattern.permute.xlu0 0
  %1832 = vperm.xlu0 %1831, %v1794
  %v1833 = vpop.permute.xlu0 %1832
  %v1836 = vsel %vm1152, %v1779, 0
  %v1839 = vsel %vm1152, %v1780, 0
  %v1842 = vsel %vm1152, %v1781, 0
  %v1845 = vsel %vm1152, %v1782, 0
  %v1848 = vsel %vm1152, %v1783, 0
  %v1851 = vsel %vm1152, %v1784, 0
  %v1854 = vsel %vm1152, %v1785, 0
  %v1857 = vsel %vm1152, %v1786, 0
  %1859 = vmatprep.subr.mxu0 0.0
  %v1860 = vand.u32 %v1758, 4294901760
  %1861 = vmatpush1.msra.mxu0 %v1860
  %1862 = vmatprep.subr.mxu0 0.0
  %v1863 = vand.u32 %v1764, 4294901760
  %1864 = vmatpush1.msra.mxu0 %v1863
  %1865 = vmatprep.subr.mxu0 0.0
  %v1866 = vand.u32 %v1770, 4294901760
  %1867 = vmatpush1.msra.mxu0 %v1866
  %1868 = vmatprep.subr.mxu0 0.0
  %v1869 = vand.u32 %v1776, 4294901760
  %1870 = vmatpush1.msra.mxu0 %v1869
  %1871 = vmatprep.subr.mxu0 0.0
  %1872 = vmatpush1.msra.mxu0 0.0
  %1873 = vmatprep.subr.mxu0 0.0
  %1874 = vmatpush1.msra.mxu0 0.0
  %1875 = vmatprep.subr.mxu0 0.0
  %1876 = vmatpush1.msra.mxu0 0.0
  %1877 = vmatprep.subr.mxu0 0.0
  %1878 = vmatpush1.msra.mxu0 0.0
  %1879 = vmatprep.subr.mxu0 0.0
  %1880 = vmatpush1.msra.mxu0 0.0
  %1881 = vmatprep.subr.mxu0 0.0
  %1882 = vmatpush1.msra.mxu0 0.0
  %1883 = vmatprep.subr.mxu0 0.0
  %1884 = vmatpush1.msra.mxu0 0.0
  %1885 = vmatprep.subr.mxu0 0.0
  %1886 = vmatpush1.msra.mxu0 0.0
  %1887 = vmatprep.subr.mxu0 0.0
  %1888 = vmatpush1.msra.mxu0 0.0
  %1889 = vmatprep.subr.mxu0 0.0
  %1890 = vmatpush1.msra.mxu0 0.0
  %1891 = vmatprep.subr.mxu0 0.0
  %1892 = vmatpush1.msra.mxu0 0.0
  %1893 = vmatprep.subr.mxu0 0.0
  %1894 = vmatpush1.msra.mxu0 0.0
  %1895 = vmatprep.subr.mxu0 0.0
  %1896 = vmatpush1.msra.mxu0 0.0
  %1897 = vmatprep.subr.mxu0 0.0
  %1898 = vmatpush1.msra.mxu0 0.0
  %1899 = vmatprep.subr.mxu0 0.0
  %1900 = vmatpush1.msra.mxu0 0.0
  %1901 = vmatprep.subr.mxu0 0.0
  %1902 = vmatpush1.msra.mxu0 0.0
  %1903 = vmatprep.subr.mxu0 0.0
  %1904 = vmatpush1.msra.mxu0 0.0
  %1905 = vmatprep.subr.mxu0 0.0
  %1906 = vmatpush1.msra.mxu0 0.0
  %1907 = vmatprep.subr.mxu0 0.0
  %1908 = vmatpush1.msra.mxu0 0.0
  %1909 = vmatprep.subr.mxu0 0.0
  %1910 = vmatpush1.msra.mxu0 0.0
  %1911 = vmatprep.subr.mxu0 0.0
  %1912 = vmatpush1.msra.mxu0 0.0
  %1913 = vmatprep.subr.mxu0 0.0
  %1914 = vmatpush1.msra.mxu0 0.0
  %1915 = vmatprep.subr.mxu0 0.0
  %1916 = vmatpush1.msra.mxu0 0.0
  %1917 = vmatprep.subr.mxu0 0.0
  %1918 = vmatpush1.msra.mxu0 0.0
  %1919 = vmatprep.subr.mxu0 0.0
  %1920 = vmatpush1.msra.mxu0 0.0
  %1921 = vmatprep.subr.mxu0 0.0
  %1922 = vmatpush1.msra.mxu0 0.0
  %1923 = vmatprep.subr.mxu0 0.0
  %1924 = vmatpush1.msra.mxu0 0.0
  %1925 = vmatprep.subr.mxu0 0.0
  %1926 = vmatpush1.msra.mxu0 0.0
  %1927 = vmatprep.mubr.f32.mxu0 0.0
  %v1928 = vand.u32 %v1836, 4294901760
  %v1929 = vsub.f32 %v1836, %v1928
  %v1930 = vand.u32 %v1929, 4294901760
  %v1931 = vsub.f32 %v1929, %v1930
  %v1932 = vand.u32 %v1931, 4294901760
  %1933 = vmatmul.mubr.f32.gmra.mrb[0].mxu0 %v1932
  %v1934 = vpop.f32.mrb[0].mxu0
  %v1935 = vadd.f32 %v1798, %v1934
  %v1936 = vpop.f32.mrb[0].mxu0
  %1937 = vmatprep.mubr.f32.mxu0 0.0
  %v1938 = vand.u32 %v1839, 4294901760
  %v1939 = vsub.f32 %v1839, %v1938
  %v1940 = vand.u32 %v1939, 4294901760
  %v1941 = vsub.f32 %v1939, %v1940
  %v1942 = vand.u32 %v1941, 4294901760
  %1943 = vmatmul.mubr.f32.gmra.mrb[0].mxu0 %v1942
  %v1944 = vpop.f32.mrb[0].mxu0
  %v1945 = vadd.f32 %v1803, %v1944
  %v1946 = vpop.f32.mrb[0].mxu0
  %1947 = vmatprep.mubr.f32.mxu0 0.0
  %v1948 = vand.u32 %v1842, 4294901760
  %v1949 = vsub.f32 %v1842, %v1948
  %v1950 = vand.u32 %v1949, 4294901760
  %v1951 = vsub.f32 %v1949, %v1950
  %v1952 = vand.u32 %v1951, 4294901760
  %1953 = vmatmul.mubr.f32.gmra.mrb[0].mxu0 %v1952
  %v1954 = vpop.f32.mrb[0].mxu0
  %v1955 = vadd.f32 %v1808, %v1954
  %v1956 = vpop.f32.mrb[0].mxu0
  %1957 = vmatprep.mubr.f32.mxu0 0.0
  %v1958 = vand.u32 %v1845, 4294901760
  %v1959 = vsub.f32 %v1845, %v1958
  %v1960 = vand.u32 %v1959, 4294901760
  %v1961 = vsub.f32 %v1959, %v1960
  %v1962 = vand.u32 %v1961, 4294901760
  %1963 = vmatmul.mubr.f32.gmra.mrb[0].mxu0 %v1962
  %v1964 = vpop.f32.mrb[0].mxu0
  %v1965 = vadd.f32 %v1813, %v1964
  %v1966 = vpop.f32.mrb[0].mxu0
  %1967 = vmatprep.mubr.f32.mxu0 0.0
  %v1968 = vand.u32 %v1848, 4294901760
  %v1969 = vsub.f32 %v1848, %v1968
  %v1970 = vand.u32 %v1969, 4294901760
  %v1971 = vsub.f32 %v1969, %v1970
  %v1972 = vand.u32 %v1971, 4294901760
  %1973 = vmatmul.mubr.f32.gmra.mrb[0].mxu0 %v1972
  %v1974 = vpop.f32.mrb[0].mxu0
  %v1975 = vadd.f32 %v1818, %v1974
  %v1976 = vpop.f32.mrb[0].mxu0
  %1977 = vmatprep.mubr.f32.mxu0 0.0
  %v1978 = vand.u32 %v1851, 4294901760
  %v1979 = vsub.f32 %v1851, %v1978
  %v1980 = vand.u32 %v1979, 4294901760
  %v1981 = vsub.f32 %v1979, %v1980
  %v1982 = vand.u32 %v1981, 4294901760
  %1983 = vmatmul.mubr.f32.gmra.mrb[0].mxu0 %v1982
  %v1984 = vpop.f32.mrb[0].mxu0
  %v1985 = vadd.f32 %v1823, %v1984
  %v1986 = vpop.f32.mrb[0].mxu0
  %1987 = vmatprep.mubr.f32.mxu0 0.0
  %v1988 = vand.u32 %v1854, 4294901760
  %v1989 = vsub.f32 %v1854, %v1988
  %v1990 = vand.u32 %v1989, 4294901760
  %v1991 = vsub.f32 %v1989, %v1990
  %v1992 = vand.u32 %v1991, 4294901760
  %1993 = vmatmul.mubr.f32.gmra.mrb[0].mxu0 %v1992
  %v1994 = vpop.f32.mrb[0].mxu0
  %v1995 = vadd.f32 %v1828, %v1994
  %v1996 = vpop.f32.mrb[0].mxu0
  %1997 = vmatprep.mubr.f32.mxu0 0.0
  %v1998 = vand.u32 %v1857, 4294901760
  %v1999 = vsub.f32 %v1857, %v1998
  %v2000 = vand.u32 %v1999, 4294901760
  %v2001 = vsub.f32 %v1999, %v2000
  %v2002 = vand.u32 %v2001, 4294901760
  %2003 = vmatmul.mubr.f32.gmra.mrb[0].mxu0 %v2002
  %v2004 = vpop.f32.mrb[0].mxu0
  %v2005 = vadd.f32 %v1833, %v2004
  %v2006 = vpop.f32.mrb[0].mxu0
  %2007 = vdwg.mxu0
  %2008 = vmatprep.subr.mxu0 0.0
  %v2009 = vand.u32 %v1758, 4294901760
  %v2010 = vsub.f32 %v1758, %v2009
  %v2011 = vand.u32 %v2010, 4294901760
  %v2012 = vsub.f32 %v2010, %v2011
  %v2013 = vand.u32 %v2012, 4294901760
  %2014 = vmatpush1.msra.mxu0 %v2013
  %2015 = vmatprep.subr.mxu0 0.0
  %v2016 = vand.u32 %v1764, 4294901760
  %v2017 = vsub.f32 %v1764, %v2016
  %v2018 = vand.u32 %v2017, 4294901760
  %v2019 = vsub.f32 %v2017, %v2018
  %v2020 = vand.u32 %v2019, 4294901760
  %2021 = vmatpush1.msra.mxu0 %v2020
  %2022 = vmatprep.subr.mxu0 0.0
  %v2023 = vand.u32 %v1770, 4294901760
  %v2024 = vsub.f32 %v1770, %v2023
  %v2025 = vand.u32 %v2024, 4294901760
  %v2026 = vsub.f32 %v2024, %v2025
  %v2027 = vand.u32 %v2026, 4294901760
  %2028 = vmatpush1.msra.mxu0 %v2027
  %2029 = vmatprep.subr.mxu0 0.0
  %v2030 = vand.u32 %v1776, 4294901760
  %v2031 = vsub.f32 %v1776, %v2030
  %v2032 = vand.u32 %v2031, 4294901760
  %v2033 = vsub.f32 %v2031, %v2032
  %v2034 = vand.u32 %v2033, 4294901760
  %2035 = vmatpush1.msra.mxu0 %v2034
  %2036 = vmatprep.subr.mxu0 0.0
  %2037 = vmatpush1.msra.mxu0 0.0
  %2038 = vmatprep.subr.mxu0 0.0
  %2039 = vmatpush1.msra.mxu0 0.0
  %2040 = vmatprep.subr.mxu0 0.0
  %2041 = vmatpush1.msra.mxu0 0.0
  %2042 = vmatprep.subr.mxu0 0.0
  %2043 = vmatpush1.msra.mxu0 0.0
  %2044 = vmatprep.subr.mxu0 0.0
  %2045 = vmatpush1.msra.mxu0 0.0
  %2046 = vmatprep.subr.mxu0 0.0
  %2047 = vmatpush1.msra.mxu0 0.0
  %2048 = vmatprep.subr.mxu0 0.0
  %2049 = vmatpush1.msra.mxu0 0.0
  %2050 = vmatprep.subr.mxu0 0.0
  %2051 = vmatpush1.msra.mxu0 0.0
  %2052 = vmatprep.subr.mxu0 0.0
  %2053 = vmatpush1.msra.mxu0 0.0
  %2054 = vmatprep.subr.mxu0 0.0
  %2055 = vmatpush1.msra.mxu0 0.0
  %2056 = vmatprep.subr.mxu0 0.0
  %2057 = vmatpush1.msra.mxu0 0.0
  %2058 = vmatprep.subr.mxu0 0.0
  %2059 = vmatpush1.msra.mxu0 0.0
  %2060 = vmatprep.subr.mxu0 0.0
  %2061 = vmatpush1.msra.mxu0 0.0
  %2062 = vmatprep.subr.mxu0 0.0
  %2063 = vmatpush1.msra.mxu0 0.0
  %2064 = vmatprep.subr.mxu0 0.0
  %2065 = vmatpush1.msra.mxu0 0.0
  %2066 = vmatprep.subr.mxu0 0.0
  %2067 = vmatpush1.msra.mxu0 0.0
  %2068 = vmatprep.subr.mxu0 0.0
  %2069 = vmatpush1.msra.mxu0 0.0
  %2070 = vmatprep.subr.mxu0 0.0
  %2071 = vmatpush1.msra.mxu0 0.0
  %2072 = vmatprep.subr.mxu0 0.0
  %2073 = vmatpush1.msra.mxu0 0.0
  %2074 = vmatprep.subr.mxu0 0.0
  %2075 = vmatpush1.msra.mxu0 0.0
  %2076 = vmatprep.subr.mxu0 0.0
  %2077 = vmatpush1.msra.mxu0 0.0
  %2078 = vmatprep.subr.mxu0 0.0
  %2079 = vmatpush1.msra.mxu0 0.0
  %2080 = vmatprep.subr.mxu0 0.0
  %2081 = vmatpush1.msra.mxu0 0.0
  %2082 = vmatprep.subr.mxu0 0.0
  %2083 = vmatpush1.msra.mxu0 0.0
  %2084 = vmatprep.subr.mxu0 0.0
  %2085 = vmatpush1.msra.mxu0 0.0
  %2086 = vmatprep.subr.mxu0 0.0
  %2087 = vmatpush1.msra.mxu0 0.0
  %2088 = vmatprep.subr.mxu0 0.0
  %2089 = vmatpush1.msra.mxu0 0.0
  %2090 = vmatprep.subr.mxu0 0.0
  %2091 = vmatpush1.msra.mxu0 0.0
  %2092 = vmatprep.mubr.f32.mxu0 0.0
  %v2093 = vand.u32 %v1836, 4294901760
  %2094 = vmatmul.mubr.f32.gmra.mrb[0].mxu0 %v2093
  %v2095 = vpop.f32.mrb[0].mxu0
  %v2096 = vadd.f32 %v1935, %v2095
  %v2097 = vpop.f32.mrb[0].mxu0
  %2098 = vmatprep.mubr.f32.mxu0 0.0
  %v2099 = vand.u32 %v1839, 4294901760
  %2100 = vmatmul.mubr.f32.gmra.mrb[0].mxu0 %v2099
  %v2101 = vpop.f32.mrb[0].mxu0
  %v2102 = vadd.f32 %v1945, %v2101
  %v2103 = vpop.f32.mrb[0].mxu0
  %2104 = vmatprep.mubr.f32.mxu0 0.0
  %v2105 = vand.u32 %v1842, 4294901760
  %2106 = vmatmul.mubr.f32.gmra.mrb[0].mxu0 %v2105
  %v2107 = vpop.f32.mrb[0].mxu0
  %v2108 = vadd.f32 %v1955, %v2107
  %v2109 = vpop.f32.mrb[0].mxu0
  %2110 = vmatprep.mubr.f32.mxu0 0.0
  %v2111 = vand.u32 %v1845, 4294901760
  %2112 = vmatmul.mubr.f32.gmra.mrb[0].mxu0 %v2111
  %v2113 = vpop.f32.mrb[0].mxu0
  %v2114 = vadd.f32 %v1965, %v2113
  %v2115 = vpop.f32.mrb[0].mxu0
  %2116 = vmatprep.mubr.f32.mxu0 0.0
  %v2117 = vand.u32 %v1848, 4294901760
  %2118 = vmatmul.mubr.f32.gmra.mrb[0].mxu0 %v2117
  %v2119 = vpop.f32.mrb[0].mxu0
  %v2120 = vadd.f32 %v1975, %v2119
  %v2121 = vpop.f32.mrb[0].mxu0
  %2122 = vmatprep.mubr.f32.mxu0 0.0
  %v2123 = vand.u32 %v1851, 4294901760
  %2124 = vmatmul.mubr.f32.gmra.mrb[0].mxu0 %v2123
  %v2125 = vpop.f32.mrb[0].mxu0
  %v2126 = vadd.f32 %v1985, %v2125
  %v2127 = vpop.f32.mrb[0].mxu0
  %2128 = vmatprep.mubr.f32.mxu0 0.0
  %v2129 = vand.u32 %v1854, 4294901760
  %2130 = vmatmul.mubr.f32.gmra.mrb[0].mxu0 %v2129
  %v2131 = vpop.f32.mrb[0].mxu0
  %v2132 = vadd.f32 %v1995, %v2131
  %v2133 = vpop.f32.mrb[0].mxu0
  %2134 = vmatprep.mubr.f32.mxu0 0.0
  %v2135 = vand.u32 %v1857, 4294901760
  %2136 = vmatmul.mubr.f32.gmra.mrb[0].mxu0 %v2135
  %v2137 = vpop.f32.mrb[0].mxu0
  %v2138 = vadd.f32 %v2005, %v2137
  %v2139 = vpop.f32.mrb[0].mxu0
  %2140 = vdwg.mxu0
  %2141 = vmatprep.subr.mxu0 0.0
  %v2142 = vand.u32 %v1758, 4294901760
  %v2143 = vsub.f32 %v1758, %v2142
  %2144 = vmatpush1.msra.mxu0 %v2143
  %2145 = vmatprep.subr.mxu0 0.0
  %v2146 = vand.u32 %v1764, 4294901760
  %v2147 = vsub.f32 %v1764, %v2146
  %2148 = vmatpush1.msra.mxu0 %v2147
  %2149 = vmatprep.subr.mxu0 0.0
  %v2150 = vand.u32 %v1770, 4294901760
  %v2151 = vsub.f32 %v1770, %v2150
  %2152 = vmatpush1.msra.mxu0 %v2151
  %2153 = vmatprep.subr.mxu0 0.0
  %v2154 = vand.u32 %v1776, 4294901760
  %v2155 = vsub.f32 %v1776, %v2154
  %2156 = vmatpush1.msra.mxu0 %v2155
  %2157 = vmatprep.subr.mxu0 0.0
  %2158 = vmatpush1.msra.mxu0 0.0
  %2159 = vmatprep.subr.mxu0 0.0
  %2160 = vmatpush1.msra.mxu0 0.0
  %2161 = vmatprep.subr.mxu0 0.0
  %2162 = vmatpush1.msra.mxu0 0.0
  %2163 = vmatprep.subr.mxu0 0.0
  %2164 = vmatpush1.msra.mxu0 0.0
  %2165 = vmatprep.subr.mxu0 0.0
  %2166 = vmatpush1.msra.mxu0 0.0
  %2167 = vmatprep.subr.mxu0 0.0
  %2168 = vmatpush1.msra.mxu0 0.0
  %2169 = vmatprep.subr.mxu0 0.0
  %2170 = vmatpush1.msra.mxu0 0.0
  %2171 = vmatprep.subr.mxu0 0.0
  %2172 = vmatpush1.msra.mxu0 0.0
  %2173 = vmatprep.subr.mxu0 0.0
  %2174 = vmatpush1.msra.mxu0 0.0
  %2175 = vmatprep.subr.mxu0 0.0
  %2176 = vmatpush1.msra.mxu0 0.0
  %2177 = vmatprep.subr.mxu0 0.0
  %2178 = vmatpush1.msra.mxu0 0.0
  %2179 = vmatprep.subr.mxu0 0.0
  %2180 = vmatpush1.msra.mxu0 0.0
  %2181 = vmatprep.subr.mxu0 0.0
  %2182 = vmatpush1.msra.mxu0 0.0
  %2183 = vmatprep.subr.mxu0 0.0
  %2184 = vmatpush1.msra.mxu0 0.0
  %2185 = vmatprep.subr.mxu0 0.0
  %2186 = vmatpush1.msra.mxu0 0.0
  %2187 = vmatprep.subr.mxu0 0.0
  %2188 = vmatpush1.msra.mxu0 0.0
  %2189 = vmatprep.subr.mxu0 0.0
  %2190 = vmatpush1.msra.mxu0 0.0
  %2191 = vmatprep.subr.mxu0 0.0
  %2192 = vmatpush1.msra.mxu0 0.0
  %2193 = vmatprep.subr.mxu0 0.0
  %2194 = vmatpush1.msra.mxu0 0.0
  %2195 = vmatprep.subr.mxu0 0.0
  %2196 = vmatpush1.msra.mxu0 0.0
  %2197 = vmatprep.subr.mxu0 0.0
  %2198 = vmatpush1.msra.mxu0 0.0
  %2199 = vmatprep.subr.mxu0 0.0
  %2200 = vmatpush1.msra.mxu0 0.0
  %2201 = vmatprep.subr.mxu0 0.0
  %2202 = vmatpush1.msra.mxu0 0.0
  %2203 = vmatprep.subr.mxu0 0.0
  %2204 = vmatpush1.msra.mxu0 0.0
  %2205 = vmatprep.subr.mxu0 0.0
  %2206 = vmatpush1.msra.mxu0 0.0
  %2207 = vmatprep.subr.mxu0 0.0
  %2208 = vmatpush1.msra.mxu0 0.0
  %2209 = vmatprep.subr.mxu0 0.0
  %2210 = vmatpush1.msra.mxu0 0.0
  %2211 = vmatprep.subr.mxu0 0.0
  %2212 = vmatpush1.msra.mxu0 0.0
  %2213 = vmatprep.mubr.f32.mxu0 0.0
  %v2214 = vand.u32 %v1836, 4294901760
  %v2215 = vsub.f32 %v1836, %v2214
  %2216 = vmatmul.mubr.f32.gmra.mrb[0].mxu0 %v2215
  %v2217 = vpop.f32.mrb[0].mxu0
  %v2218 = vadd.f32 %v2096, %v2217
  %v2219 = vpop.f32.mrb[0].mxu0
  %2220 = vmatprep.mubr.f32.mxu0 0.0
  %v2221 = vand.u32 %v1839, 4294901760
  %v2222 = vsub.f32 %v1839, %v2221
  %2223 = vmatmul.mubr.f32.gmra.mrb[0].mxu0 %v2222
  %v2224 = vpop.f32.mrb[0].mxu0
  %v2225 = vadd.f32 %v2102, %v2224
  %v2226 = vpop.f32.mrb[0].mxu0
  %2227 = vmatprep.mubr.f32.mxu0 0.0
  %v2228 = vand.u32 %v1842, 4294901760
  %v2229 = vsub.f32 %v1842, %v2228
  %2230 = vmatmul.mubr.f32.gmra.mrb[0].mxu0 %v2229
  %v2231 = vpop.f32.mrb[0].mxu0
  %v2232 = vadd.f32 %v2108, %v2231
  %v2233 = vpop.f32.mrb[0].mxu0
  %2234 = vmatprep.mubr.f32.mxu0 0.0
  %v2235 = vand.u32 %v1845, 4294901760
  %v2236 = vsub.f32 %v1845, %v2235
  %2237 = vmatmul.mubr.f32.gmra.mrb[0].mxu0 %v2236
  %v2238 = vpop.f32.mrb[0].mxu0
  %v2239 = vadd.f32 %v2114, %v2238
  %v2240 = vpop.f32.mrb[0].mxu0
  %2241 = vmatprep.mubr.f32.mxu0 0.0
  %v2242 = vand.u32 %v1848, 4294901760
  %v2243 = vsub.f32 %v1848, %v2242
  %2244 = vmatmul.mubr.f32.gmra.mrb[0].mxu0 %v2243
  %v2245 = vpop.f32.mrb[0].mxu0
  %v2246 = vadd.f32 %v2120, %v2245
  %v2247 = vpop.f32.mrb[0].mxu0
  %2248 = vmatprep.mubr.f32.mxu0 0.0
  %v2249 = vand.u32 %v1851, 4294901760
  %v2250 = vsub.f32 %v1851, %v2249
  %2251 = vmatmul.mubr.f32.gmra.mrb[0].mxu0 %v2250
  %v2252 = vpop.f32.mrb[0].mxu0
  %v2253 = vadd.f32 %v2126, %v2252
  %v2254 = vpop.f32.mrb[0].mxu0
  %2255 = vmatprep.mubr.f32.mxu0 0.0
  %v2256 = vand.u32 %v1854, 4294901760
  %v2257 = vsub.f32 %v1854, %v2256
  %2258 = vmatmul.mubr.f32.gmra.mrb[0].mxu0 %v2257
  %v2259 = vpop.f32.mrb[0].mxu0
  %v2260 = vadd.f32 %v2132, %v2259
  %v2261 = vpop.f32.mrb[0].mxu0
  %2262 = vmatprep.mubr.f32.mxu0 0.0
  %v2263 = vand.u32 %v1857, 4294901760
  %v2264 = vsub.f32 %v1857, %v2263
  %2265 = vmatmul.mubr.f32.gmra.mrb[0].mxu0 %v2264
  %v2266 = vpop.f32.mrb[0].mxu0
  %v2267 = vadd.f32 %v2138, %v2266
  %v2268 = vpop.f32.mrb[0].mxu0
  %2269 = vdwg.mxu0
  %2270 = vmatprep.subr.mxu0 0.0
  %v2271 = vand.u32 %v1758, 4294901760
  %2272 = vmatpush1.msra.mxu0 %v2271
  %2273 = vmatprep.subr.mxu0 0.0
  %v2274 = vand.u32 %v1764, 4294901760
  %2275 = vmatpush1.msra.mxu0 %v2274
  %2276 = vmatprep.subr.mxu0 0.0
  %v2277 = vand.u32 %v1770, 4294901760
  %2278 = vmatpush1.msra.mxu0 %v2277
  %2279 = vmatprep.subr.mxu0 0.0
  %v2280 = vand.u32 %v1776, 4294901760
  %2281 = vmatpush1.msra.mxu0 %v2280
  %2282 = vmatprep.subr.mxu0 0.0
  %2283 = vmatpush1.msra.mxu0 0.0
  %2284 = vmatprep.subr.mxu0 0.0
  %2285 = vmatpush1.msra.mxu0 0.0
  %2286 = vmatprep.subr.mxu0 0.0
  %2287 = vmatpush1.msra.mxu0 0.0
  %2288 = vmatprep.subr.mxu0 0.0
  %2289 = vmatpush1.msra.mxu0 0.0
  %2290 = vmatprep.subr.mxu0 0.0
  %2291 = vmatpush1.msra.mxu0 0.0
  %2292 = vmatprep.subr.mxu0 0.0
  %2293 = vmatpush1.msra.mxu0 0.0
  %2294 = vmatprep.subr.mxu0 0.0
  %2295 = vmatpush1.msra.mxu0 0.0
  %2296 = vmatprep.subr.mxu0 0.0
  %2297 = vmatpush1.msra.mxu0 0.0
  %2298 = vmatprep.subr.mxu0 0.0
  %2299 = vmatpush1.msra.mxu0 0.0
  %2300 = vmatprep.subr.mxu0 0.0
  %2301 = vmatpush1.msra.mxu0 0.0
  %2302 = vmatprep.subr.mxu0 0.0
  %2303 = vmatpush1.msra.mxu0 0.0
  %2304 = vmatprep.subr.mxu0 0.0
  %2305 = vmatpush1.msra.mxu0 0.0
  %2306 = vmatprep.subr.mxu0 0.0
  %2307 = vmatpush1.msra.mxu0 0.0
  %2308 = vmatprep.subr.mxu0 0.0
  %2309 = vmatpush1.msra.mxu0 0.0
  %2310 = vmatprep.subr.mxu0 0.0
  %2311 = vmatpush1.msra.mxu0 0.0
  %2312 = vmatprep.subr.mxu0 0.0
  %2313 = vmatpush1.msra.mxu0 0.0
  %2314 = vmatprep.subr.mxu0 0.0
  %2315 = vmatpush1.msra.mxu0 0.0
  %2316 = vmatprep.subr.mxu0 0.0
  %2317 = vmatpush1.msra.mxu0 0.0
  %2318 = vmatprep.subr.mxu0 0.0
  %2319 = vmatpush1.msra.mxu0 0.0
  %2320 = vmatprep.subr.mxu0 0.0
  %2321 = vmatpush1.msra.mxu0 0.0
  %2322 = vmatprep.subr.mxu0 0.0
  %2323 = vmatpush1.msra.mxu0 0.0
  %2324 = vmatprep.subr.mxu0 0.0
  %2325 = vmatpush1.msra.mxu0 0.0
  %2326 = vmatprep.subr.mxu0 0.0
  %2327 = vmatpush1.msra.mxu0 0.0
  %2328 = vmatprep.subr.mxu0 0.0
  %2329 = vmatpush1.msra.mxu0 0.0
  %2330 = vmatprep.subr.mxu0 0.0
  %2331 = vmatpush1.msra.mxu0 0.0
  %2332 = vmatprep.subr.mxu0 0.0
  %2333 = vmatpush1.msra.mxu0 0.0
  %2334 = vmatprep.subr.mxu0 0.0
  %2335 = vmatpush1.msra.mxu0 0.0
  %2336 = vmatprep.subr.mxu0 0.0
  %2337 = vmatpush1.msra.mxu0 0.0
  %2338 = vmatprep.mubr.f32.mxu0 0.0
  %v2339 = vand.u32 %v1836, 4294901760
  %v2340 = vsub.f32 %v1836, %v2339
  %v2341 = vand.u32 %v2340, 4294901760
  %2342 = vmatmul.mubr.f32.gmra.mrb[0].mxu0 %v2341
  %v2343 = vpop.f32.mrb[0].mxu0
  %v2344 = vadd.f32 %v2218, %v2343
  %v2345 = vpop.f32.mrb[0].mxu0
  %2346 = vmatprep.mubr.f32.mxu0 0.0
  %v2347 = vand.u32 %v1839, 4294901760
  %v2348 = vsub.f32 %v1839, %v2347
  %v2349 = vand.u32 %v2348, 4294901760
  %2350 = vmatmul.mubr.f32.gmra.mrb[0].mxu0 %v2349
  %v2351 = vpop.f32.mrb[0].mxu0
  %v2352 = vadd.f32 %v2225, %v2351
  %v2353 = vpop.f32.mrb[0].mxu0
  %2354 = vmatprep.mubr.f32.mxu0 0.0
  %v2355 = vand.u32 %v1842, 4294901760
  %v2356 = vsub.f32 %v1842, %v2355
  %v2357 = vand.u32 %v2356, 4294901760
  %2358 = vmatmul.mubr.f32.gmra.mrb[0].mxu0 %v2357
  %v2359 = vpop.f32.mrb[0].mxu0
  %v2360 = vadd.f32 %v2232, %v2359
  %v2361 = vpop.f32.mrb[0].mxu0
  %2362 = vmatprep.mubr.f32.mxu0 0.0
  %v2363 = vand.u32 %v1845, 4294901760
  %v2364 = vsub.f32 %v1845, %v2363
  %v2365 = vand.u32 %v2364, 4294901760
  %2366 = vmatmul.mubr.f32.gmra.mrb[0].mxu0 %v2365
  %v2367 = vpop.f32.mrb[0].mxu0
  %v2368 = vadd.f32 %v2239, %v2367
  %v2369 = vpop.f32.mrb[0].mxu0
  %2370 = vmatprep.mubr.f32.mxu0 0.0
  %v2371 = vand.u32 %v1848, 4294901760
  %v2372 = vsub.f32 %v1848, %v2371
  %v2373 = vand.u32 %v2372, 4294901760
  %2374 = vmatmul.mubr.f32.gmra.mrb[0].mxu0 %v2373
  %v2375 = vpop.f32.mrb[0].mxu0
  %v2376 = vadd.f32 %v2246, %v2375
  %v2377 = vpop.f32.mrb[0].mxu0
  %2378 = vmatprep.mubr.f32.mxu0 0.0
  %v2379 = vand.u32 %v1851, 4294901760
  %v2380 = vsub.f32 %v1851, %v2379
  %v2381 = vand.u32 %v2380, 4294901760
  %2382 = vmatmul.mubr.f32.gmra.mrb[0].mxu0 %v2381
  %v2383 = vpop.f32.mrb[0].mxu0
  %v2384 = vadd.f32 %v2253, %v2383
  %v2385 = vpop.f32.mrb[0].mxu0
  %2386 = vmatprep.mubr.f32.mxu0 0.0
  %v2387 = vand.u32 %v1854, 4294901760
  %v2388 = vsub.f32 %v1854, %v2387
  %v2389 = vand.u32 %v2388, 4294901760
  %2390 = vmatmul.mubr.f32.gmra.mrb[0].mxu0 %v2389
  %v2391 = vpop.f32.mrb[0].mxu0
  %v2392 = vadd.f32 %v2260, %v2391
  %v2393 = vpop.f32.mrb[0].mxu0
  %2394 = vmatprep.mubr.f32.mxu0 0.0
  %v2395 = vand.u32 %v1857, 4294901760
  %v2396 = vsub.f32 %v1857, %v2395
  %v2397 = vand.u32 %v2396, 4294901760
  %2398 = vmatmul.mubr.f32.gmra.mrb[0].mxu0 %v2397
  %v2399 = vpop.f32.mrb[0].mxu0
  %v2400 = vadd.f32 %v2267, %v2399
  %v2401 = vpop.f32.mrb[0].mxu0
  %2402 = vdwg.mxu0
  %2403 = vmatprep.subr.mxu0 0.0
  %v2404 = vand.u32 %v1758, 4294901760
  %v2405 = vsub.f32 %v1758, %v2404
  %v2406 = vand.u32 %v2405, 4294901760
  %2407 = vmatpush1.msra.mxu0 %v2406
  %2408 = vmatprep.subr.mxu0 0.0
  %v2409 = vand.u32 %v1764, 4294901760
  %v2410 = vsub.f32 %v1764, %v2409
  %v2411 = vand.u32 %v2410, 4294901760
  %2412 = vmatpush1.msra.mxu0 %v2411
  %2413 = vmatprep.subr.mxu0 0.0
  %v2414 = vand.u32 %v1770, 4294901760
  %v2415 = vsub.f32 %v1770, %v2414
  %v2416 = vand.u32 %v2415, 4294901760
  %2417 = vmatpush1.msra.mxu0 %v2416
  %2418 = vmatprep.subr.mxu0 0.0
  %v2419 = vand.u32 %v1776, 4294901760
  %v2420 = vsub.f32 %v1776, %v2419
  %v2421 = vand.u32 %v2420, 4294901760
  %2422 = vmatpush1.msra.mxu0 %v2421
  %2423 = vmatprep.subr.mxu0 0.0
  %2424 = vmatpush1.msra.mxu0 0.0
  %2425 = vmatprep.subr.mxu0 0.0
  %2426 = vmatpush1.msra.mxu0 0.0
  %2427 = vmatprep.subr.mxu0 0.0
  %2428 = vmatpush1.msra.mxu0 0.0
  %2429 = vmatprep.subr.mxu0 0.0
  %2430 = vmatpush1.msra.mxu0 0.0
  %2431 = vmatprep.subr.mxu0 0.0
  %2432 = vmatpush1.msra.mxu0 0.0
  %2433 = vmatprep.subr.mxu0 0.0
  %2434 = vmatpush1.msra.mxu0 0.0
  %2435 = vmatprep.subr.mxu0 0.0
  %2436 = vmatpush1.msra.mxu0 0.0
  %2437 = vmatprep.subr.mxu0 0.0
  %2438 = vmatpush1.msra.mxu0 0.0
  %2439 = vmatprep.subr.mxu0 0.0
  %2440 = vmatpush1.msra.mxu0 0.0
  %2441 = vmatprep.subr.mxu0 0.0
  %2442 = vmatpush1.msra.mxu0 0.0
  %2443 = vmatprep.subr.mxu0 0.0
  %2444 = vmatpush1.msra.mxu0 0.0
  %2445 = vmatprep.subr.mxu0 0.0
  %2446 = vmatpush1.msra.mxu0 0.0
  %2447 = vmatprep.subr.mxu0 0.0
  %2448 = vmatpush1.msra.mxu0 0.0
  %2449 = vmatprep.subr.mxu0 0.0
  %2450 = vmatpush1.msra.mxu0 0.0
  %2451 = vmatprep.subr.mxu0 0.0
  %2452 = vmatpush1.msra.mxu0 0.0
  %2453 = vmatprep.subr.mxu0 0.0
  %2454 = vmatpush1.msra.mxu0 0.0
  %2455 = vmatprep.subr.mxu0 0.0
  %2456 = vmatpush1.msra.mxu0 0.0
  %2457 = vmatprep.subr.mxu0 0.0
  %2458 = vmatpush1.msra.mxu0 0.0
  %2459 = vmatprep.subr.mxu0 0.0
  %2460 = vmatpush1.msra.mxu0 0.0
  %2461 = vmatprep.subr.mxu0 0.0
  %2462 = vmatpush1.msra.mxu0 0.0
  %2463 = vmatprep.subr.mxu0 0.0
  %2464 = vmatpush1.msra.mxu0 0.0
  %2465 = vmatprep.subr.mxu0 0.0
  %2466 = vmatpush1.msra.mxu0 0.0
  %2467 = vmatprep.subr.mxu0 0.0
  %2468 = vmatpush1.msra.mxu0 0.0
  %2469 = vmatprep.subr.mxu0 0.0
  %2470 = vmatpush1.msra.mxu0 0.0
  %2471 = vmatprep.subr.mxu0 0.0
  %2472 = vmatpush1.msra.mxu0 0.0
  %2473 = vmatprep.subr.mxu0 0.0
  %2474 = vmatpush1.msra.mxu0 0.0
  %2475 = vmatprep.subr.mxu0 0.0
  %2476 = vmatpush1.msra.mxu0 0.0
  %2477 = vmatprep.subr.mxu0 0.0
  %2478 = vmatpush1.msra.mxu0 0.0
  %2479 = vmatprep.mubr.f32.mxu0 0.0
  %v2480 = vand.u32 %v1836, 4294901760
  %2481 = vmatmul.mubr.f32.gmra.mrb[0].mxu0 %v2480
  %v2482 = vpop.f32.mrb[0].mxu0
  %v2483 = vadd.f32 %v2344, %v2482
  %v2484 = vpop.f32.mrb[0].mxu0
  %2485 = vmatprep.mubr.f32.mxu0 0.0
  %v2486 = vand.u32 %v1839, 4294901760
  %2487 = vmatmul.mubr.f32.gmra.mrb[0].mxu0 %v2486
  %v2488 = vpop.f32.mrb[0].mxu0
  %v2489 = vadd.f32 %v2352, %v2488
  %v2490 = vpop.f32.mrb[0].mxu0
  %2491 = vmatprep.mubr.f32.mxu0 0.0
  %v2492 = vand.u32 %v1842, 4294901760
  %2493 = vmatmul.mubr.f32.gmra.mrb[0].mxu0 %v2492
  %v2494 = vpop.f32.mrb[0].mxu0
  %v2495 = vadd.f32 %v2360, %v2494
  %v2496 = vpop.f32.mrb[0].mxu0
  %2497 = vmatprep.mubr.f32.mxu0 0.0
  %v2498 = vand.u32 %v1845, 4294901760
  %2499 = vmatmul.mubr.f32.gmra.mrb[0].mxu0 %v2498
  %v2500 = vpop.f32.mrb[0].mxu0
  %v2501 = vadd.f32 %v2368, %v2500
  %v2502 = vpop.f32.mrb[0].mxu0
  %2503 = vmatprep.mubr.f32.mxu0 0.0
  %v2504 = vand.u32 %v1848, 4294901760
  %2505 = vmatmul.mubr.f32.gmra.mrb[0].mxu0 %v2504
  %v2506 = vpop.f32.mrb[0].mxu0
  %v2507 = vadd.f32 %v2376, %v2506
  %v2508 = vpop.f32.mrb[0].mxu0
  %2509 = vmatprep.mubr.f32.mxu0 0.0
  %v2510 = vand.u32 %v1851, 4294901760
  %2511 = vmatmul.mubr.f32.gmra.mrb[0].mxu0 %v2510
  %v2512 = vpop.f32.mrb[0].mxu0
  %v2513 = vadd.f32 %v2384, %v2512
  %v2514 = vpop.f32.mrb[0].mxu0
  %2515 = vmatprep.mubr.f32.mxu0 0.0
  %v2516 = vand.u32 %v1854, 4294901760
  %2517 = vmatmul.mubr.f32.gmra.mrb[0].mxu0 %v2516
  %v2518 = vpop.f32.mrb[0].mxu0
  %v2519 = vadd.f32 %v2392, %v2518
  %v2520 = vpop.f32.mrb[0].mxu0
  %2521 = vmatprep.mubr.f32.mxu0 0.0
  %v2522 = vand.u32 %v1857, 4294901760
  %2523 = vmatmul.mubr.f32.gmra.mrb[0].mxu0 %v2522
  %v2524 = vpop.f32.mrb[0].mxu0
  %v2525 = vadd.f32 %v2400, %v2524
  %v2526 = vpop.f32.mrb[0].mxu0
  %2527 = vdwg.mxu0
  %2528 = vmatprep.subr.mxu0 0.0
  %v2529 = vand.u32 %v1758, 4294901760
  %2530 = vmatpush1.msra.mxu0 %v2529
  %2531 = vmatprep.subr.mxu0 0.0
  %v2532 = vand.u32 %v1764, 4294901760
  %2533 = vmatpush1.msra.mxu0 %v2532
  %2534 = vmatprep.subr.mxu0 0.0
  %v2535 = vand.u32 %v1770, 4294901760
  %2536 = vmatpush1.msra.mxu0 %v2535
  %2537 = vmatprep.subr.mxu0 0.0
  %v2538 = vand.u32 %v1776, 4294901760
  %2539 = vmatpush1.msra.mxu0 %v2538
  %2540 = vmatprep.subr.mxu0 0.0
  %2541 = vmatpush1.msra.mxu0 0.0
  %2542 = vmatprep.subr.mxu0 0.0
  %2543 = vmatpush1.msra.mxu0 0.0
  %2544 = vmatprep.subr.mxu0 0.0
  %2545 = vmatpush1.msra.mxu0 0.0
  %2546 = vmatprep.subr.mxu0 0.0
  %2547 = vmatpush1.msra.mxu0 0.0
  %2548 = vmatprep.subr.mxu0 0.0
  %2549 = vmatpush1.msra.mxu0 0.0
  %2550 = vmatprep.subr.mxu0 0.0
  %2551 = vmatpush1.msra.mxu0 0.0
  %2552 = vmatprep.subr.mxu0 0.0
  %2553 = vmatpush1.msra.mxu0 0.0
  %2554 = vmatprep.subr.mxu0 0.0
  %2555 = vmatpush1.msra.mxu0 0.0
  %2556 = vmatprep.subr.mxu0 0.0
  %2557 = vmatpush1.msra.mxu0 0.0
  %2558 = vmatprep.subr.mxu0 0.0
  %2559 = vmatpush1.msra.mxu0 0.0
  %2560 = vmatprep.subr.mxu0 0.0
  %2561 = vmatpush1.msra.mxu0 0.0
  %2562 = vmatprep.subr.mxu0 0.0
  %2563 = vmatpush1.msra.mxu0 0.0
  %2564 = vmatprep.subr.mxu0 0.0
  %2565 = vmatpush1.msra.mxu0 0.0
  %2566 = vmatprep.subr.mxu0 0.0
  %2567 = vmatpush1.msra.mxu0 0.0
  %2568 = vmatprep.subr.mxu0 0.0
  %2569 = vmatpush1.msra.mxu0 0.0
  %2570 = vmatprep.subr.mxu0 0.0
  %2571 = vmatpush1.msra.mxu0 0.0
  %2572 = vmatprep.subr.mxu0 0.0
  %2573 = vmatpush1.msra.mxu0 0.0
  %2574 = vmatprep.subr.mxu0 0.0
  %2575 = vmatpush1.msra.mxu0 0.0
  %2576 = vmatprep.subr.mxu0 0.0
  %2577 = vmatpush1.msra.mxu0 0.0
  %2578 = vmatprep.subr.mxu0 0.0
  %2579 = vmatpush1.msra.mxu0 0.0
  %2580 = vmatprep.subr.mxu0 0.0
  %2581 = vmatpush1.msra.mxu0 0.0
  %2582 = vmatprep.subr.mxu0 0.0
  %2583 = vmatpush1.msra.mxu0 0.0
  %2584 = vmatprep.subr.mxu0 0.0
  %2585 = vmatpush1.msra.mxu0 0.0
  %2586 = vmatprep.subr.mxu0 0.0
  %2587 = vmatpush1.msra.mxu0 0.0
  %2588 = vmatprep.subr.mxu0 0.0
  %2589 = vmatpush1.msra.mxu0 0.0
  %2590 = vmatprep.subr.mxu0 0.0
  %2591 = vmatpush1.msra.mxu0 0.0
  %2592 = vmatprep.subr.mxu0 0.0
  %2593 = vmatpush1.msra.mxu0 0.0
  %2594 = vmatprep.subr.mxu0 0.0
  %2595 = vmatpush1.msra.mxu0 0.0
  %2596 = vmatprep.mubr.f32.mxu0 0.0
  %v2597 = vand.u32 %v1836, 4294901760
  %2598 = vmatmul.mubr.f32.gmra.mrb[0].mxu0 %v2597
  %v2599 = vpop.f32.mrb[0].mxu0
  %v2600 = vadd.f32 %v2483, %v2599
  %v2601 = vpop.f32.mrb[0].mxu0
  %2602 = vmatprep.mubr.f32.mxu0 0.0
  %v2603 = vand.u32 %v1839, 4294901760
  %2604 = vmatmul.mubr.f32.gmra.mrb[0].mxu0 %v2603
  %v2605 = vpop.f32.mrb[0].mxu0
  %v2606 = vadd.f32 %v2489, %v2605
  %v2607 = vpop.f32.mrb[0].mxu0
  %2608 = vmatprep.mubr.f32.mxu0 0.0
  %v2609 = vand.u32 %v1842, 4294901760
  %2610 = vmatmul.mubr.f32.gmra.mrb[0].mxu0 %v2609
  %v2611 = vpop.f32.mrb[0].mxu0
  %v2612 = vadd.f32 %v2495, %v2611
  %v2613 = vpop.f32.mrb[0].mxu0
  %2614 = vmatprep.mubr.f32.mxu0 0.0
  %v2615 = vand.u32 %v1845, 4294901760
  %2616 = vmatmul.mubr.f32.gmra.mrb[0].mxu0 %v2615
  %v2617 = vpop.f32.mrb[0].mxu0
  %v2618 = vadd.f32 %v2501, %v2617
  %v2619 = vpop.f32.mrb[0].mxu0
  %2620 = vmatprep.mubr.f32.mxu0 0.0
  %v2621 = vand.u32 %v1848, 4294901760
  %2622 = vmatmul.mubr.f32.gmra.mrb[0].mxu0 %v2621
  %v2623 = vpop.f32.mrb[0].mxu0
  %v2624 = vadd.f32 %v2507, %v2623
  %v2625 = vpop.f32.mrb[0].mxu0
  %2626 = vmatprep.mubr.f32.mxu0 0.0
  %v2627 = vand.u32 %v1851, 4294901760
  %2628 = vmatmul.mubr.f32.gmra.mrb[0].mxu0 %v2627
  %v2629 = vpop.f32.mrb[0].mxu0
  %v2630 = vadd.f32 %v2513, %v2629
  %v2631 = vpop.f32.mrb[0].mxu0
  %2632 = vmatprep.mubr.f32.mxu0 0.0
  %v2633 = vand.u32 %v1854, 4294901760
  %2634 = vmatmul.mubr.f32.gmra.mrb[0].mxu0 %v2633
  %v2635 = vpop.f32.mrb[0].mxu0
  %v2636 = vadd.f32 %v2519, %v2635
  %v2637 = vpop.f32.mrb[0].mxu0
  %2638 = vmatprep.mubr.f32.mxu0 0.0
  %v2639 = vand.u32 %v1857, 4294901760
  %2640 = vmatmul.mubr.f32.gmra.mrb[0].mxu0 %v2639
  %v2641 = vpop.f32.mrb[0].mxu0
  %v2642 = vadd.f32 %v2525, %v2641
  %v2643 = vpop.f32.mrb[0].mxu0
  %2644 = vdwg.mxu0
  %v2645 = vand.u32 2147483647, %v2624
  %v2646 = vand.u32 2147483647, %v2630
  %v2647 = vand.u32 2147483647, %v2636
  %v2648 = vand.u32 2147483647, %v2642
  %v2649 = vsub.f32 0.0, %v2645
  %v2650 = vsub.f32 0.0, %v2646
  %v2651 = vsub.f32 0.0, %v2647
  %v2652 = vsub.f32 0.0, %v2648
  %v2653 = vmul.f32 %v2649, 1.442695
  %v2654 = vpow.pop %v2653
  %v2655 = vmul.f32 %v2650, 1.442695
  %v2656 = vpow.pop %v2655
  %v2657 = vmul.f32 %v2651, 1.442695
  %v2658 = vpow.pop %v2657
  %v2659 = vmul.f32 %v2652, 1.442695
  %v2660 = vpow.pop %v2659
  %v2661 = vadd.f32 %v2654, 1.0
  %v2662 = vadd.f32 %v2656, 1.0
  %v2663 = vadd.f32 %v2658, 1.0
  %v2664 = vadd.f32 %v2660, 1.0
  %v2665 = vrcp.pop %v2661
  %v2666 = vmul.f32 1.0, %v2665
  %v2667 = vrcp.pop %v2662
  %v2668 = vmul.f32 1.0, %v2667
  %v2669 = vrcp.pop %v2663
  %v2670 = vmul.f32 1.0, %v2669
  %v2671 = vrcp.pop %v2664
  %v2672 = vmul.f32 1.0, %v2671
  %vm2673 = vcmp.ge.f32.partialorder %v2624, 0.0
  %vm2674 = vcmp.ge.f32.partialorder %v2630, 0.0
  %vm2675 = vcmp.ge.f32.partialorder %v2636, 0.0
  %vm2676 = vcmp.ge.f32.partialorder %v2642, 0.0
  %v2677 = vmul.f32 %v2654, %v2666
  %v2678 = vmul.f32 %v2656, %v2668
  %v2679 = vmul.f32 %v2658, %v2670
  %v2680 = vmul.f32 %v2660, %v2672
  %v2681 = vsel %vm2673, %v2666, %v2677
  %v2682 = vsel %vm2674, %v2668, %v2678
  %v2683 = vsel %vm2675, %v2670, %v2679
  %v2684 = vsel %vm2676, %v2672, %v2680
  %v2685 = vmul.f32 %v2600, %v2681
  %v2686 = vmul.f32 %v2606, %v2682
  %v2687 = vmul.f32 %v2612, %v2683
  %v2688 = vmul.f32 %v2618, %v2684
  %v2689 = vadd.f32 %v1083, %v2685
  %v2690 = vadd.f32 %v1089, %v2686
  %v2691 = vadd.f32 %v1095, %v2687
  %v2692 = vadd.f32 %v1101, %v2688
  %v2693 = vadd.f32 %v2689, %v2690
  %v2694 = vadd.f32 %v2693, %v2691
  %v2695 = vadd.f32 %v2694, %v2692
  %v2696 = vrot.slane %v2695, 4
  %v2697 = vadd.f32 %v2695, %v2696
  %v2698 = vrot.slane %v2697, 2
  %v2699 = vadd.f32 %v2697, %v2698
  %v2700 = vrot.slane %v2699, 1
  %v2701 = vadd.f32 %v2699, %v2700
  %v2702 = vrcp.pop 32.0
  %v2703 = vmul.f32 %v2701, %v2702
  %v2704 = vsub.f32 %v2689, %v2703
  %v2705 = vsub.f32 %v2690, %v2703
  %v2706 = vsub.f32 %v2691, %v2703
  %v2707 = vsub.f32 %v2692, %v2703
  %v2708 = vmul.f32 %v2704, %v2704
  %v2709 = vmul.f32 %v2705, %v2705
  %v2710 = vmul.f32 %v2706, %v2706
  %v2711 = vmul.f32 %v2707, %v2707
  %v2712 = vadd.f32 %v2708, %v2709
  %v2713 = vadd.f32 %v2712, %v2710
  %v2714 = vadd.f32 %v2713, %v2711
  %v2715 = vrot.slane %v2714, 4
  %v2716 = vadd.f32 %v2714, %v2715
  %v2717 = vrot.slane %v2716, 2
  %v2718 = vadd.f32 %v2716, %v2717
  %v2719 = vrot.slane %v2718, 1
  %v2720 = vadd.f32 %v2718, %v2719
  %v2721 = vmul.f32 %v2720, %v2702
  %v2722 = vadd.f32 %v2721, 1e-05
  %v2723 = vrsqrt.pop %v2722
  %v2724 = vmul.f32 %v2704, %v2723
  %v2725 = vmul.f32 %v2705, %v2723
  %v2726 = vmul.f32 %v2706, %v2723
  %v2727 = vmul.f32 %v2707, %v2723
  %v2728 = vld [vmem:[%s3 + $0xa0] sm:$0xff]
  %v2729 = vld [vmem:[%s3 + $0xa8] sm:$0xff]
  %v2730 = vld [vmem:[%s3 + $0xb0] sm:$0xff]
  %v2731 = vld [vmem:[%s3 + $0xb8] sm:$0xff]
  %2733 = vset.pattern.permute.xlu0 0
  %2734 = vperm.xlu0 %2733, %v2728
  %v2735 = vpop.permute.xlu0 %2734
  %2738 = vset.pattern.permute.xlu0 0
  %2739 = vperm.xlu0 %2738, %v2729
  %v2740 = vpop.permute.xlu0 %2739
  %2743 = vset.pattern.permute.xlu0 0
  %2744 = vperm.xlu0 %2743, %v2730
  %v2745 = vpop.permute.xlu0 %2744
  %2748 = vset.pattern.permute.xlu0 0
  %2749 = vperm.xlu0 %2748, %v2731
  %v2750 = vpop.permute.xlu0 %2749
  %v2752 = vmul.f32 %v2724, %v2735
  %v2753 = vmul.f32 %v2725, %v2740
  %v2754 = vmul.f32 %v2726, %v2745
  %v2755 = vmul.f32 %v2727, %v2750
  %v2756 = vld [vmem:[%s3 + $0xc0] sm:$0xff]
  %v2757 = vld [vmem:[%s3 + $0xc8] sm:$0xff]
  %v2758 = vld [vmem:[%s3 + $0xd0] sm:$0xff]
  %v2759 = vld [vmem:[%s3 + $0xd8] sm:$0xff]
  %2761 = vset.pattern.permute.xlu0 0
  %2762 = vperm.xlu0 %2761, %v2756
  %v2763 = vpop.permute.xlu0 %2762
  %2766 = vset.pattern.permute.xlu0 0
  %2767 = vperm.xlu0 %2766, %v2757
  %v2768 = vpop.permute.xlu0 %2767
  %2771 = vset.pattern.permute.xlu0 0
  %2772 = vperm.xlu0 %2771, %v2758
  %v2773 = vpop.permute.xlu0 %2772
  %2776 = vset.pattern.permute.xlu0 0
  %2777 = vperm.xlu0 %2776, %v2759
  %v2778 = vpop.permute.xlu0 %2777
  %v2780 = vadd.f32 %v2752, %v2763
  %v2781 = vadd.f32 %v2753, %v2768
  %v2782 = vadd.f32 %v2754, %v2773
  %v2783 = vadd.f32 %v2755, %v2778
  %v2784 = vld [vmem:[%s2 + $0x60] sm:$0xff]
  %v2785 = vld [vmem:[%s2 + $0x68] sm:$0xff]
  %v2786 = vld [vmem:[%s3 + $0xe0] sm:$0xff]
  %v2787 = vld [vmem:[%s3 + $0xe8] sm:$0xff]
  %2789 = vset.pattern.permute.xlu0 0
  %2790 = vperm.xlu0 %2789, %v2786
  %v2791 = vpop.permute.xlu0 %2790
  %2794 = vset.pattern.permute.xlu0 0
  %2795 = vperm.xlu0 %2794, %v2787
  %v2796 = vpop.permute.xlu0 %2795
  %v2799 = vsel %vm1152, %v2784, 0
  %v2802 = vsel %vm1152, %v2785, 0
  %2804 = vmatprep.subr.mxu0 0.0
  %v2805 = vand.u32 %v2780, 4294901760
  %2806 = vmatpush1.msra.mxu0 %v2805
  %2807 = vmatprep.subr.mxu0 0.0
  %v2808 = vand.u32 %v2781, 4294901760
  %2809 = vmatpush1.msra.mxu0 %v2808
  %2810 = vmatprep.subr.mxu0 0.0
  %v2811 = vand.u32 %v2782, 4294901760
  %2812 = vmatpush1.msra.mxu0 %v2811
  %2813 = vmatprep.subr.mxu0 0.0
  %v2814 = vand.u32 %v2783, 4294901760
  %2815 = vmatpush1.msra.mxu0 %v2814
  %2816 = vmatprep.subr.mxu0 0.0
  %2817 = vmatpush1.msra.mxu0 0.0
  %2818 = vmatprep.subr.mxu0 0.0
  %2819 = vmatpush1.msra.mxu0 0.0
  %2820 = vmatprep.subr.mxu0 0.0
  %2821 = vmatpush1.msra.mxu0 0.0
  %2822 = vmatprep.subr.mxu0 0.0
  %2823 = vmatpush1.msra.mxu0 0.0
  %2824 = vmatprep.subr.mxu0 0.0
  %2825 = vmatpush1.msra.mxu0 0.0
  %2826 = vmatprep.subr.mxu0 0.0
  %2827 = vmatpush1.msra.mxu0 0.0
  %2828 = vmatprep.subr.mxu0 0.0
  %2829 = vmatpush1.msra.mxu0 0.0
  %2830 = vmatprep.subr.mxu0 0.0
  %2831 = vmatpush1.msra.mxu0 0.0
  %2832 = vmatprep.subr.mxu0 0.0
  %2833 = vmatpush1.msra.mxu0 0.0
  %2834 = vmatprep.subr.mxu0 0.0
  %2835 = vmatpush1.msra.mxu0 0.0
  %2836 = vmatprep.subr.mxu0 0.0
  %2837 = vmatpush1.msra.mxu0 0.0
  %2838 = vmatprep.subr.mxu0 0.0
  %2839 = vmatpush1.msra.mxu0 0.0
  %2840 = vmatprep.subr.mxu0 0.0
  %2841 = vmatpush1.msra.mxu0 0.0
  %2842 = vmatprep.subr.mxu0 0.0
  %2843 = vmatpush1.msra.mxu0 0.0
  %2844 = vmatprep.subr.mxu0 0.0
  %2845 = vmatpush1.msra.mxu0 0.0
  %2846 = vmatprep.subr.mxu0 0.0
  %2847 = vmatpush1.msra.mxu0 0.0
  %2848 = vmatprep.subr.mxu0 0.0
  %2849 = vmatpush1.msra.mxu0 0.0
  %2850 = vmatprep.subr.mxu0 0.0
  %2851 = vmatpush1.msra.mxu0 0.0
  %2852 = vmatprep.subr.mxu0 0.0
  %2853 = vmatpush1.msra.mxu0 0.0
  %2854 = vmatprep.subr.mxu0 0.0
  %2855 = vmatpush1.msra.mxu0 0.0
  %2856 = vmatprep.subr.mxu0 0.0
  %2857 = vmatpush1.msra.mxu0 0.0
  %2858 = vmatprep.subr.mxu0 0.0
  %2859 = vmatpush1.msra.mxu0 0.0
  %2860 = vmatprep.subr.mxu0 0.0
  %2861 = vmatpush1.msra.mxu0 0.0
  %2862 = vmatprep.subr.mxu0 0.0
  %2863 = vmatpush1.msra.mxu0 0.0
  %2864 = vmatprep.subr.mxu0 0.0
  %2865 = vmatpush1.msra.mxu0 0.0
  %2866 = vmatprep.subr.mxu0 0.0
  %2867 = vmatpush1.msra.mxu0 0.0
  %2868 = vmatprep.subr.mxu0 0.0
  %2869 = vmatpush1.msra.mxu0 0.0
  %2870 = vmatprep.subr.mxu0 0.0
  %2871 = vmatpush1.msra.mxu0 0.0
  %2872 = vmatprep.mubr.f32.mxu0 0.0
  %v2873 = vand.u32 %v2799, 4294901760
  %v2874 = vsub.f32 %v2799, %v2873
  %v2875 = vand.u32 %v2874, 4294901760
  %v2876 = vsub.f32 %v2874, %v2875
  %v2877 = vand.u32 %v2876, 4294901760
  %2878 = vmatmul.mubr.f32.gmra.mrb[0].mxu0 %v2877
  %v2879 = vpop.f32.mrb[0].mxu0
  %v2880 = vadd.f32 %v2791, %v2879
  %v2881 = vpop.f32.mrb[0].mxu0
  %2882 = vmatprep.mubr.f32.mxu0 0.0
  %v2883 = vand.u32 %v2802, 4294901760
  %v2884 = vsub.f32 %v2802, %v2883
  %v2885 = vand.u32 %v2884, 4294901760
  %v2886 = vsub.f32 %v2884, %v2885
  %v2887 = vand.u32 %v2886, 4294901760
  %2888 = vmatmul.mubr.f32.gmra.mrb[0].mxu0 %v2887
  %v2889 = vpop.f32.mrb[0].mxu0
  %v2890 = vadd.f32 %v2796, %v2889
  %v2891 = vpop.f32.mrb[0].mxu0
  %2892 = vdwg.mxu0
  %2893 = vmatprep.subr.mxu0 0.0
  %v2894 = vand.u32 %v2780, 4294901760
  %v2895 = vsub.f32 %v2780, %v2894
  %v2896 = vand.u32 %v2895, 4294901760
  %v2897 = vsub.f32 %v2895, %v2896
  %v2898 = vand.u32 %v2897, 4294901760
  %2899 = vmatpush1.msra.mxu0 %v2898
  %2900 = vmatprep.subr.mxu0 0.0
  %v2901 = vand.u32 %v2781, 4294901760
  %v2902 = vsub.f32 %v2781, %v2901
  %v2903 = vand.u32 %v2902, 4294901760
  %v2904 = vsub.f32 %v2902, %v2903
  %v2905 = vand.u32 %v2904, 4294901760
  %2906 = vmatpush1.msra.mxu0 %v2905
  %2907 = vmatprep.subr.mxu0 0.0
  %v2908 = vand.u32 %v2782, 4294901760
  %v2909 = vsub.f32 %v2782, %v2908
  %v2910 = vand.u32 %v2909, 4294901760
  %v2911 = vsub.f32 %v2909, %v2910
  %v2912 = vand.u32 %v2911, 4294901760
  %2913 = vmatpush1.msra.mxu0 %v2912
  %2914 = vmatprep.subr.mxu0 0.0
  %v2915 = vand.u32 %v2783, 4294901760
  %v2916 = vsub.f32 %v2783, %v2915
  %v2917 = vand.u32 %v2916, 4294901760
  %v2918 = vsub.f32 %v2916, %v2917
  %v2919 = vand.u32 %v2918, 4294901760
  %2920 = vmatpush1.msra.mxu0 %v2919
  %2921 = vmatprep.subr.mxu0 0.0
  %2922 = vmatpush1.msra.mxu0 0.0
  %2923 = vmatprep.subr.mxu0 0.0
  %2924 = vmatpush1.msra.mxu0 0.0
  %2925 = vmatprep.subr.mxu0 0.0
  %2926 = vmatpush1.msra.mxu0 0.0
  %2927 = vmatprep.subr.mxu0 0.0
  %2928 = vmatpush1.msra.mxu0 0.0
  %2929 = vmatprep.subr.mxu0 0.0
  %2930 = vmatpush1.msra.mxu0 0.0
  %2931 = vmatprep.subr.mxu0 0.0
  %2932 = vmatpush1.msra.mxu0 0.0
  %2933 = vmatprep.subr.mxu0 0.0
  %2934 = vmatpush1.msra.mxu0 0.0
  %2935 = vmatprep.subr.mxu0 0.0
  %2936 = vmatpush1.msra.mxu0 0.0
  %2937 = vmatprep.subr.mxu0 0.0
  %2938 = vmatpush1.msra.mxu0 0.0
  %2939 = vmatprep.subr.mxu0 0.0
  %2940 = vmatpush1.msra.mxu0 0.0
  %2941 = vmatprep.subr.mxu0 0.0
  %2942 = vmatpush1.msra.mxu0 0.0
  %2943 = vmatprep.subr.mxu0 0.0
  %2944 = vmatpush1.msra.mxu0 0.0
  %2945 = vmatprep.subr.mxu0 0.0
  %2946 = vmatpush1.msra.mxu0 0.0
  %2947 = vmatprep.subr.mxu0 0.0
  %2948 = vmatpush1.msra.mxu0 0.0
  %2949 = vmatprep.subr.mxu0 0.0
  %2950 = vmatpush1.msra.mxu0 0.0
  %2951 = vmatprep.subr.mxu0 0.0
  %2952 = vmatpush1.msra.mxu0 0.0
  %2953 = vmatprep.subr.mxu0 0.0
  %2954 = vmatpush1.msra.mxu0 0.0
  %2955 = vmatprep.subr.mxu0 0.0
  %2956 = vmatpush1.msra.mxu0 0.0
  %2957 = vmatprep.subr.mxu0 0.0
  %2958 = vmatpush1.msra.mxu0 0.0
  %2959 = vmatprep.subr.mxu0 0.0
  %2960 = vmatpush1.msra.mxu0 0.0
  %2961 = vmatprep.subr.mxu0 0.0
  %2962 = vmatpush1.msra.mxu0 0.0
  %2963 = vmatprep.subr.mxu0 0.0
  %2964 = vmatpush1.msra.mxu0 0.0
  %2965 = vmatprep.subr.mxu0 0.0
  %2966 = vmatpush1.msra.mxu0 0.0
  %2967 = vmatprep.subr.mxu0 0.0
  %2968 = vmatpush1.msra.mxu0 0.0
  %2969 = vmatprep.subr.mxu0 0.0
  %2970 = vmatpush1.msra.mxu0 0.0
  %2971 = vmatprep.subr.mxu0 0.0
  %2972 = vmatpush1.msra.mxu0 0.0
  %2973 = vmatprep.subr.mxu0 0.0
  %2974 = vmatpush1.msra.mxu0 0.0
  %2975 = vmatprep.subr.mxu0 0.0
  %2976 = vmatpush1.msra.mxu0 0.0
  %2977 = vmatprep.mubr.f32.mxu0 0.0
  %v2978 = vand.u32 %v2799, 4294901760
  %2979 = vmatmul.mubr.f32.gmra.mrb[0].mxu0 %v2978
  %v2980 = vpop.f32.mrb[0].mxu0
  %v2981 = vadd.f32 %v2880, %v2980
  %v2982 = vpop.f32.mrb[0].mxu0
  %2983 = vmatprep.mubr.f32.mxu0 0.0
  %v2984 = vand.u32 %v2802, 4294901760
  %2985 = vmatmul.mubr.f32.gmra.mrb[0].mxu0 %v2984
  %v2986 = vpop.f32.mrb[0].mxu0
  %v2987 = vadd.f32 %v2890, %v2986
  %v2988 = vpop.f32.mrb[0].mxu0
  %2989 = vdwg.mxu0
  %2990 = vmatprep.subr.mxu0 0.0
  %v2991 = vand.u32 %v2780, 4294901760
  %v2992 = vsub.f32 %v2780, %v2991
  %2993 = vmatpush1.msra.mxu0 %v2992
  %2994 = vmatprep.subr.mxu0 0.0
  %v2995 = vand.u32 %v2781, 4294901760
  %v2996 = vsub.f32 %v2781, %v2995
  %2997 = vmatpush1.msra.mxu0 %v2996
  %2998 = vmatprep.subr.mxu0 0.0
  %v2999 = vand.u32 %v2782, 4294901760
  %v3000 = vsub.f32 %v2782, %v2999
  %3001 = vmatpush1.msra.mxu0 %v3000
  %3002 = vmatprep.subr.mxu0 0.0
  %v3003 = vand.u32 %v2783, 4294901760
  %v3004 = vsub.f32 %v2783, %v3003
  %3005 = vmatpush1.msra.mxu0 %v3004
  %3006 = vmatprep.subr.mxu0 0.0
  %3007 = vmatpush1.msra.mxu0 0.0
  %3008 = vmatprep.subr.mxu0 0.0
  %3009 = vmatpush1.msra.mxu0 0.0
  %3010 = vmatprep.subr.mxu0 0.0
  %3011 = vmatpush1.msra.mxu0 0.0
  %3012 = vmatprep.subr.mxu0 0.0
  %3013 = vmatpush1.msra.mxu0 0.0
  %3014 = vmatprep.subr.mxu0 0.0
  %3015 = vmatpush1.msra.mxu0 0.0
  %3016 = vmatprep.subr.mxu0 0.0
  %3017 = vmatpush1.msra.mxu0 0.0
  %3018 = vmatprep.subr.mxu0 0.0
  %3019 = vmatpush1.msra.mxu0 0.0
  %3020 = vmatprep.subr.mxu0 0.0
  %3021 = vmatpush1.msra.mxu0 0.0
  %3022 = vmatprep.subr.mxu0 0.0
  %3023 = vmatpush1.msra.mxu0 0.0
  %3024 = vmatprep.subr.mxu0 0.0
  %3025 = vmatpush1.msra.mxu0 0.0
  %3026 = vmatprep.subr.mxu0 0.0
  %3027 = vmatpush1.msra.mxu0 0.0
  %3028 = vmatprep.subr.mxu0 0.0
  %3029 = vmatpush1.msra.mxu0 0.0
  %3030 = vmatprep.subr.mxu0 0.0
  %3031 = vmatpush1.msra.mxu0 0.0
  %3032 = vmatprep.subr.mxu0 0.0
  %3033 = vmatpush1.msra.mxu0 0.0
  %3034 = vmatprep.subr.mxu0 0.0
  %3035 = vmatpush1.msra.mxu0 0.0
  %3036 = vmatprep.subr.mxu0 0.0
  %3037 = vmatpush1.msra.mxu0 0.0
  %3038 = vmatprep.subr.mxu0 0.0
  %3039 = vmatpush1.msra.mxu0 0.0
  %3040 = vmatprep.subr.mxu0 0.0
  %3041 = vmatpush1.msra.mxu0 0.0
  %3042 = vmatprep.subr.mxu0 0.0
  %3043 = vmatpush1.msra.mxu0 0.0
  %3044 = vmatprep.subr.mxu0 0.0
  %3045 = vmatpush1.msra.mxu0 0.0
  %3046 = vmatprep.subr.mxu0 0.0
  %3047 = vmatpush1.msra.mxu0 0.0
  %3048 = vmatprep.subr.mxu0 0.0
  %3049 = vmatpush1.msra.mxu0 0.0
  %3050 = vmatprep.subr.mxu0 0.0
  %3051 = vmatpush1.msra.mxu0 0.0
  %3052 = vmatprep.subr.mxu0 0.0
  %3053 = vmatpush1.msra.mxu0 0.0
  %3054 = vmatprep.subr.mxu0 0.0
  %3055 = vmatpush1.msra.mxu0 0.0
  %3056 = vmatprep.subr.mxu0 0.0
  %3057 = vmatpush1.msra.mxu0 0.0
  %3058 = vmatprep.subr.mxu0 0.0
  %3059 = vmatpush1.msra.mxu0 0.0
  %3060 = vmatprep.subr.mxu0 0.0
  %3061 = vmatpush1.msra.mxu0 0.0
  %3062 = vmatprep.mubr.f32.mxu0 0.0
  %v3063 = vand.u32 %v2799, 4294901760
  %v3064 = vsub.f32 %v2799, %v3063
  %3065 = vmatmul.mubr.f32.gmra.mrb[0].mxu0 %v3064
  %v3066 = vpop.f32.mrb[0].mxu0
  %v3067 = vadd.f32 %v2981, %v3066
  %v3068 = vpop.f32.mrb[0].mxu0
  %3069 = vmatprep.mubr.f32.mxu0 0.0
  %v3070 = vand.u32 %v2802, 4294901760
  %v3071 = vsub.f32 %v2802, %v3070
  %3072 = vmatmul.mubr.f32.gmra.mrb[0].mxu0 %v3071
  %v3073 = vpop.f32.mrb[0].mxu0
  %v3074 = vadd.f32 %v2987, %v3073
  %v3075 = vpop.f32.mrb[0].mxu0
  %3076 = vdwg.mxu0
  %3077 = vmatprep.subr.mxu0 0.0
  %v3078 = vand.u32 %v2780, 4294901760
  %3079 = vmatpush1.msra.mxu0 %v3078
  %3080 = vmatprep.subr.mxu0 0.0
  %v3081 = vand.u32 %v2781, 4294901760
  %3082 = vmatpush1.msra.mxu0 %v3081
  %3083 = vmatprep.subr.mxu0 0.0
  %v3084 = vand.u32 %v2782, 4294901760
  %3085 = vmatpush1.msra.mxu0 %v3084
  %3086 = vmatprep.subr.mxu0 0.0
  %v3087 = vand.u32 %v2783, 4294901760
  %3088 = vmatpush1.msra.mxu0 %v3087
  %3089 = vmatprep.subr.mxu0 0.0
  %3090 = vmatpush1.msra.mxu0 0.0
  %3091 = vmatprep.subr.mxu0 0.0
  %3092 = vmatpush1.msra.mxu0 0.0
  %3093 = vmatprep.subr.mxu0 0.0
  %3094 = vmatpush1.msra.mxu0 0.0
  %3095 = vmatprep.subr.mxu0 0.0
  %3096 = vmatpush1.msra.mxu0 0.0
  %3097 = vmatprep.subr.mxu0 0.0
  %3098 = vmatpush1.msra.mxu0 0.0
  %3099 = vmatprep.subr.mxu0 0.0
  %3100 = vmatpush1.msra.mxu0 0.0
  %3101 = vmatprep.subr.mxu0 0.0
  %3102 = vmatpush1.msra.mxu0 0.0
  %3103 = vmatprep.subr.mxu0 0.0
  %3104 = vmatpush1.msra.mxu0 0.0
  %3105 = vmatprep.subr.mxu0 0.0
  %3106 = vmatpush1.msra.mxu0 0.0
  %3107 = vmatprep.subr.mxu0 0.0
  %3108 = vmatpush1.msra.mxu0 0.0
  %3109 = vmatprep.subr.mxu0 0.0
  %3110 = vmatpush1.msra.mxu0 0.0
  %3111 = vmatprep.subr.mxu0 0.0
  %3112 = vmatpush1.msra.mxu0 0.0
  %3113 = vmatprep.subr.mxu0 0.0
  %3114 = vmatpush1.msra.mxu0 0.0
  %3115 = vmatprep.subr.mxu0 0.0
  %3116 = vmatpush1.msra.mxu0 0.0
  %3117 = vmatprep.subr.mxu0 0.0
  %3118 = vmatpush1.msra.mxu0 0.0
  %3119 = vmatprep.subr.mxu0 0.0
  %3120 = vmatpush1.msra.mxu0 0.0
  %3121 = vmatprep.subr.mxu0 0.0
  %3122 = vmatpush1.msra.mxu0 0.0
  %3123 = vmatprep.subr.mxu0 0.0
  %3124 = vmatpush1.msra.mxu0 0.0
  %3125 = vmatprep.subr.mxu0 0.0
  %3126 = vmatpush1.msra.mxu0 0.0
  %3127 = vmatprep.subr.mxu0 0.0
  %3128 = vmatpush1.msra.mxu0 0.0
  %3129 = vmatprep.subr.mxu0 0.0
  %3130 = vmatpush1.msra.mxu0 0.0
  %3131 = vmatprep.subr.mxu0 0.0
  %3132 = vmatpush1.msra.mxu0 0.0
  %3133 = vmatprep.subr.mxu0 0.0
  %3134 = vmatpush1.msra.mxu0 0.0
  %3135 = vmatprep.subr.mxu0 0.0
  %3136 = vmatpush1.msra.mxu0 0.0
  %3137 = vmatprep.subr.mxu0 0.0
  %3138 = vmatpush1.msra.mxu0 0.0
  %3139 = vmatprep.subr.mxu0 0.0
  %3140 = vmatpush1.msra.mxu0 0.0
  %3141 = vmatprep.subr.mxu0 0.0
  %3142 = vmatpush1.msra.mxu0 0.0
  %3143 = vmatprep.subr.mxu0 0.0
  %3144 = vmatpush1.msra.mxu0 0.0
  %3145 = vmatprep.mubr.f32.mxu0 0.0
  %v3146 = vand.u32 %v2799, 4294901760
  %v3147 = vsub.f32 %v2799, %v3146
  %v3148 = vand.u32 %v3147, 4294901760
  %3149 = vmatmul.mubr.f32.gmra.mrb[0].mxu0 %v3148
  %v3150 = vpop.f32.mrb[0].mxu0
  %v3151 = vadd.f32 %v3067, %v3150
  %v3152 = vpop.f32.mrb[0].mxu0
  %3153 = vmatprep.mubr.f32.mxu0 0.0
  %v3154 = vand.u32 %v2802, 4294901760
  %v3155 = vsub.f32 %v2802, %v3154
  %v3156 = vand.u32 %v3155, 4294901760
  %3157 = vmatmul.mubr.f32.gmra.mrb[0].mxu0 %v3156
  %v3158 = vpop.f32.mrb[0].mxu0
  %v3159 = vadd.f32 %v3074, %v3158
  %v3160 = vpop.f32.mrb[0].mxu0
  %3161 = vdwg.mxu0
  %3162 = vmatprep.subr.mxu0 0.0
  %v3163 = vand.u32 %v2780, 4294901760
  %v3164 = vsub.f32 %v2780, %v3163
  %v3165 = vand.u32 %v3164, 4294901760
  %3166 = vmatpush1.msra.mxu0 %v3165
  %3167 = vmatprep.subr.mxu0 0.0
  %v3168 = vand.u32 %v2781, 4294901760
  %v3169 = vsub.f32 %v2781, %v3168
  %v3170 = vand.u32 %v3169, 4294901760
  %3171 = vmatpush1.msra.mxu0 %v3170
  %3172 = vmatprep.subr.mxu0 0.0
  %v3173 = vand.u32 %v2782, 4294901760
  %v3174 = vsub.f32 %v2782, %v3173
  %v3175 = vand.u32 %v3174, 4294901760
  %3176 = vmatpush1.msra.mxu0 %v3175
  %3177 = vmatprep.subr.mxu0 0.0
  %v3178 = vand.u32 %v2783, 4294901760
  %v3179 = vsub.f32 %v2783, %v3178
  %v3180 = vand.u32 %v3179, 4294901760
  %3181 = vmatpush1.msra.mxu0 %v3180
  %3182 = vmatprep.subr.mxu0 0.0
  %3183 = vmatpush1.msra.mxu0 0.0
  %3184 = vmatprep.subr.mxu0 0.0
  %3185 = vmatpush1.msra.mxu0 0.0
  %3186 = vmatprep.subr.mxu0 0.0
  %3187 = vmatpush1.msra.mxu0 0.0
  %3188 = vmatprep.subr.mxu0 0.0
  %3189 = vmatpush1.msra.mxu0 0.0
  %3190 = vmatprep.subr.mxu0 0.0
  %3191 = vmatpush1.msra.mxu0 0.0
  %3192 = vmatprep.subr.mxu0 0.0
  %3193 = vmatpush1.msra.mxu0 0.0
  %3194 = vmatprep.subr.mxu0 0.0
  %3195 = vmatpush1.msra.mxu0 0.0
  %3196 = vmatprep.subr.mxu0 0.0
  %3197 = vmatpush1.msra.mxu0 0.0
  %3198 = vmatprep.subr.mxu0 0.0
  %3199 = vmatpush1.msra.mxu0 0.0
  %3200 = vmatprep.subr.mxu0 0.0
  %3201 = vmatpush1.msra.mxu0 0.0
  %3202 = vmatprep.subr.mxu0 0.0
  %3203 = vmatpush1.msra.mxu0 0.0
  %3204 = vmatprep.subr.mxu0 0.0
  %3205 = vmatpush1.msra.mxu0 0.0
  %3206 = vmatprep.subr.mxu0 0.0
  %3207 = vmatpush1.msra.mxu0 0.0
  %3208 = vmatprep.subr.mxu0 0.0
  %3209 = vmatpush1.msra.mxu0 0.0
  %3210 = vmatprep.subr.mxu0 0.0
  %3211 = vmatpush1.msra.mxu0 0.0
  %3212 = vmatprep.subr.mxu0 0.0
  %3213 = vmatpush1.msra.mxu0 0.0
  %3214 = vmatprep.subr.mxu0 0.0
  %3215 = vmatpush1.msra.mxu0 0.0
  %3216 = vmatprep.subr.mxu0 0.0
  %3217 = vmatpush1.msra.mxu0 0.0
  %3218 = vmatprep.subr.mxu0 0.0
  %3219 = vmatpush1.msra.mxu0 0.0
  %3220 = vmatprep.subr.mxu0 0.0
  %3221 = vmatpush1.msra.mxu0 0.0
  %3222 = vmatprep.subr.mxu0 0.0
  %3223 = vmatpush1.msra.mxu0 0.0
  %3224 = vmatprep.subr.mxu0 0.0
  %3225 = vmatpush1.msra.mxu0 0.0
  %3226 = vmatprep.subr.mxu0 0.0
  %3227 = vmatpush1.msra.mxu0 0.0
  %3228 = vmatprep.subr.mxu0 0.0
  %3229 = vmatpush1.msra.mxu0 0.0
  %3230 = vmatprep.subr.mxu0 0.0
  %3231 = vmatpush1.msra.mxu0 0.0
  %3232 = vmatprep.subr.mxu0 0.0
  %3233 = vmatpush1.msra.mxu0 0.0
  %3234 = vmatprep.subr.mxu0 0.0
  %3235 = vmatpush1.msra.mxu0 0.0
  %3236 = vmatprep.subr.mxu0 0.0
  %3237 = vmatpush1.msra.mxu0 0.0
  %3238 = vmatprep.mubr.f32.mxu0 0.0
  %v3239 = vand.u32 %v2799, 4294901760
  %3240 = vmatmul.mubr.f32.gmra.mrb[0].mxu0 %v3239
  %v3241 = vpop.f32.mrb[0].mxu0
  %v3242 = vadd.f32 %v3151, %v3241
  %v3243 = vpop.f32.mrb[0].mxu0
  %3244 = vmatprep.mubr.f32.mxu0 0.0
  %v3245 = vand.u32 %v2802, 4294901760
  %3246 = vmatmul.mubr.f32.gmra.mrb[0].mxu0 %v3245
  %v3247 = vpop.f32.mrb[0].mxu0
  %v3248 = vadd.f32 %v3159, %v3247
  %v3249 = vpop.f32.mrb[0].mxu0
  %3250 = vdwg.mxu0
  %3251 = vmatprep.subr.mxu0 0.0
  %v3252 = vand.u32 %v2780, 4294901760
  %3253 = vmatpush1.msra.mxu0 %v3252
  %3254 = vmatprep.subr.mxu0 0.0
  %v3255 = vand.u32 %v2781, 4294901760
  %3256 = vmatpush1.msra.mxu0 %v3255
  %3257 = vmatprep.subr.mxu0 0.0
  %v3258 = vand.u32 %v2782, 4294901760
  %3259 = vmatpush1.msra.mxu0 %v3258
  %3260 = vmatprep.subr.mxu0 0.0
  %v3261 = vand.u32 %v2783, 4294901760
  %3262 = vmatpush1.msra.mxu0 %v3261
  %3263 = vmatprep.subr.mxu0 0.0
  %3264 = vmatpush1.msra.mxu0 0.0
  %3265 = vmatprep.subr.mxu0 0.0
  %3266 = vmatpush1.msra.mxu0 0.0
  %3267 = vmatprep.subr.mxu0 0.0
  %3268 = vmatpush1.msra.mxu0 0.0
  %3269 = vmatprep.subr.mxu0 0.0
  %3270 = vmatpush1.msra.mxu0 0.0
  %3271 = vmatprep.subr.mxu0 0.0
  %3272 = vmatpush1.msra.mxu0 0.0
  %3273 = vmatprep.subr.mxu0 0.0
  %3274 = vmatpush1.msra.mxu0 0.0
  %3275 = vmatprep.subr.mxu0 0.0
  %3276 = vmatpush1.msra.mxu0 0.0
  %3277 = vmatprep.subr.mxu0 0.0
  %3278 = vmatpush1.msra.mxu0 0.0
  %3279 = vmatprep.subr.mxu0 0.0
  %3280 = vmatpush1.msra.mxu0 0.0
  %3281 = vmatprep.subr.mxu0 0.0
  %3282 = vmatpush1.msra.mxu0 0.0
  %3283 = vmatprep.subr.mxu0 0.0
  %3284 = vmatpush1.msra.mxu0 0.0
  %3285 = vmatprep.subr.mxu0 0.0
  %3286 = vmatpush1.msra.mxu0 0.0
  %3287 = vmatprep.subr.mxu0 0.0
  %3288 = vmatpush1.msra.mxu0 0.0
  %3289 = vmatprep.subr.mxu0 0.0
  %3290 = vmatpush1.msra.mxu0 0.0
  %3291 = vmatprep.subr.mxu0 0.0
  %3292 = vmatpush1.msra.mxu0 0.0
  %3293 = vmatprep.subr.mxu0 0.0
  %3294 = vmatpush1.msra.mxu0 0.0
  %3295 = vmatprep.subr.mxu0 0.0
  %3296 = vmatpush1.msra.mxu0 0.0
  %3297 = vmatprep.subr.mxu0 0.0
  %3298 = vmatpush1.msra.mxu0 0.0
  %3299 = vmatprep.subr.mxu0 0.0
  %3300 = vmatpush1.msra.mxu0 0.0
  %3301 = vmatprep.subr.mxu0 0.0
  %3302 = vmatpush1.msra.mxu0 0.0
  %3303 = vmatprep.subr.mxu0 0.0
  %3304 = vmatpush1.msra.mxu0 0.0
  %3305 = vmatprep.subr.mxu0 0.0
  %3306 = vmatpush1.msra.mxu0 0.0
  %3307 = vmatprep.subr.mxu0 0.0
  %3308 = vmatpush1.msra.mxu0 0.0
  %3309 = vmatprep.subr.mxu0 0.0
  %3310 = vmatpush1.msra.mxu0 0.0
  %3311 = vmatprep.subr.mxu0 0.0
  %3312 = vmatpush1.msra.mxu0 0.0
  %3313 = vmatprep.subr.mxu0 0.0
  %3314 = vmatpush1.msra.mxu0 0.0
  %3315 = vmatprep.subr.mxu0 0.0
  %3316 = vmatpush1.msra.mxu0 0.0
  %3317 = vmatprep.subr.mxu0 0.0
  %3318 = vmatpush1.msra.mxu0 0.0
  %3319 = vmatprep.mubr.f32.mxu0 0.0
  %v3320 = vand.u32 %v2799, 4294901760
  %3321 = vmatmul.mubr.f32.gmra.mrb[0].mxu0 %v3320
  %v3322 = vpop.f32.mrb[0].mxu0
  %v3323 = vadd.f32 %v3242, %v3322
  %v3324 = vpop.f32.mrb[0].mxu0
  %3325 = vmatprep.mubr.f32.mxu0 0.0
  %v3326 = vand.u32 %v2802, 4294901760
  %3327 = vmatmul.mubr.f32.gmra.mrb[0].mxu0 %v3326
  %v3328 = vpop.f32.mrb[0].mxu0
  %v3329 = vadd.f32 %v3248, %v3328
  %v3330 = vpop.f32.mrb[0].mxu0
  %3331 = vdwg.mxu0
  %v3332 = vmax.f32 %v3323, %v3329
  %v3333 = vrot.slane %v3332, 4
  %v3334 = vmax.f32 %v3332, %v3333
  %v3335 = vrot.slane %v3334, 2
  %v3336 = vmax.f32 %v3334, %v3335
  %v3337 = vrot.slane %v3336, 1
  %v3338 = vmax.f32 %v3336, %v3337
  %v3339 = vsub.f32 %v3323, %v3338
  %v3340 = vsub.f32 %v3329, %v3338
  %v3341 = vmul.f32 %v3339, 1.442695
  %v3342 = vpow.pop %v3341
  %v3343 = vmul.f32 %v3340, 1.442695
  %v3344 = vpow.pop %v3343
  %v3345 = vadd.f32 %v3342, %v3344
  %v3346 = vrot.slane %v3345, 4
  %v3347 = vadd.f32 %v3345, %v3346
  %v3348 = vrot.slane %v3347, 2
  %v3349 = vadd.f32 %v3347, %v3348
  %v3350 = vrot.slane %v3349, 1
  %v3351 = vadd.f32 %v3349, %v3350
  %v3352 = vrcp.pop %v3351
  %v3353 = vmul.f32 %v3342, %v3352
  %v3354 = vmul.f32 %v3344, %v3352
  %3355 = vxpose.xlu0.b32.start [1/16] %v3353, 128
  %3356 = vxpose.xlu0.b32.cont [2/16] %v3354, 128
  %3357 = vxpose.xlu0.b32.cont [3/16] 0.0, 128
  %3358 = vxpose.xlu0.b32.cont [4/16] 0.0, 128
  %3359 = vxpose.xlu0.b32.cont [5/16] 0.0, 128
  %3360 = vxpose.xlu0.b32.cont [6/16] 0.0, 128
  %3361 = vxpose.xlu0.b32.cont [7/16] 0.0, 128
  %3362 = vxpose.xlu0.b32.cont [8/16] 0.0, 128
  %3363 = vxpose.xlu0.b32.cont [9/16] 0.0, 128
  %3364 = vxpose.xlu0.b32.cont [10/16] 0.0, 128
  %3365 = vxpose.xlu0.b32.cont [11/16] 0.0, 128
  %3366 = vxpose.xlu0.b32.cont [12/16] 0.0, 128
  %3367 = vxpose.xlu0.b32.cont [13/16] 0.0, 128
  %3368 = vxpose.xlu0.b32.cont [14/16] 0.0, 128
  %3369 = vxpose.xlu0.b32.cont [15/16] 0.0, 128
  %3370 = vxpose.xlu0.b32.end [16/16] 0.0, 128
  %v3371 = vpop.trf.xlu0
  %v3372 = vpop.trf.xlu0
  %v3373 = vpop.trf.xlu0
  %v3374 = vpop.trf.xlu0
  %v3375 = vpop.trf.xlu0
  %v3376 = vpop.trf.xlu0
  %v3377 = vpop.trf.xlu0
  %v3378 = vpop.trf.xlu0
  %v3379 = vpop.trf.xlu0
  %v3380 = vpop.trf.xlu0
  %v3381 = vpop.trf.xlu0
  %v3382 = vpop.trf.xlu0
  %v3383 = vpop.trf.xlu0
  %v3384 = vpop.trf.xlu0
  %v3385 = vpop.trf.xlu0
  %v3386 = vpop.trf.xlu0
  %3387 = vst.msk [vmem:[%s4] sm:$0xff] %vm89, %v3371
  %3388 = vst.msk [vmem:[%s4 + $0x8] sm:$0xff] %vm89, %v3372
  %3389 = vst.msk [vmem:[%s4 + $0x10] sm:$0xff] %vm89, %v3373
  %3390 = vst.msk [vmem:[%s4 + $0x18] sm:$0xff] %vm89, %v3374
  %3391 = vst.msk [vmem:[%s4 + $0x20] sm:$0xff] %vm89, %v3375
  %3392 = vst.msk [vmem:[%s4 + $0x28] sm:$0xff] %vm89, %v3376
  %3393 = vst.msk [vmem:[%s4 + $0x30] sm:$0xff] %vm89, %v3377
  %3394 = vst.msk [vmem:[%s4 + $0x38] sm:$0xff] %vm89, %v3378
  %3395 = vst.msk [vmem:[%s4 + $0x40] sm:$0xff] %vm89, %v3379
  %3396 = vst.msk [vmem:[%s4 + $0x48] sm:$0xff] %vm89, %v3380
  %3397 = vst.msk [vmem:[%s4 + $0x50] sm:$0xff] %vm89, %v3381
  %3398 = vst.msk [vmem:[%s4 + $0x58] sm:$0xff] %vm89, %v3382
  %3399 = vst.msk [vmem:[%s4 + $0x60] sm:$0xff] %vm89, %v3383
  %3400 = vst.msk [vmem:[%s4 + $0x68] sm:$0xff] %vm89, %v3384
  %3401 = vst.msk [vmem:[%s4 + $0x70] sm:$0xff] %vm89, %v3385
  %3402 = vst.msk [vmem:[%s4 + $0x78] sm:$0xff] %vm89, %v3386
  // Predicated region
  $region18: #{tpu_custom_call.1} parent=0 // pred_check
    _
  $region19: #{tpu_custom_call.1} parent=0 // pred_check_branch
    %3404 = sbr.rel (0) target = $region21
  $region20: #{tpu_custom_call.1} parent=0 // pred_region
    _
  $region21: #{tpu_custom_call.1} parent=0 // pred_fallthru
    _
  // Predicated region
  $region22: #{tpu_custom_call.1} parent=0 // pred_check
    _
  $region23: #{tpu_custom_call.1} parent=0 // pred_check_branch
    %3406 = sbr.rel (0) target = $region25
  $region24: #{tpu_custom_call.1} parent=0 // pred_region
    _
  $region25: #{tpu_custom_call.1} parent=0 // pred_fallthru
    _

</llo_original>
